<compile_context>
chip_gen: v7x
topology: tpu7x:2x2x1
jax: 0.10.0
libtpu: 0.0.40
codegen_flags: <defaults>
</compile_context>

<pallas_src>
import functools

import jax
import jax.numpy as jnp
from jax.experimental import pallas as pl
from jax.experimental.pallas import tpu as pltpu


# --------------------------- fused Pallas kernel ----------------------------

def _fused_decoder_kernel(*refs, num_stages):
    """refs = [w_bd, feat_flat, pre_w, ups,
               (bg, dw, pw) * num_stages,
               bg_final, dw_final, pw_final_padded,
               out]"""
    it = iter(refs)
    wbd_ref = next(it)
    feat_ref = next(it)
    pre_w_ref = next(it)
    ups_ref = next(it)
    stage_refs = [(next(it), next(it), next(it)) for _ in range(num_stages)]
    bgf_ref = next(it)
    dwf_ref = next(it)
    pwf_ref = next(it)
    o_ref = next(it)

    f32 = jnp.float32

    # grid_sample (as a block-diag bilinear-weight matmul) + upsample bmm +
    # 1x1 pre-conv, all on the MXU.  Smallest-rows-first contraction order.
    comb = jnp.dot(ups_ref[...], wbd_ref[...], preferred_element_type=f32)
    x = jnp.dot(comb, feat_ref[...], preferred_element_type=f32)
    x = jnp.dot(x, pre_w_ref[...], preferred_element_type=f32)

    def spiral_stage(x, bg, dw, pw, relu):
        # bg = vstack_s(kron(I_B, G_s @ U)): spiral gather + up-transform for
        # all S spiral steps folded into ONE dense (S*M, M_prev) matrix, so the
        # whole gather/upsample of the stage is a single MXU matmul.
        S = dw.shape[0]
        M = bg.shape[0] // S
        z = jnp.dot(bg, x, preferred_element_type=f32)          # (S*M, Cin)
        # depthwise Conv1d over the spiral = scaled sum of the S row blocks
        y = z[0:M, :] * dw[0:1, :]
        for s in range(1, S):
            y = y + z[s * M:(s + 1) * M, :] * dw[s:s + 1, :]
        out = jnp.dot(y, pw, preferred_element_type=f32)        # pointwise
        if relu:
            out = jnp.maximum(out, 0.0)
        return out

    for bg_ref, dw_ref, pw_ref in stage_refs:
        x = spiral_stage(x, bg_ref[...], dw_ref[...], pw_ref[...], relu=True)

    # final DSConv to (lane-padded) 3-D coordinates, no activation.
    o_ref[...] = spiral_stage(x, bgf_ref[...], dwf_ref[...], pwf_ref[...],
                              relu=False)


def _full_spec(arr):
    n = arr.ndim
    return pl.BlockSpec(arr.shape, lambda n=n: (0,) * n)


def fused_decoder_call(fused, w_bd, feat_flat):
    """w_bd: (B*K, B*H*W) bilinear sampling weights (batch block-diagonal);
    feat_flat: (B*H*W, feat_dim) raw feature map -> (B*V_finest, 128)."""
    inputs = [w_bd, feat_flat, fused["pre_w"], fused["ups"]]
    for st in fused["stages"]:
        inputs += [st["bg"], st["dw"], st["pw"]]
    inputs += [fused["bg_final"], fused["dw_final"], fused["pw_final_pad"]]

    rows = fused["batch"] * fused["v_finest"]   # B * V_finest (lane-dense M)
    out_cols = fused["pw_final_pad"].shape[1]   # 128 (lane-dense store)

    kern = functools.partial(_fused_decoder_kernel,
                             num_stages=len(fused["stages"]))
    return pl.pallas_call(
        kern,
        out_shape=jax.ShapeDtypeStruct((rows, out_cols), jnp.float32),
        in_specs=[_full_spec(a) for a in inputs],
        out_specs=pl.BlockSpec((rows, out_cols), lambda: (0, 0)),
        compiler_params=pltpu.CompilerParams(
            vmem_limit_bytes=32 * 1024 * 1024),
    )(*inputs)


# ------------------------------ JAX glue ops --------------------------------

def put_keypoints_in_m1_to_1(kp01):
    return jnp.clip((kp01 - 0.5) * 2.0, -1.0, 1.0)


def bilinear_sample_matrix(uv, H, W):
    """Bilinear sampling weights matching F.grid_sample(..., mode='bilinear',
    padding_mode='zeros', align_corners=True), expressed as a dense weight
    matrix over the H*W spatial positions (no gather -> no scalar loop on TPU).

    uv: (B, K, 2) in [-1, 1] (x=width, y=height).  Returns (B, K, H*W).
    """
    gx = (uv[..., 0] + 1.0) * 0.5 * (W - 1)   # align_corners=True
    gy = (uv[..., 1] + 1.0) * 0.5 * (H - 1)
    x0 = jnp.floor(gx)
    y0 = jnp.floor(gy)
    x1 = x0 + 1.0
    y1 = y0 + 1.0
    wx1 = gx - x0
    wx0 = 1.0 - wx1
    wy1 = gy - y0
    wy0 = 1.0 - wy1
    pidx = jnp.arange(H * W, dtype=jnp.float32)

    def corner(ix, iy, w):
        inb = (ix >= 0) & (ix <= W - 1) & (iy >= 0) & (iy <= H - 1)
        flat = jnp.clip(iy, 0, H - 1) * W + jnp.clip(ix, 0, W - 1)
        onehot = (pidx[None, None, :] == flat[..., None]).astype(jnp.float32)
        return onehot * (w * inb.astype(jnp.float32))[..., None]

    return (corner(x0, y0, wx0 * wy0) + corner(x1, y0, wx1 * wy0)
            + corner(x0, y1, wx0 * wy1) + corner(x1, y1, wx1 * wy1))


# ----------------------------- parameter init -------------------------------

def init_decoder3d_params(key, *, feat_dim, out_channels, keypoints_num,
                          num_vert, spiral_len):
    """Deterministic synthetic parameters mirroring Decoder3D.__init__ shapes.

    up_transform matrices are a single matrix per level (the PyTorch module
    stores batch-replicated copies of the same sparse matrix)."""
    n_lvl = len(num_vert) - 1  # 4 mesh levels
    keys = jax.random.split(key, 64)
    ki = iter(range(64))

    def nrm(shape, scale):
        return jax.random.normal(keys[next(ki)], shape, jnp.float32) * scale

    params = {}
    # preprocess 1x1 conv (Conv2d 1x1, bias=False) stored as (Cin, Cout).
    params["pre_w"] = nrm((feat_dim, out_channels[-1]),
                          (2.0 / feat_dim) ** 0.5)
    # upsample_matrix = ones(V_coarsest, keypoints_num) * 0.01
    params["upsample_matrix"] = jnp.ones(
        (num_vert[-1], keypoints_num), jnp.float32) * 0.01

    # synthetic spiral indices and up-transforms (stand-ins for transform.pkl)
    spiral_indices = []
    up_transform = []                     # shared across batch, as in PyTorch
    for k in range(n_lvl):
        spiral_indices.append(jax.random.randint(
            keys[next(ki)], (num_vert[k], spiral_len[k]), 0, num_vert[k],
            dtype=jnp.int32))
        up_transform.append(nrm((num_vert[k], num_vert[k + 1]), 0.1))

    # spiral decoder stages: stage i uses up_transform[n_lvl-1-i] and the
    # UpsampleConv built at idx=i in _create_spiral_layers.
    stages = []
    for idx in range(n_lvl):
        in_ch = out_channels[-idx] if idx > 0 else out_channels[-idx - 1]
        out_ch = out_channels[-idx - 1]
        inds = spiral_indices[-idx - 1]
        S = inds.shape[1]
        stages.append({
            "up": up_transform[n_lvl - 1 - idx],
            "indices": inds,
            "dw": nrm((S, in_ch), (2.0 / S) ** 0.5),
            "pw": nrm((in_ch, out_ch), (2.0 / in_ch) ** 0.5),
        })
    params["stages"] = stages

    # final DSConv(out_channels[0] -> 3) on the finest mesh level
    S0 = spiral_indices[0].shape[1]
    params["final_indices"] = spiral_indices[0]
    params["final_dw"] = nrm((S0, out_channels[0]), (2.0 / S0) ** 0.5)
    params["final_pw"] = nrm((out_channels[0], 3),
                             (2.0 / out_channels[0]) ** 0.5)
    return params


def _kron_eye(mat, batch):
    return jnp.kron(jnp.eye(batch, dtype=mat.dtype), mat)


def prepare_fused_params(params, batch_size, *, out_lane_pad=128):
    """One-time fold of up-transform bmm's and spiral gathers into one dense
    vstack_s(kron(I_B, G_s @ U)) matrix per stage (batch folded into rows), so
    inside the kernel each stage's gather+upsample is a single 2-D matmul.
    All folded operands total < ~1.5 MiB."""
    B = batch_size
    fused = {"pre_w": params["pre_w"],
             "ups": _kron_eye(params["upsample_matrix"], B)}

    stages = []
    for st in params["stages"]:
        inds = st["indices"]                                    # (V, S)
        V, S = inds.shape
        onehot = jax.nn.one_hot(inds, V, dtype=jnp.float32)     # (V, S, V)
        gu = jnp.einsum("vsw,wp->svp", onehot, st["up"])        # (S, V, Vprev)
        bg = jnp.concatenate([_kron_eye(gu[s], B) for s in range(S)], axis=0)
        stages.append({"bg": bg, "dw": st["dw"], "pw": st["pw"]})
    fused["stages"] = stages

    inds = params["final_indices"]                              # (V0, S)
    V0, S = inds.shape
    onehot = jax.nn.one_hot(inds, V0, dtype=jnp.float32)        # (V0, S, V0)
    g = jnp.transpose(onehot, (1, 0, 2))                        # (S, V0, V0)
    fused["bg_final"] = jnp.concatenate(
        [_kron_eye(g[s], B) for s in range(S)], axis=0)         # (S*B*V0, B*V0)
    fused["dw_final"] = params["final_dw"]
    pwf = params["final_pw"]                                    # (C0, 3)
    fused["pw_final_pad"] = jnp.pad(
        pwf, ((0, 0), (0, out_lane_pad - pwf.shape[1])))
    fused["out_dim"] = int(pwf.shape[1])
    fused["batch"] = B
    fused["v_finest"] = int(V0)
    return fused


# -------------------------------- forward -----------------------------------

def decoder3d_forward(fused, keypoints_01, x):
    """keypoints_01: (B, K, 2) in [0, 1]; x: (B, feat_dim, H, W) NCHW.

    Returns (B, V_finest, 3) decoded 3D vertices.
    """
    B, Cin, H, W = x.shape
    K = keypoints_01.shape[1]
    assert B == fused["batch"]
    feat_flat = jnp.transpose(x, (0, 2, 3, 1)).reshape(B * H * W, Cin)
    kp = put_keypoints_in_m1_to_1(keypoints_01)
    # grid_sample as a batch-block-diagonal bilinear weight matrix (the 1x1
    # pre-conv is commuted past sampling and applied inside the fused kernel:
    # exact, since the conv is 1x1 and bias-free).
    w = bilinear_sample_matrix(kp, H, W)                        # (B, K, H*W)
    w_bd = jnp.einsum("bkp,bc->bkcp", w,
                      jnp.eye(B, dtype=w.dtype)).reshape(B * K, B * H * W)
    out_wide = fused_decoder_call(fused, w_bd, feat_flat)       # (B*V, 128)
    V = fused["v_finest"]
    return out_wide[:, :fused["out_dim"]].reshape(B, V, fused["out_dim"])


# ---------------------------------- main -------------------------------------

if __name__ == "__main__":
    B = 2
    feat_dim = 32
    out_channels = [16, 16, 32, 32]
    keypoints_num = 8
    H = W = 8
    num_vert = [64, 32, 16, 8, 4]        # finest ... coarsest mesh levels
    spiral_len = (9, 9, 9, 9)

    key = jax.random.PRNGKey(0)
    k_params, k_kp, k_x = jax.random.split(key, 3)

    params = init_decoder3d_params(
        k_params, feat_dim=feat_dim, out_channels=out_channels,
        keypoints_num=keypoints_num, num_vert=num_vert, spiral_len=spiral_len)
    fused = prepare_fused_params(params, B)

    keypoints_01 = jax.random.uniform(k_kp, (B, keypoints_num, 2),
                                      jnp.float32)
    x = jax.random.normal(k_x, (B, feat_dim, H, W), jnp.float32)

    fwd = jax.jit(functools.partial(decoder3d_forward, fused))
    out = fwd(keypoints_01, x)
    out = jax.block_until_ready(out)
    assert out.shape == (B, num_vert[0], 3), out.shape
    assert jnp.all(jnp.isfinite(out))
    print("KERNEL_OK")
</pallas_src>

<mosaic_0001>
module attributes {stable_mosaic.version = 11 : i64} {
  func.func @_fused_decoder_kernel(%arg0: memref<16x128xf32, #tpu.memory_space<vmem>>, %arg1: memref<128x32xf32, #tpu.memory_space<vmem>>, %arg2: memref<32x32xf32, #tpu.memory_space<vmem>>, %arg3: memref<8x16xf32, #tpu.memory_space<vmem>>, %arg4: memref<144x8xf32, #tpu.memory_space<vmem>>, %arg5: memref<9x32xf32, #tpu.memory_space<vmem>>, %arg6: memref<32x32xf32, #tpu.memory_space<vmem>>, %arg7: memref<288x16xf32, #tpu.memory_space<vmem>>, %arg8: memref<9x32xf32, #tpu.memory_space<vmem>>, %arg9: memref<32x32xf32, #tpu.memory_space<vmem>>, %arg10: memref<576x32xf32, #tpu.memory_space<vmem>>, %arg11: memref<9x32xf32, #tpu.memory_space<vmem>>, %arg12: memref<32x16xf32, #tpu.memory_space<vmem>>, %arg13: memref<1152x64xf32, #tpu.memory_space<vmem>>, %arg14: memref<9x16xf32, #tpu.memory_space<vmem>>, %arg15: memref<16x16xf32, #tpu.memory_space<vmem>>, %arg16: memref<1152x128xf32, #tpu.memory_space<vmem>>, %arg17: memref<9x16xf32, #tpu.memory_space<vmem>>, %arg18: memref<16x128xf32, #tpu.memory_space<vmem>>, %arg19: memref<128x128xf32, #tpu.memory_space<vmem>>) attributes {dimension_semantics = [], scalar_prefetch = 0 : i64, scratch_operands = 0 : i64, tpu.core_type = #tpu.core_type<tc>} {
    %c0 = arith.constant 0 : index
    %c0_0 = arith.constant 0 : index
    %0 = vector.load %arg3[%c0, %c0_0] : memref<8x16xf32, #tpu.memory_space<vmem>>, vector<8x16xf32>
    %c0_1 = arith.constant 0 : index
    %c0_2 = arith.constant 0 : index
    %1 = vector.load %arg0[%c0_1, %c0_2] : memref<16x128xf32, #tpu.memory_space<vmem>>, vector<16x128xf32>
    %cst = arith.constant dense<0.000000e+00> : vector<8x128xf32>
    %2 = tpu.matmul %0, %1, %cst {dimension_numbers = #tpu.dot_dimension_numbers<[1], [0], [0], [1], [0, 0, 1, 1], [], []>} : vector<8x16xf32>, vector<16x128xf32>, vector<8x128xf32> -> vector<8x128xf32>
    %c0_3 = arith.constant 0 : index
    %c0_4 = arith.constant 0 : index
    %3 = vector.load %arg1[%c0_3, %c0_4] : memref<128x32xf32, #tpu.memory_space<vmem>>, vector<128x32xf32>
    %cst_5 = arith.constant dense<0.000000e+00> : vector<8x32xf32>
    %4 = tpu.matmul %2, %3, %cst_5 {dimension_numbers = #tpu.dot_dimension_numbers<[1], [0], [0], [1], [0, 0, 1, 1], [], []>} : vector<8x128xf32>, vector<128x32xf32>, vector<8x32xf32> -> vector<8x32xf32>
    %c0_6 = arith.constant 0 : index
    %c0_7 = arith.constant 0 : index
    %5 = vector.load %arg2[%c0_6, %c0_7] : memref<32x32xf32, #tpu.memory_space<vmem>>, vector<32x32xf32>
    %cst_8 = arith.constant dense<0.000000e+00> : vector<8x32xf32>
    %6 = tpu.matmul %4, %5, %cst_8 {dimension_numbers = #tpu.dot_dimension_numbers<[1], [0], [0], [1], [0, 0, 1, 1], [], []>} : vector<8x32xf32>, vector<32x32xf32>, vector<8x32xf32> -> vector<8x32xf32>
    %c0_9 = arith.constant 0 : index
    %c0_10 = arith.constant 0 : index
    %7 = vector.load %arg4[%c0_9, %c0_10] : memref<144x8xf32, #tpu.memory_space<vmem>>, vector<144x8xf32>
    %c0_11 = arith.constant 0 : index
    %c0_12 = arith.constant 0 : index
    %8 = vector.load %arg5[%c0_11, %c0_12] : memref<9x32xf32, #tpu.memory_space<vmem>>, vector<9x32xf32>
    %c0_13 = arith.constant 0 : index
    %c0_14 = arith.constant 0 : index
    %9 = vector.load %arg6[%c0_13, %c0_14] : memref<32x32xf32, #tpu.memory_space<vmem>>, vector<32x32xf32>
    %cst_15 = arith.constant dense<0.000000e+00> : vector<144x32xf32>
    %10 = tpu.matmul %7, %6, %cst_15 {dimension_numbers = #tpu.dot_dimension_numbers<[1], [0], [0], [1], [0, 0, 1, 1], [], []>} : vector<144x8xf32>, vector<8x32xf32>, vector<144x32xf32> -> vector<144x32xf32>
    %11 = vector.extract_strided_slice %10 {offsets = [0, 0], sizes = [16, 32], strides = [1, 1]} : vector<144x32xf32> to vector<16x32xf32>
    %12 = vector.extract_strided_slice %8 {offsets = [0, 0], sizes = [1, 32], strides = [1, 1]} : vector<9x32xf32> to vector<1x32xf32>
    %13 = vector.broadcast %12 : vector<1x32xf32> to vector<16x32xf32>
    %14 = arith.mulf %11, %13 : vector<16x32xf32>
    %15 = vector.extract_strided_slice %10 {offsets = [16, 0], sizes = [16, 32], strides = [1, 1]} : vector<144x32xf32> to vector<16x32xf32>
    %16 = vector.extract_strided_slice %8 {offsets = [1, 0], sizes = [1, 32], strides = [1, 1]} : vector<9x32xf32> to vector<1x32xf32>
    %17 = vector.broadcast %16 : vector<1x32xf32> to vector<16x32xf32>
    %18 = arith.mulf %15, %17 : vector<16x32xf32>
    %19 = arith.addf %14, %18 : vector<16x32xf32>
    %20 = vector.extract_strided_slice %10 {offsets = [32, 0], sizes = [16, 32], strides = [1, 1]} : vector<144x32xf32> to vector<16x32xf32>
    %21 = vector.extract_strided_slice %8 {offsets = [2, 0], sizes = [1, 32], strides = [1, 1]} : vector<9x32xf32> to vector<1x32xf32>
    %22 = vector.broadcast %21 : vector<1x32xf32> to vector<16x32xf32>
    %23 = arith.mulf %20, %22 : vector<16x32xf32>
    %24 = arith.addf %19, %23 : vector<16x32xf32>
    %25 = vector.extract_strided_slice %10 {offsets = [48, 0], sizes = [16, 32], strides = [1, 1]} : vector<144x32xf32> to vector<16x32xf32>
    %26 = vector.extract_strided_slice %8 {offsets = [3, 0], sizes = [1, 32], strides = [1, 1]} : vector<9x32xf32> to vector<1x32xf32>
    %27 = vector.broadcast %26 : vector<1x32xf32> to vector<16x32xf32>
    %28 = arith.mulf %25, %27 : vector<16x32xf32>
    %29 = arith.addf %24, %28 : vector<16x32xf32>
    %30 = vector.extract_strided_slice %10 {offsets = [64, 0], sizes = [16, 32], strides = [1, 1]} : vector<144x32xf32> to vector<16x32xf32>
    %31 = vector.extract_strided_slice %8 {offsets = [4, 0], sizes = [1, 32], strides = [1, 1]} : vector<9x32xf32> to vector<1x32xf32>
    %32 = vector.broadcast %31 : vector<1x32xf32> to vector<16x32xf32>
    %33 = arith.mulf %30, %32 : vector<16x32xf32>
    %34 = arith.addf %29, %33 : vector<16x32xf32>
    %35 = vector.extract_strided_slice %10 {offsets = [80, 0], sizes = [16, 32], strides = [1, 1]} : vector<144x32xf32> to vector<16x32xf32>
    %36 = vector.extract_strided_slice %8 {offsets = [5, 0], sizes = [1, 32], strides = [1, 1]} : vector<9x32xf32> to vector<1x32xf32>
    %37 = vector.broadcast %36 : vector<1x32xf32> to vector<16x32xf32>
    %38 = arith.mulf %35, %37 : vector<16x32xf32>
    %39 = arith.addf %34, %38 : vector<16x32xf32>
    %40 = vector.extract_strided_slice %10 {offsets = [96, 0], sizes = [16, 32], strides = [1, 1]} : vector<144x32xf32> to vector<16x32xf32>
    %41 = vector.extract_strided_slice %8 {offsets = [6, 0], sizes = [1, 32], strides = [1, 1]} : vector<9x32xf32> to vector<1x32xf32>
    %42 = vector.broadcast %41 : vector<1x32xf32> to vector<16x32xf32>
    %43 = arith.mulf %40, %42 : vector<16x32xf32>
    %44 = arith.addf %39, %43 : vector<16x32xf32>
    %45 = vector.extract_strided_slice %10 {offsets = [112, 0], sizes = [16, 32], strides = [1, 1]} : vector<144x32xf32> to vector<16x32xf32>
    %46 = vector.extract_strided_slice %8 {offsets = [7, 0], sizes = [1, 32], strides = [1, 1]} : vector<9x32xf32> to vector<1x32xf32>
    %47 = vector.broadcast %46 : vector<1x32xf32> to vector<16x32xf32>
    %48 = arith.mulf %45, %47 : vector<16x32xf32>
    %49 = arith.addf %44, %48 : vector<16x32xf32>
    %50 = vector.extract_strided_slice %10 {offsets = [128, 0], sizes = [16, 32], strides = [1, 1]} : vector<144x32xf32> to vector<16x32xf32>
    %51 = vector.extract_strided_slice %8 {offsets = [8, 0], sizes = [1, 32], strides = [1, 1]} : vector<9x32xf32> to vector<1x32xf32>
    %52 = vector.broadcast %51 : vector<1x32xf32> to vector<16x32xf32>
    %53 = arith.mulf %50, %52 : vector<16x32xf32>
    %54 = arith.addf %49, %53 : vector<16x32xf32>
    %cst_16 = arith.constant dense<0.000000e+00> : vector<16x32xf32>
    %55 = tpu.matmul %54, %9, %cst_16 {dimension_numbers = #tpu.dot_dimension_numbers<[1], [0], [0], [1], [0, 0, 1, 1], [], []>} : vector<16x32xf32>, vector<32x32xf32>, vector<16x32xf32> -> vector<16x32xf32>
    %cst_17 = arith.constant 0.000000e+00 : f32
    %56 = vector.broadcast %cst_17 : f32 to vector<16x32xf32>
    %57 = arith.maximumf %55, %56 : vector<16x32xf32>
    %c0_18 = arith.constant 0 : index
    %c0_19 = arith.constant 0 : index
    %58 = vector.load %arg7[%c0_18, %c0_19] : memref<288x16xf32, #tpu.memory_space<vmem>>, vector<288x16xf32>
    %c0_20 = arith.constant 0 : index
    %c0_21 = arith.constant 0 : index
    %59 = vector.load %arg8[%c0_20, %c0_21] : memref<9x32xf32, #tpu.memory_space<vmem>>, vector<9x32xf32>
    %c0_22 = arith.constant 0 : index
    %c0_23 = arith.constant 0 : index
    %60 = vector.load %arg9[%c0_22, %c0_23] : memref<32x32xf32, #tpu.memory_space<vmem>>, vector<32x32xf32>
    %cst_24 = arith.constant dense<0.000000e+00> : vector<288x32xf32>
    %61 = tpu.matmul %58, %57, %cst_24 {dimension_numbers = #tpu.dot_dimension_numbers<[1], [0], [0], [1], [0, 0, 1, 1], [], []>} : vector<288x16xf32>, vector<16x32xf32>, vector<288x32xf32> -> vector<288x32xf32>
    %62 = vector.extract_strided_slice %61 {offsets = [0, 0], sizes = [32, 32], strides = [1, 1]} : vector<288x32xf32> to vector<32x32xf32>
    %63 = vector.extract_strided_slice %59 {offsets = [0, 0], sizes = [1, 32], strides = [1, 1]} : vector<9x32xf32> to vector<1x32xf32>
    %64 = vector.broadcast %63 : vector<1x32xf32> to vector<32x32xf32>
    %65 = arith.mulf %62, %64 : vector<32x32xf32>
    %66 = vector.extract_strided_slice %61 {offsets = [32, 0], sizes = [32, 32], strides = [1, 1]} : vector<288x32xf32> to vector<32x32xf32>
    %67 = vector.extract_strided_slice %59 {offsets = [1, 0], sizes = [1, 32], strides = [1, 1]} : vector<9x32xf32> to vector<1x32xf32>
    %68 = vector.broadcast %67 : vector<1x32xf32> to vector<32x32xf32>
    %69 = arith.mulf %66, %68 : vector<32x32xf32>
    %70 = arith.addf %65, %69 : vector<32x32xf32>
    %71 = vector.extract_strided_slice %61 {offsets = [64, 0], sizes = [32, 32], strides = [1, 1]} : vector<288x32xf32> to vector<32x32xf32>
    %72 = vector.extract_strided_slice %59 {offsets = [2, 0], sizes = [1, 32], strides = [1, 1]} : vector<9x32xf32> to vector<1x32xf32>
    %73 = vector.broadcast %72 : vector<1x32xf32> to vector<32x32xf32>
    %74 = arith.mulf %71, %73 : vector<32x32xf32>
    %75 = arith.addf %70, %74 : vector<32x32xf32>
    %76 = vector.extract_strided_slice %61 {offsets = [96, 0], sizes = [32, 32], strides = [1, 1]} : vector<288x32xf32> to vector<32x32xf32>
    %77 = vector.extract_strided_slice %59 {offsets = [3, 0], sizes = [1, 32], strides = [1, 1]} : vector<9x32xf32> to vector<1x32xf32>
    %78 = vector.broadcast %77 : vector<1x32xf32> to vector<32x32xf32>
    %79 = arith.mulf %76, %78 : vector<32x32xf32>
    %80 = arith.addf %75, %79 : vector<32x32xf32>
    %81 = vector.extract_strided_slice %61 {offsets = [128, 0], sizes = [32, 32], strides = [1, 1]} : vector<288x32xf32> to vector<32x32xf32>
    %82 = vector.extract_strided_slice %59 {offsets = [4, 0], sizes = [1, 32], strides = [1, 1]} : vector<9x32xf32> to vector<1x32xf32>
    %83 = vector.broadcast %82 : vector<1x32xf32> to vector<32x32xf32>
    %84 = arith.mulf %81, %83 : vector<32x32xf32>
    %85 = arith.addf %80, %84 : vector<32x32xf32>
    %86 = vector.extract_strided_slice %61 {offsets = [160, 0], sizes = [32, 32], strides = [1, 1]} : vector<288x32xf32> to vector<32x32xf32>
    %87 = vector.extract_strided_slice %59 {offsets = [5, 0], sizes = [1, 32], strides = [1, 1]} : vector<9x32xf32> to vector<1x32xf32>
    %88 = vector.broadcast %87 : vector<1x32xf32> to vector<32x32xf32>
    %89 = arith.mulf %86, %88 : vector<32x32xf32>
    %90 = arith.addf %85, %89 : vector<32x32xf32>
    %91 = vector.extract_strided_slice %61 {offsets = [192, 0], sizes = [32, 32], strides = [1, 1]} : vector<288x32xf32> to vector<32x32xf32>
    %92 = vector.extract_strided_slice %59 {offsets = [6, 0], sizes = [1, 32], strides = [1, 1]} : vector<9x32xf32> to vector<1x32xf32>
    %93 = vector.broadcast %92 : vector<1x32xf32> to vector<32x32xf32>
    %94 = arith.mulf %91, %93 : vector<32x32xf32>
    %95 = arith.addf %90, %94 : vector<32x32xf32>
    %96 = vector.extract_strided_slice %61 {offsets = [224, 0], sizes = [32, 32], strides = [1, 1]} : vector<288x32xf32> to vector<32x32xf32>
    %97 = vector.extract_strided_slice %59 {offsets = [7, 0], sizes = [1, 32], strides = [1, 1]} : vector<9x32xf32> to vector<1x32xf32>
    %98 = vector.broadcast %97 : vector<1x32xf32> to vector<32x32xf32>
    %99 = arith.mulf %96, %98 : vector<32x32xf32>
    %100 = arith.addf %95, %99 : vector<32x32xf32>
    %101 = vector.extract_strided_slice %61 {offsets = [256, 0], sizes = [32, 32], strides = [1, 1]} : vector<288x32xf32> to vector<32x32xf32>
    %102 = vector.extract_strided_slice %59 {offsets = [8, 0], sizes = [1, 32], strides = [1, 1]} : vector<9x32xf32> to vector<1x32xf32>
    %103 = vector.broadcast %102 : vector<1x32xf32> to vector<32x32xf32>
    %104 = arith.mulf %101, %103 : vector<32x32xf32>
    %105 = arith.addf %100, %104 : vector<32x32xf32>
    %cst_25 = arith.constant dense<0.000000e+00> : vector<32x32xf32>
    %106 = tpu.matmul %105, %60, %cst_25 {dimension_numbers = #tpu.dot_dimension_numbers<[1], [0], [0], [1], [0, 0, 1, 1], [], []>} : vector<32x32xf32>, vector<32x32xf32>, vector<32x32xf32> -> vector<32x32xf32>
    %cst_26 = arith.constant 0.000000e+00 : f32
    %107 = vector.broadcast %cst_26 : f32 to vector<32x32xf32>
    %108 = arith.maximumf %106, %107 : vector<32x32xf32>
    %c0_27 = arith.constant 0 : index
    %c0_28 = arith.constant 0 : index
    %109 = vector.load %arg10[%c0_27, %c0_28] : memref<576x32xf32, #tpu.memory_space<vmem>>, vector<576x32xf32>
    %c0_29 = arith.constant 0 : index
    %c0_30 = arith.constant 0 : index
    %110 = vector.load %arg11[%c0_29, %c0_30] : memref<9x32xf32, #tpu.memory_space<vmem>>, vector<9x32xf32>
    %c0_31 = arith.constant 0 : index
    %c0_32 = arith.constant 0 : index
    %111 = vector.load %arg12[%c0_31, %c0_32] : memref<32x16xf32, #tpu.memory_space<vmem>>, vector<32x16xf32>
    %cst_33 = arith.constant dense<0.000000e+00> : vector<576x32xf32>
    %112 = tpu.matmul %109, %108, %cst_33 {dimension_numbers = #tpu.dot_dimension_numbers<[1], [0], [0], [1], [0, 0, 1, 1], [], []>} : vector<576x32xf32>, vector<32x32xf32>, vector<576x32xf32> -> vector<576x32xf32>
    %113 = vector.extract_strided_slice %112 {offsets = [0, 0], sizes = [64, 32], strides = [1, 1]} : vector<576x32xf32> to vector<64x32xf32>
    %114 = vector.extract_strided_slice %110 {offsets = [0, 0], sizes = [1, 32], strides = [1, 1]} : vector<9x32xf32> to vector<1x32xf32>
    %115 = vector.broadcast %114 : vector<1x32xf32> to vector<64x32xf32>
    %116 = arith.mulf %113, %115 : vector<64x32xf32>
    %117 = vector.extract_strided_slice %112 {offsets = [64, 0], sizes = [64, 32], strides = [1, 1]} : vector<576x32xf32> to vector<64x32xf32>
    %118 = vector.extract_strided_slice %110 {offsets = [1, 0], sizes = [1, 32], strides = [1, 1]} : vector<9x32xf32> to vector<1x32xf32>
    %119 = vector.broadcast %118 : vector<1x32xf32> to vector<64x32xf32>
    %120 = arith.mulf %117, %119 : vector<64x32xf32>
    %121 = arith.addf %116, %120 : vector<64x32xf32>
    %122 = vector.extract_strided_slice %112 {offsets = [128, 0], sizes = [64, 32], strides = [1, 1]} : vector<576x32xf32> to vector<64x32xf32>
    %123 = vector.extract_strided_slice %110 {offsets = [2, 0], sizes = [1, 32], strides = [1, 1]} : vector<9x32xf32> to vector<1x32xf32>
    %124 = vector.broadcast %123 : vector<1x32xf32> to vector<64x32xf32>
    %125 = arith.mulf %122, %124 : vector<64x32xf32>
    %126 = arith.addf %121, %125 : vector<64x32xf32>
    %127 = vector.extract_strided_slice %112 {offsets = [192, 0], sizes = [64, 32], strides = [1, 1]} : vector<576x32xf32> to vector<64x32xf32>
    %128 = vector.extract_strided_slice %110 {offsets = [3, 0], sizes = [1, 32], strides = [1, 1]} : vector<9x32xf32> to vector<1x32xf32>
    %129 = vector.broadcast %128 : vector<1x32xf32> to vector<64x32xf32>
    %130 = arith.mulf %127, %129 : vector<64x32xf32>
    %131 = arith.addf %126, %130 : vector<64x32xf32>
    %132 = vector.extract_strided_slice %112 {offsets = [256, 0], sizes = [64, 32], strides = [1, 1]} : vector<576x32xf32> to vector<64x32xf32>
    %133 = vector.extract_strided_slice %110 {offsets = [4, 0], sizes = [1, 32], strides = [1, 1]} : vector<9x32xf32> to vector<1x32xf32>
    %134 = vector.broadcast %133 : vector<1x32xf32> to vector<64x32xf32>
    %135 = arith.mulf %132, %134 : vector<64x32xf32>
    %136 = arith.addf %131, %135 : vector<64x32xf32>
    %137 = vector.extract_strided_slice %112 {offsets = [320, 0], sizes = [64, 32], strides = [1, 1]} : vector<576x32xf32> to vector<64x32xf32>
    %138 = vector.extract_strided_slice %110 {offsets = [5, 0], sizes = [1, 32], strides = [1, 1]} : vector<9x32xf32> to vector<1x32xf32>
    %139 = vector.broadcast %138 : vector<1x32xf32> to vector<64x32xf32>
    %140 = arith.mulf %137, %139 : vector<64x32xf32>
    %141 = arith.addf %136, %140 : vector<64x32xf32>
    %142 = vector.extract_strided_slice %112 {offsets = [384, 0], sizes = [64, 32], strides = [1, 1]} : vector<576x32xf32> to vector<64x32xf32>
    %143 = vector.extract_strided_slice %110 {offsets = [6, 0], sizes = [1, 32], strides = [1, 1]} : vector<9x32xf32> to vector<1x32xf32>
    %144 = vector.broadcast %143 : vector<1x32xf32> to vector<64x32xf32>
    %145 = arith.mulf %142, %144 : vector<64x32xf32>
    %146 = arith.addf %141, %145 : vector<64x32xf32>
    %147 = vector.extract_strided_slice %112 {offsets = [448, 0], sizes = [64, 32], strides = [1, 1]} : vector<576x32xf32> to vector<64x32xf32>
    %148 = vector.extract_strided_slice %110 {offsets = [7, 0], sizes = [1, 32], strides = [1, 1]} : vector<9x32xf32> to vector<1x32xf32>
    %149 = vector.broadcast %148 : vector<1x32xf32> to vector<64x32xf32>
    %150 = arith.mulf %147, %149 : vector<64x32xf32>
    %151 = arith.addf %146, %150 : vector<64x32xf32>
    %152 = vector.extract_strided_slice %112 {offsets = [512, 0], sizes = [64, 32], strides = [1, 1]} : vector<576x32xf32> to vector<64x32xf32>
    %153 = vector.extract_strided_slice %110 {offsets = [8, 0], sizes = [1, 32], strides = [1, 1]} : vector<9x32xf32> to vector<1x32xf32>
    %154 = vector.broadcast %153 : vector<1x32xf32> to vector<64x32xf32>
    %155 = arith.mulf %152, %154 : vector<64x32xf32>
    %156 = arith.addf %151, %155 : vector<64x32xf32>
    %cst_34 = arith.constant dense<0.000000e+00> : vector<64x16xf32>
    %157 = tpu.matmul %156, %111, %cst_34 {dimension_numbers = #tpu.dot_dimension_numbers<[1], [0], [0], [1], [0, 0, 1, 1], [], []>} : vector<64x32xf32>, vector<32x16xf32>, vector<64x16xf32> -> vector<64x16xf32>
    %cst_35 = arith.constant 0.000000e+00 : f32
    %158 = vector.broadcast %cst_35 : f32 to vector<64x16xf32>
    %159 = arith.maximumf %157, %158 : vector<64x16xf32>
    %c0_36 = arith.constant 0 : index
    %c0_37 = arith.constant 0 : index
    %160 = vector.load %arg13[%c0_36, %c0_37] : memref<1152x64xf32, #tpu.memory_space<vmem>>, vector<1152x64xf32>
    %c0_38 = arith.constant 0 : index
    %c0_39 = arith.constant 0 : index
    %161 = vector.load %arg14[%c0_38, %c0_39] : memref<9x16xf32, #tpu.memory_space<vmem>>, vector<9x16xf32>
    %c0_40 = arith.constant 0 : index
    %c0_41 = arith.constant 0 : index
    %162 = vector.load %arg15[%c0_40, %c0_41] : memref<16x16xf32, #tpu.memory_space<vmem>>, vector<16x16xf32>
    %cst_42 = arith.constant dense<0.000000e+00> : vector<1152x16xf32>
    %163 = tpu.matmul %160, %159, %cst_42 {dimension_numbers = #tpu.dot_dimension_numbers<[1], [0], [0], [1], [0, 0, 1, 1], [], []>} : vector<1152x64xf32>, vector<64x16xf32>, vector<1152x16xf32> -> vector<1152x16xf32>
    %164 = vector.extract_strided_slice %163 {offsets = [0, 0], sizes = [128, 16], strides = [1, 1]} : vector<1152x16xf32> to vector<128x16xf32>
    %165 = vector.extract_strided_slice %161 {offsets = [0, 0], sizes = [1, 16], strides = [1, 1]} : vector<9x16xf32> to vector<1x16xf32>
    %166 = vector.broadcast %165 : vector<1x16xf32> to vector<128x16xf32>
    %167 = arith.mulf %164, %166 : vector<128x16xf32>
    %168 = vector.extract_strided_slice %163 {offsets = [128, 0], sizes = [128, 16], strides = [1, 1]} : vector<1152x16xf32> to vector<128x16xf32>
    %169 = vector.extract_strided_slice %161 {offsets = [1, 0], sizes = [1, 16], strides = [1, 1]} : vector<9x16xf32> to vector<1x16xf32>
    %170 = vector.broadcast %169 : vector<1x16xf32> to vector<128x16xf32>
    %171 = arith.mulf %168, %170 : vector<128x16xf32>
    %172 = arith.addf %167, %171 : vector<128x16xf32>
    %173 = vector.extract_strided_slice %163 {offsets = [256, 0], sizes = [128, 16], strides = [1, 1]} : vector<1152x16xf32> to vector<128x16xf32>
    %174 = vector.extract_strided_slice %161 {offsets = [2, 0], sizes = [1, 16], strides = [1, 1]} : vector<9x16xf32> to vector<1x16xf32>
    %175 = vector.broadcast %174 : vector<1x16xf32> to vector<128x16xf32>
    %176 = arith.mulf %173, %175 : vector<128x16xf32>
    %177 = arith.addf %172, %176 : vector<128x16xf32>
    %178 = vector.extract_strided_slice %163 {offsets = [384, 0], sizes = [128, 16], strides = [1, 1]} : vector<1152x16xf32> to vector<128x16xf32>
    %179 = vector.extract_strided_slice %161 {offsets = [3, 0], sizes = [1, 16], strides = [1, 1]} : vector<9x16xf32> to vector<1x16xf32>
    %180 = vector.broadcast %179 : vector<1x16xf32> to vector<128x16xf32>
    %181 = arith.mulf %178, %180 : vector<128x16xf32>
    %182 = arith.addf %177, %181 : vector<128x16xf32>
    %183 = vector.extract_strided_slice %163 {offsets = [512, 0], sizes = [128, 16], strides = [1, 1]} : vector<1152x16xf32> to vector<128x16xf32>
    %184 = vector.extract_strided_slice %161 {offsets = [4, 0], sizes = [1, 16], strides = [1, 1]} : vector<9x16xf32> to vector<1x16xf32>
    %185 = vector.broadcast %184 : vector<1x16xf32> to vector<128x16xf32>
    %186 = arith.mulf %183, %185 : vector<128x16xf32>
    %187 = arith.addf %182, %186 : vector<128x16xf32>
    %188 = vector.extract_strided_slice %163 {offsets = [640, 0], sizes = [128, 16], strides = [1, 1]} : vector<1152x16xf32> to vector<128x16xf32>
    %189 = vector.extract_strided_slice %161 {offsets = [5, 0], sizes = [1, 16], strides = [1, 1]} : vector<9x16xf32> to vector<1x16xf32>
    %190 = vector.broadcast %189 : vector<1x16xf32> to vector<128x16xf32>
    %191 = arith.mulf %188, %190 : vector<128x16xf32>
    %192 = arith.addf %187, %191 : vector<128x16xf32>
    %193 = vector.extract_strided_slice %163 {offsets = [768, 0], sizes = [128, 16], strides = [1, 1]} : vector<1152x16xf32> to vector<128x16xf32>
    %194 = vector.extract_strided_slice %161 {offsets = [6, 0], sizes = [1, 16], strides = [1, 1]} : vector<9x16xf32> to vector<1x16xf32>
    %195 = vector.broadcast %194 : vector<1x16xf32> to vector<128x16xf32>
    %196 = arith.mulf %193, %195 : vector<128x16xf32>
    %197 = arith.addf %192, %196 : vector<128x16xf32>
    %198 = vector.extract_strided_slice %163 {offsets = [896, 0], sizes = [128, 16], strides = [1, 1]} : vector<1152x16xf32> to vector<128x16xf32>
    %199 = vector.extract_strided_slice %161 {offsets = [7, 0], sizes = [1, 16], strides = [1, 1]} : vector<9x16xf32> to vector<1x16xf32>
    %200 = vector.broadcast %199 : vector<1x16xf32> to vector<128x16xf32>
    %201 = arith.mulf %198, %200 : vector<128x16xf32>
    %202 = arith.addf %197, %201 : vector<128x16xf32>
    %203 = vector.extract_strided_slice %163 {offsets = [1024, 0], sizes = [128, 16], strides = [1, 1]} : vector<1152x16xf32> to vector<128x16xf32>
    %204 = vector.extract_strided_slice %161 {offsets = [8, 0], sizes = [1, 16], strides = [1, 1]} : vector<9x16xf32> to vector<1x16xf32>
    %205 = vector.broadcast %204 : vector<1x16xf32> to vector<128x16xf32>
    %206 = arith.mulf %203, %205 : vector<128x16xf32>
    %207 = arith.addf %202, %206 : vector<128x16xf32>
    %cst_43 = arith.constant dense<0.000000e+00> : vector<128x16xf32>
    %208 = tpu.matmul %207, %162, %cst_43 {dimension_numbers = #tpu.dot_dimension_numbers<[1], [0], [0], [1], [0, 0, 1, 1], [], []>} : vector<128x16xf32>, vector<16x16xf32>, vector<128x16xf32> -> vector<128x16xf32>
    %cst_44 = arith.constant 0.000000e+00 : f32
    %209 = vector.broadcast %cst_44 : f32 to vector<128x16xf32>
    %210 = arith.maximumf %208, %209 : vector<128x16xf32>
    %c0_45 = arith.constant 0 : index
    %c0_46 = arith.constant 0 : index
    %211 = vector.load %arg16[%c0_45, %c0_46] : memref<1152x128xf32, #tpu.memory_space<vmem>>, vector<1152x128xf32>
    %c0_47 = arith.constant 0 : index
    %c0_48 = arith.constant 0 : index
    %212 = vector.load %arg17[%c0_47, %c0_48] : memref<9x16xf32, #tpu.memory_space<vmem>>, vector<9x16xf32>
    %c0_49 = arith.constant 0 : index
    %c0_50 = arith.constant 0 : index
    %213 = vector.load %arg18[%c0_49, %c0_50] : memref<16x128xf32, #tpu.memory_space<vmem>>, vector<16x128xf32>
    %cst_51 = arith.constant dense<0.000000e+00> : vector<1152x16xf32>
    %214 = tpu.matmul %211, %210, %cst_51 {dimension_numbers = #tpu.dot_dimension_numbers<[1], [0], [0], [1], [0, 0, 1, 1], [], []>} : vector<1152x128xf32>, vector<128x16xf32>, vector<1152x16xf32> -> vector<1152x16xf32>
    %215 = vector.extract_strided_slice %214 {offsets = [0, 0], sizes = [128, 16], strides = [1, 1]} : vector<1152x16xf32> to vector<128x16xf32>
    %216 = vector.extract_strided_slice %212 {offsets = [0, 0], sizes = [1, 16], strides = [1, 1]} : vector<9x16xf32> to vector<1x16xf32>
    %217 = vector.broadcast %216 : vector<1x16xf32> to vector<128x16xf32>
    %218 = arith.mulf %215, %217 : vector<128x16xf32>
    %219 = vector.extract_strided_slice %214 {offsets = [128, 0], sizes = [128, 16], strides = [1, 1]} : vector<1152x16xf32> to vector<128x16xf32>
    %220 = vector.extract_strided_slice %212 {offsets = [1, 0], sizes = [1, 16], strides = [1, 1]} : vector<9x16xf32> to vector<1x16xf32>
    %221 = vector.broadcast %220 : vector<1x16xf32> to vector<128x16xf32>
    %222 = arith.mulf %219, %221 : vector<128x16xf32>
    %223 = arith.addf %218, %222 : vector<128x16xf32>
    %224 = vector.extract_strided_slice %214 {offsets = [256, 0], sizes = [128, 16], strides = [1, 1]} : vector<1152x16xf32> to vector<128x16xf32>
    %225 = vector.extract_strided_slice %212 {offsets = [2, 0], sizes = [1, 16], strides = [1, 1]} : vector<9x16xf32> to vector<1x16xf32>
    %226 = vector.broadcast %225 : vector<1x16xf32> to vector<128x16xf32>
    %227 = arith.mulf %224, %226 : vector<128x16xf32>
    %228 = arith.addf %223, %227 : vector<128x16xf32>
    %229 = vector.extract_strided_slice %214 {offsets = [384, 0], sizes = [128, 16], strides = [1, 1]} : vector<1152x16xf32> to vector<128x16xf32>
    %230 = vector.extract_strided_slice %212 {offsets = [3, 0], sizes = [1, 16], strides = [1, 1]} : vector<9x16xf32> to vector<1x16xf32>
    %231 = vector.broadcast %230 : vector<1x16xf32> to vector<128x16xf32>
    %232 = arith.mulf %229, %231 : vector<128x16xf32>
    %233 = arith.addf %228, %232 : vector<128x16xf32>
    %234 = vector.extract_strided_slice %214 {offsets = [512, 0], sizes = [128, 16], strides = [1, 1]} : vector<1152x16xf32> to vector<128x16xf32>
    %235 = vector.extract_strided_slice %212 {offsets = [4, 0], sizes = [1, 16], strides = [1, 1]} : vector<9x16xf32> to vector<1x16xf32>
    %236 = vector.broadcast %235 : vector<1x16xf32> to vector<128x16xf32>
    %237 = arith.mulf %234, %236 : vector<128x16xf32>
    %238 = arith.addf %233, %237 : vector<128x16xf32>
    %239 = vector.extract_strided_slice %214 {offsets = [640, 0], sizes = [128, 16], strides = [1, 1]} : vector<1152x16xf32> to vector<128x16xf32>
    %240 = vector.extract_strided_slice %212 {offsets = [5, 0], sizes = [1, 16], strides = [1, 1]} : vector<9x16xf32> to vector<1x16xf32>
    %241 = vector.broadcast %240 : vector<1x16xf32> to vector<128x16xf32>
    %242 = arith.mulf %239, %241 : vector<128x16xf32>
    %243 = arith.addf %238, %242 : vector<128x16xf32>
    %244 = vector.extract_strided_slice %214 {offsets = [768, 0], sizes = [128, 16], strides = [1, 1]} : vector<1152x16xf32> to vector<128x16xf32>
    %245 = vector.extract_strided_slice %212 {offsets = [6, 0], sizes = [1, 16], strides = [1, 1]} : vector<9x16xf32> to vector<1x16xf32>
    %246 = vector.broadcast %245 : vector<1x16xf32> to vector<128x16xf32>
    %247 = arith.mulf %244, %246 : vector<128x16xf32>
    %248 = arith.addf %243, %247 : vector<128x16xf32>
    %249 = vector.extract_strided_slice %214 {offsets = [896, 0], sizes = [128, 16], strides = [1, 1]} : vector<1152x16xf32> to vector<128x16xf32>
    %250 = vector.extract_strided_slice %212 {offsets = [7, 0], sizes = [1, 16], strides = [1, 1]} : vector<9x16xf32> to vector<1x16xf32>
    %251 = vector.broadcast %250 : vector<1x16xf32> to vector<128x16xf32>
    %252 = arith.mulf %249, %251 : vector<128x16xf32>
    %253 = arith.addf %248, %252 : vector<128x16xf32>
    %254 = vector.extract_strided_slice %214 {offsets = [1024, 0], sizes = [128, 16], strides = [1, 1]} : vector<1152x16xf32> to vector<128x16xf32>
    %255 = vector.extract_strided_slice %212 {offsets = [8, 0], sizes = [1, 16], strides = [1, 1]} : vector<9x16xf32> to vector<1x16xf32>
    %256 = vector.broadcast %255 : vector<1x16xf32> to vector<128x16xf32>
    %257 = arith.mulf %254, %256 : vector<128x16xf32>
    %258 = arith.addf %253, %257 : vector<128x16xf32>
    %cst_52 = arith.constant dense<0.000000e+00> : vector<128x128xf32>
    %259 = tpu.matmul %258, %213, %cst_52 {dimension_numbers = #tpu.dot_dimension_numbers<[1], [0], [0], [1], [0, 0, 1, 1], [], []>} : vector<128x16xf32>, vector<16x128xf32>, vector<128x128xf32> -> vector<128x128xf32>
    %c0_53 = arith.constant 0 : index
    %c0_54 = arith.constant 0 : index
    %260 = vector.load %arg19[%c0_53, %c0_54] : memref<128x128xf32, #tpu.memory_space<vmem>>, vector<128x128xf32>
    tpu.vector_store %arg19[%c0_53, %c0_54], %259 {strides = array<i32>} : memref<128x128xf32, #tpu.memory_space<vmem>>, vector<128x128xf32>,
    return
  }
}

</mosaic_0001>

<llo_original>
// kernel: decoder3d_forward.1
$region0: #{decoder3d_forward.1}
  #allocation0 [shape = 'u32[]', space=smem, size = 0x4, offset = 0x4, fixed_abs, tag = 'smem constant byte address 0x4 - core index']
  #allocation1 [shape = 'u32[144,128]{1,0:T(1,128)}', space=vmem, size = 0x12000, scoped, tag = 'internal scratch']
  %s0 = inlined_call_operand.vmem [shape: f32[16,128], index: 0, kind: input, shape index: {}]
  %s1 = inlined_call_operand.hbm [shape: f32[128,32], index: 1, kind: input, shape index: {}]
  %s2 = inlined_call_operand.hbm [shape: f32[32,32], index: 2, kind: input, shape index: {}]
  %s3 = inlined_call_operand.hbm [shape: f32[8,16], index: 3, kind: input, shape index: {}]
  %s4 = inlined_call_operand.vmem [shape: f32[144,8], index: 4, kind: input, shape index: {}]
  %s5 = inlined_call_operand.hbm [shape: f32[9,32], index: 5, kind: input, shape index: {}]
  %s6 = inlined_call_operand.vmem [shape: f32[32,32], index: 6, kind: input, shape index: {}]
  %s7 = inlined_call_operand.hbm [shape: f32[288,16], index: 7, kind: input, shape index: {}]
  %s8 = inlined_call_operand.hbm [shape: f32[9,32], index: 8, kind: input, shape index: {}]
  %s9 = inlined_call_operand.vmem [shape: f32[32,32], index: 9, kind: input, shape index: {}]
  %s10 = inlined_call_operand.hbm [shape: f32[576,32], index: 10, kind: input, shape index: {}]
  %s11 = inlined_call_operand.hbm [shape: f32[9,32], index: 11, kind: input, shape index: {}]
  %s12 = inlined_call_operand.vmem [shape: f32[32,16], index: 12, kind: input, shape index: {}]
  %s13 = inlined_call_operand.hbm [shape: f32[1152,64], index: 13, kind: input, shape index: {}]
  %s14 = inlined_call_operand.hbm [shape: f32[9,16], index: 14, kind: input, shape index: {}]
  %s15 = inlined_call_operand.hbm [shape: f32[16,16], index: 15, kind: input, shape index: {}]
  %s16 = inlined_call_operand.hbm [shape: f32[1152,128], index: 16, kind: input, shape index: {}]
  %s17 = inlined_call_operand.vmem [shape: f32[9,16], index: 17, kind: input, shape index: {}]
  %s18 = inlined_call_operand.vmem [shape: f32[16,128], index: 18, kind: input, shape index: {}]
  %s19 = inlined_call_operand.vmem [shape: f32[128,128], index: 19, kind: output, shape index: {}]
  %s20 = sld [smem:[#allocation0]]
  $region134: #{decoder3d_forward.1} parent=0
    _
  %s22 = ssub.s32 1, %s20
  %s23 = scalar_select 0, %s22, %s20
  $region1: #{decoder3d_forward.1} parent=0
    #allocation2 [shape = 'u8[65536]{0}', space=vmem, size = 0x10000, scoped, tag = 'input window, operand 1, single buffered']
    #allocation3 [shape = 's32[1]{0}', space=sflag, size = 0x4, scoped, tag = 'scoped memory for decoder3d_forward.1']
    #allocation4 [shape = 'u8[16384]{0}', space=vmem, size = 0x4000, scoped, tag = 'input window, operand 2, single buffered']
    #allocation5 [shape = 's32[1]{0}', space=sflag, size = 0x4, scoped, tag = 'scoped memory for decoder3d_forward.1']
    #allocation6 [shape = 'u8[4096]{0}', space=vmem, size = 0x1000, scoped, tag = 'input window, operand 3, single buffered']
    #allocation7 [shape = 'u8[8192]{0}', space=vmem, size = 0x2000, scoped, tag = 'input window, operand 5, single buffered']
    #allocation8 [shape = 's32[1]{0}', space=sflag, size = 0x4, scoped, tag = 'scoped memory for decoder3d_forward.1']
    #allocation9 [shape = 'u8[147456]{0}', space=vmem, size = 0x24000, scoped, tag = 'input window, operand 7, single buffered']
    #allocation10 [shape = 'u8[8192]{0}', space=vmem, size = 0x2000, scoped, tag = 'input window, operand 8, single buffered']
    #allocation11 [shape = 's32[1]{0}', space=sflag, size = 0x4, scoped, tag = 'scoped memory for decoder3d_forward.1']
    #allocation12 [shape = 'u8[294912]{0}', space=vmem, size = 0x48000, scoped, tag = 'input window, operand 10, single buffered']
    #allocation13 [shape = 'u8[8192]{0}', space=vmem, size = 0x2000, scoped, tag = 'input window, operand 11, single buffered']
    #allocation14 [shape = 's32[1]{0}', space=sflag, size = 0x4, scoped, tag = 'scoped memory for decoder3d_forward.1']
    #allocation15 [shape = 'u8[589824]{0}', space=vmem, size = 0x90000, scoped, tag = 'input window, operand 13, single buffered']
    #allocation16 [shape = 'u8[8192]{0}', space=vmem, size = 0x2000, scoped, tag = 'input window, operand 14, single buffered']
    #allocation17 [shape = 's32[1]{0}', space=sflag, size = 0x4, scoped, tag = 'scoped memory for decoder3d_forward.1']
    #allocation18 [shape = 'u8[8192]{0}', space=vmem, size = 0x2000, scoped, tag = 'input window, operand 15, single buffered']
    #allocation19 [shape = 'u8[589824]{0}', space=vmem, size = 0x90000, scoped, tag = 'input window, operand 16, single buffered']
    #allocation20 [shape = 's32[1]{0}', space=sflag, size = 0x4, scoped, tag = 'scoped memory for decoder3d_forward.1']
    %24 = vsyncpa [#allocation3], 0
    %25 = vsyncpa [#allocation5], 0
    %26 = vsyncpa [#allocation8], 0
    %27 = vsyncpa [#allocation11], 0
    %28 = vsyncpa [#allocation14], 0
    %29 = vsyncpa [#allocation17], 0
    %30 = vsyncpa [#allocation20], 0
    // Predicated region
    $region2: #{decoder3d_forward.1} parent=1 // pred_check
      _
    $region3: #{decoder3d_forward.1} parent=1 // pred_check_branch
      %32 = sbr.rel (0) target = $region5
    $region4: #{decoder3d_forward.1} parent=1 // pred_region
      _
    $region5: #{decoder3d_forward.1} parent=1 // pred_fallthru
      _
    // Predicated region
    $region6: #{decoder3d_forward.1} parent=1 // pred_check
      _
    $region7: #{decoder3d_forward.1} parent=1 // pred_check_branch
      %34 = sbr.rel (0) target = $region9
    $region8: #{decoder3d_forward.1} parent=1 // pred_region
      %s36 = ssub.s32 2048, 2048
      %37 = vsyncadd [#allocation3], %s36
      %s38 = sshll.u32 [#allocation2], 4
      %s39 = int_to_ptr.vmem [resolvable:$true] %s38
      %44 = dma.hbm_to_vmem [thread:$0]  %s1, 2048, %s39, [#allocation3], 128, 128, 8
    $region9: #{decoder3d_forward.1} parent=1 // pred_fallthru
      _
    // Predicated region
    $region10: #{decoder3d_forward.1} parent=1 // pred_check
      _
    $region11: #{decoder3d_forward.1} parent=1 // pred_check_branch
      %46 = sbr.rel (0) target = $region13
    $region12: #{decoder3d_forward.1} parent=1 // pred_region
      %s48 = ssub.s32 512, 512
      %49 = vsyncadd [#allocation5], %s48
      %s50 = sshll.u32 [#allocation4], 4
      %s51 = int_to_ptr.vmem [resolvable:$true] %s50
      %56 = dma.hbm_to_vmem [thread:$0]  %s2, 512, %s51, [#allocation5], 128, 128, 8
    $region13: #{decoder3d_forward.1} parent=1 // pred_fallthru
      _
    // Predicated region
    $region14: #{decoder3d_forward.1} parent=1 // pred_check
      _
    $region15: #{decoder3d_forward.1} parent=1 // pred_check_branch
      %58 = sbr.rel (0) target = $region17
    $region16: #{decoder3d_forward.1} parent=1 // pred_region
      %s60 = ssub.s32 128, 128
      %61 = vsyncadd [#allocation5], %s60
      %s63 = sshll.u32 [#allocation6], 4
      %s64 = int_to_ptr.vmem [resolvable:$true] %s63
      %66 = dma.hbm_to_vmem [thread:$0]  %s3, 128, %s64, [#allocation5]
    $region17: #{decoder3d_forward.1} parent=1 // pred_fallthru
      _
    // Predicated region
    $region18: #{decoder3d_forward.1} parent=1 // pred_check
      _
    $region19: #{decoder3d_forward.1} parent=1 // pred_check_branch
      %68 = sbr.rel (0) target = $region21
    $region20: #{decoder3d_forward.1} parent=1 // pred_region
      _
    $region21: #{decoder3d_forward.1} parent=1 // pred_fallthru
      _
    // Predicated region
    $region22: #{decoder3d_forward.1} parent=1 // pred_check
      _
    $region23: #{decoder3d_forward.1} parent=1 // pred_check_branch
      %70 = sbr.rel (0) target = $region25
    $region24: #{decoder3d_forward.1} parent=1 // pred_region
      %s72 = ssub.s32 256, 256
      %73 = vsyncadd [#allocation8], %s72
      %s74 = sshll.u32 [#allocation7], 4
      %s75 = int_to_ptr.vmem [resolvable:$true] %s74
      %80 = dma.hbm_to_vmem [thread:$0]  %s5, 256, %s75, [#allocation8], 128, 128, 8
    $region25: #{decoder3d_forward.1} parent=1 // pred_fallthru
      _
    // Predicated region
    $region26: #{decoder3d_forward.1} parent=1 // pred_check
      _
    $region27: #{decoder3d_forward.1} parent=1 // pred_check_branch
      %82 = sbr.rel (0) target = $region29
    $region28: #{decoder3d_forward.1} parent=1 // pred_region
      _
    $region29: #{decoder3d_forward.1} parent=1 // pred_fallthru
      _
    // Predicated region
    $region30: #{decoder3d_forward.1} parent=1 // pred_check
      _
    $region31: #{decoder3d_forward.1} parent=1 // pred_check_branch
      %84 = sbr.rel (0) target = $region33
    $region32: #{decoder3d_forward.1} parent=1 // pred_region
      %s86 = ssub.s32 4608, 4608
      %87 = vsyncadd [#allocation8], %s86
      %s88 = sshll.u32 [#allocation9], 4
      %s89 = int_to_ptr.vmem [resolvable:$true] %s88
      %94 = dma.hbm_to_vmem [thread:$0]  %s7, 4608, %s89, [#allocation8], 128, 128, 8
    $region33: #{decoder3d_forward.1} parent=1 // pred_fallthru
      _
    // Predicated region
    $region34: #{decoder3d_forward.1} parent=1 // pred_check
      _
    $region35: #{decoder3d_forward.1} parent=1 // pred_check_branch
      %96 = sbr.rel (0) target = $region37
    $region36: #{decoder3d_forward.1} parent=1 // pred_region
      %s98 = ssub.s32 256, 256
      %99 = vsyncadd [#allocation11], %s98
      %s100 = sshll.u32 [#allocation10], 4
      %s101 = int_to_ptr.vmem [resolvable:$true] %s100
      %106 = dma.hbm_to_vmem [thread:$0]  %s8, 256, %s101, [#allocation11], 128, 128, 8
    $region37: #{decoder3d_forward.1} parent=1 // pred_fallthru
      _
    // Predicated region
    $region38: #{decoder3d_forward.1} parent=1 // pred_check
      _
    $region39: #{decoder3d_forward.1} parent=1 // pred_check_branch
      %108 = sbr.rel (0) target = $region41
    $region40: #{decoder3d_forward.1} parent=1 // pred_region
      _
    $region41: #{decoder3d_forward.1} parent=1 // pred_fallthru
      _
    // Predicated region
    $region42: #{decoder3d_forward.1} parent=1 // pred_check
      _
    $region43: #{decoder3d_forward.1} parent=1 // pred_check_branch
      %110 = sbr.rel (0) target = $region45
    $region44: #{decoder3d_forward.1} parent=1 // pred_region
      %s112 = ssub.s32 9216, 9216
      %113 = vsyncadd [#allocation11], %s112
      %s114 = sshll.u32 [#allocation12], 4
      %s115 = int_to_ptr.vmem [resolvable:$true] %s114
      %120 = dma.hbm_to_vmem [thread:$0]  %s10, 9216, %s115, [#allocation11], 128, 128, 8
    $region45: #{decoder3d_forward.1} parent=1 // pred_fallthru
      _
    // Predicated region
    $region46: #{decoder3d_forward.1} parent=1 // pred_check
      _
    $region47: #{decoder3d_forward.1} parent=1 // pred_check_branch
      %122 = sbr.rel (0) target = $region49
    $region48: #{decoder3d_forward.1} parent=1 // pred_region
      %s124 = ssub.s32 256, 256
      %125 = vsyncadd [#allocation14], %s124
      %s126 = sshll.u32 [#allocation13], 4
      %s127 = int_to_ptr.vmem [resolvable:$true] %s126
      %132 = dma.hbm_to_vmem [thread:$0]  %s11, 256, %s127, [#allocation14], 128, 128, 8
    $region49: #{decoder3d_forward.1} parent=1 // pred_fallthru
      _
    // Predicated region
    $region50: #{decoder3d_forward.1} parent=1 // pred_check
      _
    $region51: #{decoder3d_forward.1} parent=1 // pred_check_branch
      %134 = sbr.rel (0) target = $region53
    $region52: #{decoder3d_forward.1} parent=1 // pred_region
      _
    $region53: #{decoder3d_forward.1} parent=1 // pred_fallthru
      _
    // Predicated region
    $region54: #{decoder3d_forward.1} parent=1 // pred_check
      _
    $region55: #{decoder3d_forward.1} parent=1 // pred_check_branch
      %136 = sbr.rel (0) target = $region57
    $region56: #{decoder3d_forward.1} parent=1 // pred_region
      %s138 = ssub.s32 18432, 18432
      %139 = vsyncadd [#allocation14], %s138
      %s140 = sshll.u32 [#allocation15], 4
      %s141 = int_to_ptr.vmem [resolvable:$true] %s140
      %146 = dma.hbm_to_vmem [thread:$0]  %s13, 18432, %s141, [#allocation14], 128, 128, 8
    $region57: #{decoder3d_forward.1} parent=1 // pred_fallthru
      _
    // Predicated region
    $region58: #{decoder3d_forward.1} parent=1 // pred_check
      _
    $region59: #{decoder3d_forward.1} parent=1 // pred_check_branch
      %148 = sbr.rel (0) target = $region61
    $region60: #{decoder3d_forward.1} parent=1 // pred_region
      %s150 = ssub.s32 256, 256
      %151 = vsyncadd [#allocation17], %s150
      %s152 = sshll.u32 [#allocation16], 4
      %s153 = int_to_ptr.vmem [resolvable:$true] %s152
      %158 = dma.hbm_to_vmem [thread:$0]  %s14, 256, %s153, [#allocation17], 128, 128, 8
    $region61: #{decoder3d_forward.1} parent=1 // pred_fallthru
      _
    // Predicated region
    $region62: #{decoder3d_forward.1} parent=1 // pred_check
      _
    $region63: #{decoder3d_forward.1} parent=1 // pred_check_branch
      %160 = sbr.rel (0) target = $region65
    $region64: #{decoder3d_forward.1} parent=1 // pred_region
      %s162 = ssub.s32 256, 256
      %163 = vsyncadd [#allocation17], %s162
      %s164 = sshll.u32 [#allocation18], 4
      %s165 = int_to_ptr.vmem [resolvable:$true] %s164
      %170 = dma.hbm_to_vmem [thread:$0]  %s15, 256, %s165, [#allocation17], 128, 128, 8
    $region65: #{decoder3d_forward.1} parent=1 // pred_fallthru
      _
    // Predicated region
    $region66: #{decoder3d_forward.1} parent=1 // pred_check
      _
    $region67: #{decoder3d_forward.1} parent=1 // pred_check_branch
      %172 = sbr.rel (0) target = $region69
    $region68: #{decoder3d_forward.1} parent=1 // pred_region
      %s174 = ssub.s32 18432, 18432
      %175 = vsyncadd [#allocation20], %s174
      %s176 = sshll.u32 [#allocation19], 4
      %s177 = int_to_ptr.vmem [resolvable:$true] %s176
      %182 = dma.hbm_to_vmem [thread:$0]  %s16, 18432, %s177, [#allocation20], 128, 128, 8
    $region69: #{decoder3d_forward.1} parent=1 // pred_fallthru
      _
    // Predicated region
    $region70: #{decoder3d_forward.1} parent=1 // pred_check
      _
    $region71: #{decoder3d_forward.1} parent=1 // pred_check_branch
      %184 = sbr.rel (0) target = $region73
    $region72: #{decoder3d_forward.1} parent=1 // pred_region
      _
    $region73: #{decoder3d_forward.1} parent=1 // pred_fallthru
      _
    // Predicated region
    $region74: #{decoder3d_forward.1} parent=1 // pred_check
      _
    $region75: #{decoder3d_forward.1} parent=1 // pred_check_branch
      %186 = sbr.rel (0) target = $region77
    $region76: #{decoder3d_forward.1} parent=1 // pred_region
      _
    $region77: #{decoder3d_forward.1} parent=1 // pred_fallthru
      _
    // Predicated region
    $region78: #{decoder3d_forward.1} parent=1 // pred_check
      _
    $region79: #{decoder3d_forward.1} parent=1 // pred_check_branch
      %188 = sbr.rel (0) target = $region81
    $region80: #{decoder3d_forward.1} parent=1 // pred_region
      %189 = dma.done [#allocation3], 2048
    $region81: #{decoder3d_forward.1} parent=1 // pred_fallthru
      _
    // Predicated region
    $region82: #{decoder3d_forward.1} parent=1 // pred_check
      _
    $region83: #{decoder3d_forward.1} parent=1 // pred_check_branch
      %191 = sbr.rel (0) target = $region85
    $region84: #{decoder3d_forward.1} parent=1 // pred_region
      %192 = dma.done [#allocation5], 512
    $region85: #{decoder3d_forward.1} parent=1 // pred_fallthru
      _
    // Predicated region
    $region86: #{decoder3d_forward.1} parent=1 // pred_check
      _
    $region87: #{decoder3d_forward.1} parent=1 // pred_check_branch
      %194 = sbr.rel (0) target = $region89
    $region88: #{decoder3d_forward.1} parent=1 // pred_region
      %195 = dma.done [#allocation5], 128
    $region89: #{decoder3d_forward.1} parent=1 // pred_fallthru
      _
    // Predicated region
    $region90: #{decoder3d_forward.1} parent=1 // pred_check
      _
    $region91: #{decoder3d_forward.1} parent=1 // pred_check_branch
      %197 = sbr.rel (0) target = $region93
    $region92: #{decoder3d_forward.1} parent=1 // pred_region
      %198 = dma.done [#allocation8], 256
    $region93: #{decoder3d_forward.1} parent=1 // pred_fallthru
      _
    // Predicated region
    $region94: #{decoder3d_forward.1} parent=1 // pred_check
      _
    $region95: #{decoder3d_forward.1} parent=1 // pred_check_branch
      %200 = sbr.rel (0) target = $region97
    $region96: #{decoder3d_forward.1} parent=1 // pred_region
      %201 = dma.done [#allocation8], 4608
    $region97: #{decoder3d_forward.1} parent=1 // pred_fallthru
      _
    // Predicated region
    $region98: #{decoder3d_forward.1} parent=1 // pred_check
      _
    $region99: #{decoder3d_forward.1} parent=1 // pred_check_branch
      %203 = sbr.rel (0) target = $region101
    $region100: #{decoder3d_forward.1} parent=1 // pred_region
      %204 = dma.done [#allocation11], 256
    $region101: #{decoder3d_forward.1} parent=1 // pred_fallthru
      _
    // Predicated region
    $region102: #{decoder3d_forward.1} parent=1 // pred_check
      _
    $region103: #{decoder3d_forward.1} parent=1 // pred_check_branch
      %206 = sbr.rel (0) target = $region105
    $region104: #{decoder3d_forward.1} parent=1 // pred_region
      %207 = dma.done [#allocation11], 9216
    $region105: #{decoder3d_forward.1} parent=1 // pred_fallthru
      _
    // Predicated region
    $region106: #{decoder3d_forward.1} parent=1 // pred_check
      _
    $region107: #{decoder3d_forward.1} parent=1 // pred_check_branch
      %209 = sbr.rel (0) target = $region109
    $region108: #{decoder3d_forward.1} parent=1 // pred_region
      %210 = dma.done [#allocation14], 256
    $region109: #{decoder3d_forward.1} parent=1 // pred_fallthru
      _
    // Predicated region
    $region110: #{decoder3d_forward.1} parent=1 // pred_check
      _
    $region111: #{decoder3d_forward.1} parent=1 // pred_check_branch
      %212 = sbr.rel (0) target = $region113
    $region112: #{decoder3d_forward.1} parent=1 // pred_region
      %213 = dma.done [#allocation14], 18432
    $region113: #{decoder3d_forward.1} parent=1 // pred_fallthru
      _
    // Predicated region
    $region114: #{decoder3d_forward.1} parent=1 // pred_check
      _
    $region115: #{decoder3d_forward.1} parent=1 // pred_check_branch
      %215 = sbr.rel (0) target = $region117
    $region116: #{decoder3d_forward.1} parent=1 // pred_region
      %216 = dma.done [#allocation17], 256
    $region117: #{decoder3d_forward.1} parent=1 // pred_fallthru
      _
    // Predicated region
    $region118: #{decoder3d_forward.1} parent=1 // pred_check
      _
    $region119: #{decoder3d_forward.1} parent=1 // pred_check_branch
      %218 = sbr.rel (0) target = $region121
    $region120: #{decoder3d_forward.1} parent=1 // pred_region
      %219 = dma.done [#allocation17], 256
    $region121: #{decoder3d_forward.1} parent=1 // pred_fallthru
      _
    // Predicated region
    $region122: #{decoder3d_forward.1} parent=1 // pred_check
      _
    $region123: #{decoder3d_forward.1} parent=1 // pred_check_branch
      %221 = sbr.rel (0) target = $region125
    $region124: #{decoder3d_forward.1} parent=1 // pred_region
      %222 = dma.done [#allocation20], 18432
    $region125: #{decoder3d_forward.1} parent=1 // pred_fallthru
      _
    %v223 = vld [vmem:[#allocation6] sm:$0xff]
    %v224 = vld [vmem:[%s0] sm:$0xff]
    %v225 = vld [vmem:[%s0 + $0x8] sm:$0xff]
    %vm226 = vcmask 130048
    %v228 = vsel %vm226, %v223, 0
    %230 = vmatprep.subr.mxu0 0.0
    %231 = vmatpush1.msra.mxu0 %v224
    %232 = vmatprep.subr.mxu0 0.0
    %233 = vmatpush1.msra.mxu0 %v225
    %234 = vmatprep.subr.mxu0 0.0
    %235 = vmatpush1.msra.mxu0 0.0
    %236 = vmatprep.subr.mxu0 0.0
    %237 = vmatpush1.msra.mxu0 0.0
    %238 = vmatprep.subr.mxu0 0.0
    %239 = vmatpush1.msra.mxu0 0.0
    %240 = vmatprep.subr.mxu0 0.0
    %241 = vmatpush1.msra.mxu0 0.0
    %242 = vmatprep.subr.mxu0 0.0
    %243 = vmatpush1.msra.mxu0 0.0
    %244 = vmatprep.subr.mxu0 0.0
    %245 = vmatpush1.msra.mxu0 0.0
    %246 = vmatprep.subr.mxu0 0.0
    %247 = vmatpush1.msra.mxu0 0.0
    %248 = vmatprep.subr.mxu0 0.0
    %249 = vmatpush1.msra.mxu0 0.0
    %250 = vmatprep.subr.mxu0 0.0
    %251 = vmatpush1.msra.mxu0 0.0
    %252 = vmatprep.subr.mxu0 0.0
    %253 = vmatpush1.msra.mxu0 0.0
    %254 = vmatprep.subr.mxu0 0.0
    %255 = vmatpush1.msra.mxu0 0.0
    %256 = vmatprep.subr.mxu0 0.0
    %257 = vmatpush1.msra.mxu0 0.0
    %258 = vmatprep.subr.mxu0 0.0
    %259 = vmatpush1.msra.mxu0 0.0
    %260 = vmatprep.subr.mxu0 0.0
    %261 = vmatpush1.msra.mxu0 0.0
    %262 = vmatprep.subr.mxu0 0.0
    %263 = vmatpush1.msra.mxu0 0.0
    %264 = vmatprep.subr.mxu0 0.0
    %265 = vmatpush1.msra.mxu0 0.0
    %266 = vmatprep.subr.mxu0 0.0
    %267 = vmatpush1.msra.mxu0 0.0
    %268 = vmatprep.subr.mxu0 0.0
    %269 = vmatpush1.msra.mxu0 0.0
    %270 = vmatprep.subr.mxu0 0.0
    %271 = vmatpush1.msra.mxu0 0.0
    %272 = vmatprep.subr.mxu0 0.0
    %273 = vmatpush1.msra.mxu0 0.0
    %274 = vmatprep.subr.mxu0 0.0
    %275 = vmatpush1.msra.mxu0 0.0
    %276 = vmatprep.subr.mxu0 0.0
    %277 = vmatpush1.msra.mxu0 0.0
    %278 = vmatprep.subr.mxu0 0.0
    %279 = vmatpush1.msra.mxu0 0.0
    %280 = vmatprep.subr.mxu0 0.0
    %281 = vmatpush1.msra.mxu0 0.0
    %282 = vmatprep.subr.mxu0 0.0
    %283 = vmatpush1.msra.mxu0 0.0
    %284 = vmatprep.subr.mxu0 0.0
    %285 = vmatpush1.msra.mxu0 0.0
    %286 = vmatprep.subr.mxu0 0.0
    %287 = vmatpush1.msra.mxu0 0.0
    %288 = vmatprep.subr.mxu0 0.0
    %289 = vmatpush1.msra.mxu0 0.0
    %290 = vmatprep.subr.mxu0 0.0
    %291 = vmatpush1.msra.mxu0 0.0
    %292 = vmatprep.subr.mxu0 0.0
    %293 = vmatpush1.msra.mxu0 0.0
    %294 = vmatprep.mubr.f32.mxu0 0.0
    %295 = vmatmul.mubr.f32.gmra.mrb[0].mxu0 %v228
    %v296 = vpop.f32.mrb[0].mxu0
    %v297 = vadd.f32 0.0, %v296
    %v298 = vpop.f32.mrb[0].mxu0
    %299 = vdwg.mxu0
    %v300 = vld [vmem:[#allocation2] sm:$0xff]
    %v301 = vld [vmem:[#allocation2 + $0x8] sm:$0xff]
    %v302 = vld [vmem:[#allocation2 + $0x10] sm:$0xff]
    %v303 = vld [vmem:[#allocation2 + $0x18] sm:$0xff]
    %v304 = vld [vmem:[#allocation2 + $0x20] sm:$0xff]
    %v305 = vld [vmem:[#allocation2 + $0x28] sm:$0xff]
    %v306 = vld [vmem:[#allocation2 + $0x30] sm:$0xff]
    %v307 = vld [vmem:[#allocation2 + $0x38] sm:$0xff]
    %v308 = vld [vmem:[#allocation2 + $0x40] sm:$0xff]
    %v309 = vld [vmem:[#allocation2 + $0x48] sm:$0xff]
    %v310 = vld [vmem:[#allocation2 + $0x50] sm:$0xff]
    %v311 = vld [vmem:[#allocation2 + $0x58] sm:$0xff]
    %v312 = vld [vmem:[#allocation2 + $0x60] sm:$0xff]
    %v313 = vld [vmem:[#allocation2 + $0x68] sm:$0xff]
    %v314 = vld [vmem:[#allocation2 + $0x70] sm:$0xff]
    %v315 = vld [vmem:[#allocation2 + $0x78] sm:$0xff]
    %316 = vmatprep.subr.mxu0 0.0
    %317 = vmatpush1.msra.mxu0 %v300
    %318 = vmatprep.subr.mxu0 0.0
    %319 = vmatpush1.msra.mxu0 %v301
    %320 = vmatprep.subr.mxu0 0.0
    %321 = vmatpush1.msra.mxu0 %v302
    %322 = vmatprep.subr.mxu0 0.0
    %323 = vmatpush1.msra.mxu0 %v303
    %324 = vmatprep.subr.mxu0 0.0
    %325 = vmatpush1.msra.mxu0 %v304
    %326 = vmatprep.subr.mxu0 0.0
    %327 = vmatpush1.msra.mxu0 %v305
    %328 = vmatprep.subr.mxu0 0.0
    %329 = vmatpush1.msra.mxu0 %v306
    %330 = vmatprep.subr.mxu0 0.0
    %331 = vmatpush1.msra.mxu0 %v307
    %332 = vmatprep.subr.mxu0 0.0
    %333 = vmatpush1.msra.mxu0 %v308
    %334 = vmatprep.subr.mxu0 0.0
    %335 = vmatpush1.msra.mxu0 %v309
    %336 = vmatprep.subr.mxu0 0.0
    %337 = vmatpush1.msra.mxu0 %v310
    %338 = vmatprep.subr.mxu0 0.0
    %339 = vmatpush1.msra.mxu0 %v311
    %340 = vmatprep.subr.mxu0 0.0
    %341 = vmatpush1.msra.mxu0 %v312
    %342 = vmatprep.subr.mxu0 0.0
    %343 = vmatpush1.msra.mxu0 %v313
    %344 = vmatprep.subr.mxu0 0.0
    %345 = vmatpush1.msra.mxu0 %v314
    %346 = vmatprep.subr.mxu0 0.0
    %347 = vmatpush1.msra.mxu0 %v315
    %348 = vmatprep.subr.mxu0 0.0
    %349 = vmatpush1.msra.mxu0 0.0
    %350 = vmatprep.subr.mxu0 0.0
    %351 = vmatpush1.msra.mxu0 0.0
    %352 = vmatprep.subr.mxu0 0.0
    %353 = vmatpush1.msra.mxu0 0.0
    %354 = vmatprep.subr.mxu0 0.0
    %355 = vmatpush1.msra.mxu0 0.0
    %356 = vmatprep.subr.mxu0 0.0
    %357 = vmatpush1.msra.mxu0 0.0
    %358 = vmatprep.subr.mxu0 0.0
    %359 = vmatpush1.msra.mxu0 0.0
    %360 = vmatprep.subr.mxu0 0.0
    %361 = vmatpush1.msra.mxu0 0.0
    %362 = vmatprep.subr.mxu0 0.0
    %363 = vmatpush1.msra.mxu0 0.0
    %364 = vmatprep.subr.mxu0 0.0
    %365 = vmatpush1.msra.mxu0 0.0
    %366 = vmatprep.subr.mxu0 0.0
    %367 = vmatpush1.msra.mxu0 0.0
    %368 = vmatprep.subr.mxu0 0.0
    %369 = vmatpush1.msra.mxu0 0.0
    %370 = vmatprep.subr.mxu0 0.0
    %371 = vmatpush1.msra.mxu0 0.0
    %372 = vmatprep.subr.mxu0 0.0
    %373 = vmatpush1.msra.mxu0 0.0
    %374 = vmatprep.subr.mxu0 0.0
    %375 = vmatpush1.msra.mxu0 0.0
    %376 = vmatprep.subr.mxu0 0.0
    %377 = vmatpush1.msra.mxu0 0.0
    %378 = vmatprep.subr.mxu0 0.0
    %379 = vmatpush1.msra.mxu0 0.0
    %380 = vmatprep.mubr.f32.mxu0 0.0
    %381 = vmatmul.mubr.f32.gmra.mrb[0].mxu0 %v297
    %v382 = vpop.f32.mrb[0].mxu0
    %v383 = vadd.f32 0.0, %v382
    %v384 = vpop.f32.mrb[0].mxu0
    %385 = vdwg.mxu0
    %v386 = vld [vmem:[#allocation4] sm:$0xff]
    %v387 = vld [vmem:[#allocation4 + $0x8] sm:$0xff]
    %v388 = vld [vmem:[#allocation4 + $0x10] sm:$0xff]
    %v389 = vld [vmem:[#allocation4 + $0x18] sm:$0xff]
    %vm390 = vcmask 261120
    %v392 = vsel %vm390, %v383, 0
    %394 = vmatprep.subr.mxu0 0.0
    %395 = vmatpush1.msra.mxu0 %v386
    %396 = vmatprep.subr.mxu0 0.0
    %397 = vmatpush1.msra.mxu0 %v387
    %398 = vmatprep.subr.mxu0 0.0
    %399 = vmatpush1.msra.mxu0 %v388
    %400 = vmatprep.subr.mxu0 0.0
    %401 = vmatpush1.msra.mxu0 %v389
    %402 = vmatprep.subr.mxu0 0.0
    %403 = vmatpush1.msra.mxu0 0.0
    %404 = vmatprep.subr.mxu0 0.0
    %405 = vmatpush1.msra.mxu0 0.0
    %406 = vmatprep.subr.mxu0 0.0
    %407 = vmatpush1.msra.mxu0 0.0
    %408 = vmatprep.subr.mxu0 0.0
    %409 = vmatpush1.msra.mxu0 0.0
    %410 = vmatprep.subr.mxu0 0.0
    %411 = vmatpush1.msra.mxu0 0.0
    %412 = vmatprep.subr.mxu0 0.0
    %413 = vmatpush1.msra.mxu0 0.0
    %414 = vmatprep.subr.mxu0 0.0
    %415 = vmatpush1.msra.mxu0 0.0
    %416 = vmatprep.subr.mxu0 0.0
    %417 = vmatpush1.msra.mxu0 0.0
    %418 = vmatprep.subr.mxu0 0.0
    %419 = vmatpush1.msra.mxu0 0.0
    %420 = vmatprep.subr.mxu0 0.0
    %421 = vmatpush1.msra.mxu0 0.0
    %422 = vmatprep.subr.mxu0 0.0
    %423 = vmatpush1.msra.mxu0 0.0
    %424 = vmatprep.subr.mxu0 0.0
    %425 = vmatpush1.msra.mxu0 0.0
    %426 = vmatprep.subr.mxu0 0.0
    %427 = vmatpush1.msra.mxu0 0.0
    %428 = vmatprep.subr.mxu0 0.0
    %429 = vmatpush1.msra.mxu0 0.0
    %430 = vmatprep.subr.mxu0 0.0
    %431 = vmatpush1.msra.mxu0 0.0
    %432 = vmatprep.subr.mxu0 0.0
    %433 = vmatpush1.msra.mxu0 0.0
    %434 = vmatprep.subr.mxu0 0.0
    %435 = vmatpush1.msra.mxu0 0.0
    %436 = vmatprep.subr.mxu0 0.0
    %437 = vmatpush1.msra.mxu0 0.0
    %438 = vmatprep.subr.mxu0 0.0
    %439 = vmatpush1.msra.mxu0 0.0
    %440 = vmatprep.subr.mxu0 0.0
    %441 = vmatpush1.msra.mxu0 0.0
    %442 = vmatprep.subr.mxu0 0.0
    %443 = vmatpush1.msra.mxu0 0.0
    %444 = vmatprep.subr.mxu0 0.0
    %445 = vmatpush1.msra.mxu0 0.0
    %446 = vmatprep.subr.mxu0 0.0
    %447 = vmatpush1.msra.mxu0 0.0
    %448 = vmatprep.subr.mxu0 0.0
    %449 = vmatpush1.msra.mxu0 0.0
    %450 = vmatprep.subr.mxu0 0.0
    %451 = vmatpush1.msra.mxu0 0.0
    %452 = vmatprep.subr.mxu0 0.0
    %453 = vmatpush1.msra.mxu0 0.0
    %454 = vmatprep.subr.mxu0 0.0
    %455 = vmatpush1.msra.mxu0 0.0
    %456 = vmatprep.subr.mxu0 0.0
    %457 = vmatpush1.msra.mxu0 0.0
    %458 = vmatprep.mubr.f32.mxu0 0.0
    %459 = vmatmul.mubr.f32.gmra.mrb[0].mxu0 %v392
    %v460 = vpop.f32.mrb[0].mxu0
    %v461 = vadd.f32 0.0, %v460
    %v462 = vpop.f32.mrb[0].mxu0
    %463 = vdwg.mxu0
    %v464 = vld [vmem:[%s4] sm:$0xff]
    %v465 = vld [vmem:[%s4 + $0x8] sm:$0xff]
    %v466 = vld [vmem:[%s4 + $0x10] sm:$0xff]
    %v467 = vld [vmem:[%s4 + $0x18] sm:$0xff]
    %v468 = vld [vmem:[%s4 + $0x20] sm:$0xff]
    %v469 = vld [vmem:[%s4 + $0x28] sm:$0xff]
    %v470 = vld [vmem:[%s4 + $0x30] sm:$0xff]
    %v471 = vld [vmem:[%s4 + $0x38] sm:$0xff]
    %v472 = vld [vmem:[%s4 + $0x40] sm:$0xff]
    %v473 = vld [vmem:[%s4 + $0x48] sm:$0xff]
    %v474 = vld [vmem:[%s4 + $0x50] sm:$0xff]
    %v475 = vld [vmem:[%s4 + $0x58] sm:$0xff]
    %v476 = vld [vmem:[%s4 + $0x60] sm:$0xff]
    %v477 = vld [vmem:[%s4 + $0x68] sm:$0xff]
    %v478 = vld [vmem:[%s4 + $0x70] sm:$0xff]
    %v479 = vld [vmem:[%s4 + $0x78] sm:$0xff]
    %v480 = vld [vmem:[%s4 + $0x80] sm:$0xff]
    %v481 = vld [vmem:[%s4 + $0x88] sm:$0xff]
    %v482 = vld [vmem:[#allocation7] sm:$0xff]
    %v483 = vld [vmem:[#allocation7 + $0x8] sm:$0x1]
    %v484 = vld [vmem:[%s6] sm:$0xff]
    %v485 = vld [vmem:[%s6 + $0x8] sm:$0xff]
    %v486 = vld [vmem:[%s6 + $0x10] sm:$0xff]
    %v487 = vld [vmem:[%s6 + $0x18] sm:$0xff]
    %vm488 = vcmask 64512
    %v490 = vsel %vm488, %v464, 0
    %v493 = vsel %vm488, %v465, 0
    %v496 = vsel %vm488, %v466, 0
    %v499 = vsel %vm488, %v467, 0
    %v502 = vsel %vm488, %v468, 0
    %v505 = vsel %vm488, %v469, 0
    %v508 = vsel %vm488, %v470, 0
    %v511 = vsel %vm488, %v471, 0
    %v514 = vsel %vm488, %v472, 0
    %v517 = vsel %vm488, %v473, 0
    %v520 = vsel %vm488, %v474, 0
    %v523 = vsel %vm488, %v475, 0
    %v526 = vsel %vm488, %v476, 0
    %v529 = vsel %vm488, %v477, 0
    %v532 = vsel %vm488, %v478, 0
    %v535 = vsel %vm488, %v479, 0
    %v538 = vsel %vm488, %v480, 0
    %v541 = vsel %vm488, %v481, 0
    %543 = vmatprep.subr.mxu0 0.0
    %544 = vmatpush1.msra.mxu0 %v461
    %545 = vmatprep.subr.mxu0 0.0
    %546 = vmatpush1.msra.mxu0 0.0
    %547 = vmatprep.subr.mxu0 0.0
    %548 = vmatpush1.msra.mxu0 0.0
    %549 = vmatprep.subr.mxu0 0.0
    %550 = vmatpush1.msra.mxu0 0.0
    %551 = vmatprep.subr.mxu0 0.0
    %552 = vmatpush1.msra.mxu0 0.0
    %553 = vmatprep.subr.mxu0 0.0
    %554 = vmatpush1.msra.mxu0 0.0
    %555 = vmatprep.subr.mxu0 0.0
    %556 = vmatpush1.msra.mxu0 0.0
    %557 = vmatprep.subr.mxu0 0.0
    %558 = vmatpush1.msra.mxu0 0.0
    %559 = vmatprep.subr.mxu0 0.0
    %560 = vmatpush1.msra.mxu0 0.0
    %561 = vmatprep.subr.mxu0 0.0
    %562 = vmatpush1.msra.mxu0 0.0
    %563 = vmatprep.subr.mxu0 0.0
    %564 = vmatpush1.msra.mxu0 0.0
    %565 = vmatprep.subr.mxu0 0.0
    %566 = vmatpush1.msra.mxu0 0.0
    %567 = vmatprep.subr.mxu0 0.0
    %568 = vmatpush1.msra.mxu0 0.0
    %569 = vmatprep.subr.mxu0 0.0
    %570 = vmatpush1.msra.mxu0 0.0
    %571 = vmatprep.subr.mxu0 0.0
    %572 = vmatpush1.msra.mxu0 0.0
    %573 = vmatprep.subr.mxu0 0.0
    %574 = vmatpush1.msra.mxu0 0.0
    %575 = vmatprep.subr.mxu0 0.0
    %576 = vmatpush1.msra.mxu0 0.0
    %577 = vmatprep.subr.mxu0 0.0
    %578 = vmatpush1.msra.mxu0 0.0
    %579 = vmatprep.subr.mxu0 0.0
    %580 = vmatpush1.msra.mxu0 0.0
    %581 = vmatprep.subr.mxu0 0.0
    %582 = vmatpush1.msra.mxu0 0.0
    %583 = vmatprep.subr.mxu0 0.0
    %584 = vmatpush1.msra.mxu0 0.0
    %585 = vmatprep.subr.mxu0 0.0
    %586 = vmatpush1.msra.mxu0 0.0
    %587 = vmatprep.subr.mxu0 0.0
    %588 = vmatpush1.msra.mxu0 0.0
    %589 = vmatprep.subr.mxu0 0.0
    %590 = vmatpush1.msra.mxu0 0.0
    %591 = vmatprep.subr.mxu0 0.0
    %592 = vmatpush1.msra.mxu0 0.0
    %593 = vmatprep.subr.mxu0 0.0
    %594 = vmatpush1.msra.mxu0 0.0
    %595 = vmatprep.subr.mxu0 0.0
    %596 = vmatpush1.msra.mxu0 0.0
    %597 = vmatprep.subr.mxu0 0.0
    %598 = vmatpush1.msra.mxu0 0.0
    %599 = vmatprep.subr.mxu0 0.0
    %600 = vmatpush1.msra.mxu0 0.0
    %601 = vmatprep.subr.mxu0 0.0
    %602 = vmatpush1.msra.mxu0 0.0
    %603 = vmatprep.subr.mxu0 0.0
    %604 = vmatpush1.msra.mxu0 0.0
    %605 = vmatprep.subr.mxu0 0.0
    %606 = vmatpush1.msra.mxu0 0.0
    %607 = vmatprep.mubr.f32.mxu0 0.0
    %608 = vmatmul.mubr.f32.gmra.mrb[0].mxu0 %v490
    %v609 = vpop.f32.mrb[0].mxu0
    %v610 = vadd.f32 0.0, %v609
    %v611 = vpop.f32.mrb[0].mxu0
    %612 = vmatprep.mubr.f32.mxu0 0.0
    %613 = vmatmul.mubr.f32.gmra.mrb[0].mxu0 %v493
    %v614 = vpop.f32.mrb[0].mxu0
    %v615 = vadd.f32 0.0, %v614
    %v616 = vpop.f32.mrb[0].mxu0
    %617 = vmatprep.mubr.f32.mxu0 0.0
    %618 = vmatmul.mubr.f32.gmra.mrb[0].mxu0 %v496
    %v619 = vpop.f32.mrb[0].mxu0
    %v620 = vadd.f32 0.0, %v619
    %v621 = vpop.f32.mrb[0].mxu0
    %622 = vmatprep.mubr.f32.mxu0 0.0
    %623 = vmatmul.mubr.f32.gmra.mrb[0].mxu0 %v499
    %v624 = vpop.f32.mrb[0].mxu0
    %v625 = vadd.f32 0.0, %v624
    %v626 = vpop.f32.mrb[0].mxu0
    %627 = vmatprep.mubr.f32.mxu0 0.0
    %628 = vmatmul.mubr.f32.gmra.mrb[0].mxu0 %v502
    %v629 = vpop.f32.mrb[0].mxu0
    %v630 = vadd.f32 0.0, %v629
    %v631 = vpop.f32.mrb[0].mxu0
    %632 = vmatprep.mubr.f32.mxu0 0.0
    %633 = vmatmul.mubr.f32.gmra.mrb[0].mxu0 %v505
    %v634 = vpop.f32.mrb[0].mxu0
    %v635 = vadd.f32 0.0, %v634
    %v636 = vpop.f32.mrb[0].mxu0
    %637 = vmatprep.mubr.f32.mxu0 0.0
    %638 = vmatmul.mubr.f32.gmra.mrb[0].mxu0 %v508
    %v639 = vpop.f32.mrb[0].mxu0
    %v640 = vadd.f32 0.0, %v639
    %v641 = vpop.f32.mrb[0].mxu0
    %642 = vmatprep.mubr.f32.mxu0 0.0
    %643 = vmatmul.mubr.f32.gmra.mrb[0].mxu0 %v511
    %v644 = vpop.f32.mrb[0].mxu0
    %v645 = vadd.f32 0.0, %v644
    %v646 = vpop.f32.mrb[0].mxu0
    %647 = vmatprep.mubr.f32.mxu0 0.0
    %648 = vmatmul.mubr.f32.gmra.mrb[0].mxu0 %v514
    %v649 = vpop.f32.mrb[0].mxu0
    %v650 = vadd.f32 0.0, %v649
    %v651 = vpop.f32.mrb[0].mxu0
    %652 = vmatprep.mubr.f32.mxu0 0.0
    %653 = vmatmul.mubr.f32.gmra.mrb[0].mxu0 %v517
    %v654 = vpop.f32.mrb[0].mxu0
    %v655 = vadd.f32 0.0, %v654
    %v656 = vpop.f32.mrb[0].mxu0
    %657 = vmatprep.mubr.f32.mxu0 0.0
    %658 = vmatmul.mubr.f32.gmra.mrb[0].mxu0 %v520
    %v659 = vpop.f32.mrb[0].mxu0
    %v660 = vadd.f32 0.0, %v659
    %v661 = vpop.f32.mrb[0].mxu0
    %662 = vmatprep.mubr.f32.mxu0 0.0
    %663 = vmatmul.mubr.f32.gmra.mrb[0].mxu0 %v523
    %v664 = vpop.f32.mrb[0].mxu0
    %v665 = vadd.f32 0.0, %v664
    %v666 = vpop.f32.mrb[0].mxu0
    %667 = vmatprep.mubr.f32.mxu0 0.0
    %668 = vmatmul.mubr.f32.gmra.mrb[0].mxu0 %v526
    %v669 = vpop.f32.mrb[0].mxu0
    %v670 = vadd.f32 0.0, %v669
    %v671 = vpop.f32.mrb[0].mxu0
    %672 = vmatprep.mubr.f32.mxu0 0.0
    %673 = vmatmul.mubr.f32.gmra.mrb[0].mxu0 %v529
    %v674 = vpop.f32.mrb[0].mxu0
    %v675 = vadd.f32 0.0, %v674
    %v676 = vpop.f32.mrb[0].mxu0
    %677 = vmatprep.mubr.f32.mxu0 0.0
    %678 = vmatmul.mubr.f32.gmra.mrb[0].mxu0 %v532
    %v679 = vpop.f32.mrb[0].mxu0
    %v680 = vadd.f32 0.0, %v679
    %v681 = vpop.f32.mrb[0].mxu0
    %682 = vmatprep.mubr.f32.mxu0 0.0
    %683 = vmatmul.mubr.f32.gmra.mrb[0].mxu0 %v535
    %v684 = vpop.f32.mrb[0].mxu0
    %v685 = vadd.f32 0.0, %v684
    %v686 = vpop.f32.mrb[0].mxu0
    %687 = vmatprep.mubr.f32.mxu0 0.0
    %688 = vmatmul.mubr.f32.gmra.mrb[0].mxu0 %v538
    %v689 = vpop.f32.mrb[0].mxu0
    %v690 = vadd.f32 0.0, %v689
    %v691 = vpop.f32.mrb[0].mxu0
    %692 = vmatprep.mubr.f32.mxu0 0.0
    %693 = vmatmul.mubr.f32.gmra.mrb[0].mxu0 %v541
    %v694 = vpop.f32.mrb[0].mxu0
    %v695 = vadd.f32 0.0, %v694
    %v696 = vpop.f32.mrb[0].mxu0
    %697 = vdwg.mxu0
    %v698 = vlaneseq
    %v699 = vshrl.u32 %v698, 7
    %v700 = vsub.s32 0, %v699
    %v701 = vrot.slane %v482, %v700
    %v702 = vmul.f32 %v610, %v701
    %v703 = vmul.f32 %v615, %v701
    %v704 = vlaneseq
    %v705 = vshrl.u32 %v704, 7
    %v706 = vsub.s32 1, %v705
    %v707 = vrot.slane %v482, %v706
    %v708 = vmul.f32 %v620, %v707
    %v709 = vmul.f32 %v625, %v707
    %v710 = vadd.f32 %v702, %v708
    %v711 = vadd.f32 %v703, %v709
    %v712 = vlaneseq
    %v713 = vshrl.u32 %v712, 7
    %v714 = vsub.s32 2, %v713
    %v715 = vrot.slane %v482, %v714
    %v716 = vmul.f32 %v630, %v715
    %v717 = vmul.f32 %v635, %v715
    %v718 = vadd.f32 %v710, %v716
    %v719 = vadd.f32 %v711, %v717
    %v720 = vlaneseq
    %v721 = vshrl.u32 %v720, 7
    %v722 = vsub.s32 3, %v721
    %v723 = vrot.slane %v482, %v722
    %v724 = vmul.f32 %v640, %v723
    %v725 = vmul.f32 %v645, %v723
    %v726 = vadd.f32 %v718, %v724
    %v727 = vadd.f32 %v719, %v725
    %v728 = vlaneseq
    %v729 = vshrl.u32 %v728, 7
    %v730 = vsub.s32 4, %v729
    %v731 = vrot.slane %v482, %v730
    %v732 = vmul.f32 %v650, %v731
    %v733 = vmul.f32 %v655, %v731
    %v734 = vadd.f32 %v726, %v732
    %v735 = vadd.f32 %v727, %v733
    %v736 = vlaneseq
    %v737 = vshrl.u32 %v736, 7
    %v738 = vsub.s32 5, %v737
    %v739 = vrot.slane %v482, %v738
    %v740 = vmul.f32 %v660, %v739
    %v741 = vmul.f32 %v665, %v739
    %v742 = vadd.f32 %v734, %v740
    %v743 = vadd.f32 %v735, %v741
    %v744 = vlaneseq
    %v745 = vshrl.u32 %v744, 7
    %v746 = vsub.s32 6, %v745
    %v747 = vrot.slane %v482, %v746
    %v748 = vmul.f32 %v670, %v747
    %v749 = vmul.f32 %v675, %v747
    %v750 = vadd.f32 %v742, %v748
    %v751 = vadd.f32 %v743, %v749
    %v752 = vlaneseq
    %v753 = vshrl.u32 %v752, 7
    %v754 = vsub.s32 7, %v753
    %v755 = vrot.slane %v482, %v754
    %v756 = vmul.f32 %v680, %v755
    %v757 = vmul.f32 %v685, %v755
    %v758 = vadd.f32 %v750, %v756
    %v759 = vadd.f32 %v751, %v757
    %v760 = vlaneseq
    %v761 = vshrl.u32 %v760, 7
    %v762 = vsub.s32 0, %v761
    %v763 = vrot.slane %v483, %v762
    %v764 = vmul.f32 %v690, %v763
    %v765 = vmul.f32 %v695, %v763
    %v766 = vadd.f32 %v758, %v764
    %v767 = vadd.f32 %v759, %v765
    %v769 = vsel %vm390, %v766, 0
    %v772 = vsel %vm390, %v767, 0
    %774 = vmatprep.subr.mxu0 0.0
    %775 = vmatpush1.msra.mxu0 %v484
    %776 = vmatprep.subr.mxu0 0.0
    %777 = vmatpush1.msra.mxu0 %v485
    %778 = vmatprep.subr.mxu0 0.0
    %779 = vmatpush1.msra.mxu0 %v486
    %780 = vmatprep.subr.mxu0 0.0
    %781 = vmatpush1.msra.mxu0 %v487
    %782 = vmatprep.subr.mxu0 0.0
    %783 = vmatpush1.msra.mxu0 0.0
    %784 = vmatprep.subr.mxu0 0.0
    %785 = vmatpush1.msra.mxu0 0.0
    %786 = vmatprep.subr.mxu0 0.0
    %787 = vmatpush1.msra.mxu0 0.0
    %788 = vmatprep.subr.mxu0 0.0
    %789 = vmatpush1.msra.mxu0 0.0
    %790 = vmatprep.subr.mxu0 0.0
    %791 = vmatpush1.msra.mxu0 0.0
    %792 = vmatprep.subr.mxu0 0.0
    %793 = vmatpush1.msra.mxu0 0.0
    %794 = vmatprep.subr.mxu0 0.0
    %795 = vmatpush1.msra.mxu0 0.0
    %796 = vmatprep.subr.mxu0 0.0
    %797 = vmatpush1.msra.mxu0 0.0
    %798 = vmatprep.subr.mxu0 0.0
    %799 = vmatpush1.msra.mxu0 0.0
    %800 = vmatprep.subr.mxu0 0.0
    %801 = vmatpush1.msra.mxu0 0.0
    %802 = vmatprep.subr.mxu0 0.0
    %803 = vmatpush1.msra.mxu0 0.0
    %804 = vmatprep.subr.mxu0 0.0
    %805 = vmatpush1.msra.mxu0 0.0
    %806 = vmatprep.subr.mxu0 0.0
    %807 = vmatpush1.msra.mxu0 0.0
    %808 = vmatprep.subr.mxu0 0.0
    %809 = vmatpush1.msra.mxu0 0.0
    %810 = vmatprep.subr.mxu0 0.0
    %811 = vmatpush1.msra.mxu0 0.0
    %812 = vmatprep.subr.mxu0 0.0
    %813 = vmatpush1.msra.mxu0 0.0
    %814 = vmatprep.subr.mxu0 0.0
    %815 = vmatpush1.msra.mxu0 0.0
    %816 = vmatprep.subr.mxu0 0.0
    %817 = vmatpush1.msra.mxu0 0.0
    %818 = vmatprep.subr.mxu0 0.0
    %819 = vmatpush1.msra.mxu0 0.0
    %820 = vmatprep.subr.mxu0 0.0
    %821 = vmatpush1.msra.mxu0 0.0
    %822 = vmatprep.subr.mxu0 0.0
    %823 = vmatpush1.msra.mxu0 0.0
    %824 = vmatprep.subr.mxu0 0.0
    %825 = vmatpush1.msra.mxu0 0.0
    %826 = vmatprep.subr.mxu0 0.0
    %827 = vmatpush1.msra.mxu0 0.0
    %828 = vmatprep.subr.mxu0 0.0
    %829 = vmatpush1.msra.mxu0 0.0
    %830 = vmatprep.subr.mxu0 0.0
    %831 = vmatpush1.msra.mxu0 0.0
    %832 = vmatprep.subr.mxu0 0.0
    %833 = vmatpush1.msra.mxu0 0.0
    %834 = vmatprep.subr.mxu0 0.0
    %835 = vmatpush1.msra.mxu0 0.0
    %836 = vmatprep.subr.mxu0 0.0
    %837 = vmatpush1.msra.mxu0 0.0
    %838 = vmatprep.mubr.f32.mxu0 0.0
    %839 = vmatmul.mubr.f32.gmra.mrb[0].mxu0 %v769
    %v840 = vpop.f32.mrb[0].mxu0
    %v841 = vadd.f32 0.0, %v840
    %v842 = vpop.f32.mrb[0].mxu0
    %843 = vmatprep.mubr.f32.mxu0 0.0
    %844 = vmatmul.mubr.f32.gmra.mrb[0].mxu0 %v772
    %v845 = vpop.f32.mrb[0].mxu0
    %v846 = vadd.f32 0.0, %v845
    %v847 = vpop.f32.mrb[0].mxu0
    %848 = vdwg.mxu0
    %v849 = vmax.f32 %v841, 0.0
    %v850 = vmax.f32 %v846, 0.0
    %v851 = vld [vmem:[#allocation9] sm:$0xff]
    %v852 = vld [vmem:[#allocation9 + $0x8] sm:$0xff]
    %v853 = vld [vmem:[#allocation9 + $0x10] sm:$0xff]
    %v854 = vld [vmem:[#allocation9 + $0x18] sm:$0xff]
    %v855 = vld [vmem:[#allocation9 + $0x20] sm:$0xff]
    %v856 = vld [vmem:[#allocation9 + $0x28] sm:$0xff]
    %v857 = vld [vmem:[#allocation9 + $0x30] sm:$0xff]
    %v858 = vld [vmem:[#allocation9 + $0x38] sm:$0xff]
    %v859 = vld [vmem:[#allocation9 + $0x40] sm:$0xff]
    %v860 = vld [vmem:[#allocation9 + $0x48] sm:$0xff]
    %v861 = vld [vmem:[#allocation9 + $0x50] sm:$0xff]
    %v862 = vld [vmem:[#allocation9 + $0x58] sm:$0xff]
    %v863 = vld [vmem:[#allocation9 + $0x60] sm:$0xff]
    %v864 = vld [vmem:[#allocation9 + $0x68] sm:$0xff]
    %v865 = vld [vmem:[#allocation9 + $0x70] sm:$0xff]
    %v866 = vld [vmem:[#allocation9 + $0x78] sm:$0xff]
    %v867 = vld [vmem:[#allocation9 + $0x80] sm:$0xff]
    %v868 = vld [vmem:[#allocation9 + $0x88] sm:$0xff]
    %v869 = vld [vmem:[#allocation9 + $0x90] sm:$0xff]
    %v870 = vld [vmem:[#allocation9 + $0x98] sm:$0xff]
    %v871 = vld [vmem:[#allocation9 + $0xa0] sm:$0xff]
    %v872 = vld [vmem:[#allocation9 + $0xa8] sm:$0xff]
    %v873 = vld [vmem:[#allocation9 + $0xb0] sm:$0xff]
    %v874 = vld [vmem:[#allocation9 + $0xb8] sm:$0xff]
    %v875 = vld [vmem:[#allocation9 + $0xc0] sm:$0xff]
    %v876 = vld [vmem:[#allocation9 + $0xc8] sm:$0xff]
    %v877 = vld [vmem:[#allocation9 + $0xd0] sm:$0xff]
    %v878 = vld [vmem:[#allocation9 + $0xd8] sm:$0xff]
    %v879 = vld [vmem:[#allocation9 + $0xe0] sm:$0xff]
    %v880 = vld [vmem:[#allocation9 + $0xe8] sm:$0xff]
    %v881 = vld [vmem:[#allocation9 + $0xf0] sm:$0xff]
    %v882 = vld [vmem:[#allocation9 + $0xf8] sm:$0xff]
    %v883 = vld [vmem:[#allocation9 + $0x100] sm:$0xff]
    %v884 = vld [vmem:[#allocation9 + $0x108] sm:$0xff]
    %v885 = vld [vmem:[#allocation9 + $0x110] sm:$0xff]
    %v886 = vld [vmem:[#allocation9 + $0x118] sm:$0xff]
    %v887 = vld [vmem:[#allocation10] sm:$0xff]
    %v888 = vld [vmem:[#allocation10 + $0x8] sm:$0x1]
    %v889 = vld [vmem:[%s9] sm:$0xff]
    %v890 = vld [vmem:[%s9 + $0x8] sm:$0xff]
    %v891 = vld [vmem:[%s9 + $0x10] sm:$0xff]
    %v892 = vld [vmem:[%s9 + $0x18] sm:$0xff]
    %v894 = vsel %vm226, %v851, 0
    %v897 = vsel %vm226, %v852, 0
    %v900 = vsel %vm226, %v853, 0
    %v903 = vsel %vm226, %v854, 0
    %v906 = vsel %vm226, %v855, 0
    %v909 = vsel %vm226, %v856, 0
    %v912 = vsel %vm226, %v857, 0
    %v915 = vsel %vm226, %v858, 0
    %v918 = vsel %vm226, %v859, 0
    %v921 = vsel %vm226, %v860, 0
    %v924 = vsel %vm226, %v861, 0
    %v927 = vsel %vm226, %v862, 0
    %v930 = vsel %vm226, %v863, 0
    %v933 = vsel %vm226, %v864, 0
    %v936 = vsel %vm226, %v865, 0
    %v939 = vsel %vm226, %v866, 0
    %v942 = vsel %vm226, %v867, 0
    %v945 = vsel %vm226, %v868, 0
    %v948 = vsel %vm226, %v869, 0
    %v951 = vsel %vm226, %v870, 0
    %v954 = vsel %vm226, %v871, 0
    %v957 = vsel %vm226, %v872, 0
    %v960 = vsel %vm226, %v873, 0
    %v963 = vsel %vm226, %v874, 0
    %v966 = vsel %vm226, %v875, 0
    %v969 = vsel %vm226, %v876, 0
    %v972 = vsel %vm226, %v877, 0
    %v975 = vsel %vm226, %v878, 0
    %v978 = vsel %vm226, %v879, 0
    %v981 = vsel %vm226, %v880, 0
    %v984 = vsel %vm226, %v881, 0
    %v987 = vsel %vm226, %v882, 0
    %v990 = vsel %vm226, %v883, 0
    %v993 = vsel %vm226, %v884, 0
    %v996 = vsel %vm226, %v885, 0
    %v999 = vsel %vm226, %v886, 0
    %1001 = vmatprep.subr.mxu0 0.0
    %1002 = vmatpush1.msra.mxu0 %v849
    %1003 = vmatprep.subr.mxu0 0.0
    %1004 = vmatpush1.msra.mxu0 %v850
    %1005 = vmatprep.subr.mxu0 0.0
    %1006 = vmatpush1.msra.mxu0 0.0
    %1007 = vmatprep.subr.mxu0 0.0
    %1008 = vmatpush1.msra.mxu0 0.0
    %1009 = vmatprep.subr.mxu0 0.0
    %1010 = vmatpush1.msra.mxu0 0.0
    %1011 = vmatprep.subr.mxu0 0.0
    %1012 = vmatpush1.msra.mxu0 0.0
    %1013 = vmatprep.subr.mxu0 0.0
    %1014 = vmatpush1.msra.mxu0 0.0
    %1015 = vmatprep.subr.mxu0 0.0
    %1016 = vmatpush1.msra.mxu0 0.0
    %1017 = vmatprep.subr.mxu0 0.0
    %1018 = vmatpush1.msra.mxu0 0.0
    %1019 = vmatprep.subr.mxu0 0.0
    %1020 = vmatpush1.msra.mxu0 0.0
    %1021 = vmatprep.subr.mxu0 0.0
    %1022 = vmatpush1.msra.mxu0 0.0
    %1023 = vmatprep.subr.mxu0 0.0
    %1024 = vmatpush1.msra.mxu0 0.0
    %1025 = vmatprep.subr.mxu0 0.0
    %1026 = vmatpush1.msra.mxu0 0.0
    %1027 = vmatprep.subr.mxu0 0.0
    %1028 = vmatpush1.msra.mxu0 0.0
    %1029 = vmatprep.subr.mxu0 0.0
    %1030 = vmatpush1.msra.mxu0 0.0
    %1031 = vmatprep.subr.mxu0 0.0
    %1032 = vmatpush1.msra.mxu0 0.0
    %1033 = vmatprep.subr.mxu0 0.0
    %1034 = vmatpush1.msra.mxu0 0.0
    %1035 = vmatprep.subr.mxu0 0.0
    %1036 = vmatpush1.msra.mxu0 0.0
    %1037 = vmatprep.subr.mxu0 0.0
    %1038 = vmatpush1.msra.mxu0 0.0
    %1039 = vmatprep.subr.mxu0 0.0
    %1040 = vmatpush1.msra.mxu0 0.0
    %1041 = vmatprep.subr.mxu0 0.0
    %1042 = vmatpush1.msra.mxu0 0.0
    %1043 = vmatprep.subr.mxu0 0.0
    %1044 = vmatpush1.msra.mxu0 0.0
    %1045 = vmatprep.subr.mxu0 0.0
    %1046 = vmatpush1.msra.mxu0 0.0
    %1047 = vmatprep.subr.mxu0 0.0
    %1048 = vmatpush1.msra.mxu0 0.0
    %1049 = vmatprep.subr.mxu0 0.0
    %1050 = vmatpush1.msra.mxu0 0.0
    %1051 = vmatprep.subr.mxu0 0.0
    %1052 = vmatpush1.msra.mxu0 0.0
    %1053 = vmatprep.subr.mxu0 0.0
    %1054 = vmatpush1.msra.mxu0 0.0
    %1055 = vmatprep.subr.mxu0 0.0
    %1056 = vmatpush1.msra.mxu0 0.0
    %1057 = vmatprep.subr.mxu0 0.0
    %1058 = vmatpush1.msra.mxu0 0.0
    %1059 = vmatprep.subr.mxu0 0.0
    %1060 = vmatpush1.msra.mxu0 0.0
    %1061 = vmatprep.subr.mxu0 0.0
    %1062 = vmatpush1.msra.mxu0 0.0
    %1063 = vmatprep.subr.mxu0 0.0
    %1064 = vmatpush1.msra.mxu0 0.0
    %1065 = vmatprep.mubr.f32.mxu0 0.0
    %1066 = vmatmul.mubr.f32.gmra.mrb[0].mxu0 %v894
    %v1067 = vpop.f32.mrb[0].mxu0
    %v1068 = vadd.f32 0.0, %v1067
    %v1069 = vpop.f32.mrb[0].mxu0
    %1070 = vmatprep.mubr.f32.mxu0 0.0
    %1071 = vmatmul.mubr.f32.gmra.mrb[0].mxu0 %v897
    %v1072 = vpop.f32.mrb[0].mxu0
    %v1073 = vadd.f32 0.0, %v1072
    %v1074 = vpop.f32.mrb[0].mxu0
    %1075 = vmatprep.mubr.f32.mxu0 0.0
    %1076 = vmatmul.mubr.f32.gmra.mrb[0].mxu0 %v900
    %v1077 = vpop.f32.mrb[0].mxu0
    %v1078 = vadd.f32 0.0, %v1077
    %v1079 = vpop.f32.mrb[0].mxu0
    %1080 = vmatprep.mubr.f32.mxu0 0.0
    %1081 = vmatmul.mubr.f32.gmra.mrb[0].mxu0 %v903
    %v1082 = vpop.f32.mrb[0].mxu0
    %v1083 = vadd.f32 0.0, %v1082
    %v1084 = vpop.f32.mrb[0].mxu0
    %1085 = vmatprep.mubr.f32.mxu0 0.0
    %1086 = vmatmul.mubr.f32.gmra.mrb[0].mxu0 %v906
    %v1087 = vpop.f32.mrb[0].mxu0
    %v1088 = vadd.f32 0.0, %v1087
    %v1089 = vpop.f32.mrb[0].mxu0
    %1090 = vmatprep.mubr.f32.mxu0 0.0
    %1091 = vmatmul.mubr.f32.gmra.mrb[0].mxu0 %v909
    %v1092 = vpop.f32.mrb[0].mxu0
    %v1093 = vadd.f32 0.0, %v1092
    %v1094 = vpop.f32.mrb[0].mxu0
    %1095 = vmatprep.mubr.f32.mxu0 0.0
    %1096 = vmatmul.mubr.f32.gmra.mrb[0].mxu0 %v912
    %v1097 = vpop.f32.mrb[0].mxu0
    %v1098 = vadd.f32 0.0, %v1097
    %v1099 = vpop.f32.mrb[0].mxu0
    %1100 = vmatprep.mubr.f32.mxu0 0.0
    %1101 = vmatmul.mubr.f32.gmra.mrb[0].mxu0 %v915
    %v1102 = vpop.f32.mrb[0].mxu0
    %v1103 = vadd.f32 0.0, %v1102
    %v1104 = vpop.f32.mrb[0].mxu0
    %1105 = vmatprep.mubr.f32.mxu0 0.0
    %1106 = vmatmul.mubr.f32.gmra.mrb[0].mxu0 %v918
    %v1107 = vpop.f32.mrb[0].mxu0
    %v1108 = vadd.f32 0.0, %v1107
    %v1109 = vpop.f32.mrb[0].mxu0
    %1110 = vmatprep.mubr.f32.mxu0 0.0
    %1111 = vmatmul.mubr.f32.gmra.mrb[0].mxu0 %v921
    %v1112 = vpop.f32.mrb[0].mxu0
    %v1113 = vadd.f32 0.0, %v1112
    %v1114 = vpop.f32.mrb[0].mxu0
    %1115 = vmatprep.mubr.f32.mxu0 0.0
    %1116 = vmatmul.mubr.f32.gmra.mrb[0].mxu0 %v924
    %v1117 = vpop.f32.mrb[0].mxu0
    %v1118 = vadd.f32 0.0, %v1117
    %v1119 = vpop.f32.mrb[0].mxu0
    %1120 = vmatprep.mubr.f32.mxu0 0.0
    %1121 = vmatmul.mubr.f32.gmra.mrb[0].mxu0 %v927
    %v1122 = vpop.f32.mrb[0].mxu0
    %v1123 = vadd.f32 0.0, %v1122
    %v1124 = vpop.f32.mrb[0].mxu0
    %1125 = vmatprep.mubr.f32.mxu0 0.0
    %1126 = vmatmul.mubr.f32.gmra.mrb[0].mxu0 %v930
    %v1127 = vpop.f32.mrb[0].mxu0
    %v1128 = vadd.f32 0.0, %v1127
    %v1129 = vpop.f32.mrb[0].mxu0
    %1130 = vmatprep.mubr.f32.mxu0 0.0
    %1131 = vmatmul.mubr.f32.gmra.mrb[0].mxu0 %v933
    %v1132 = vpop.f32.mrb[0].mxu0
    %v1133 = vadd.f32 0.0, %v1132
    %v1134 = vpop.f32.mrb[0].mxu0
    %1135 = vmatprep.mubr.f32.mxu0 0.0
    %1136 = vmatmul.mubr.f32.gmra.mrb[0].mxu0 %v936
    %v1137 = vpop.f32.mrb[0].mxu0
    %v1138 = vadd.f32 0.0, %v1137
    %v1139 = vpop.f32.mrb[0].mxu0
    %1140 = vmatprep.mubr.f32.mxu0 0.0
    %1141 = vmatmul.mubr.f32.gmra.mrb[0].mxu0 %v939
    %v1142 = vpop.f32.mrb[0].mxu0
    %v1143 = vadd.f32 0.0, %v1142
    %v1144 = vpop.f32.mrb[0].mxu0
    %1145 = vmatprep.mubr.f32.mxu0 0.0
    %1146 = vmatmul.mubr.f32.gmra.mrb[0].mxu0 %v942
    %v1147 = vpop.f32.mrb[0].mxu0
    %v1148 = vadd.f32 0.0, %v1147
    %v1149 = vpop.f32.mrb[0].mxu0
    %1150 = vmatprep.mubr.f32.mxu0 0.0
    %1151 = vmatmul.mubr.f32.gmra.mrb[0].mxu0 %v945
    %v1152 = vpop.f32.mrb[0].mxu0
    %v1153 = vadd.f32 0.0, %v1152
    %v1154 = vpop.f32.mrb[0].mxu0
    %1155 = vmatprep.mubr.f32.mxu0 0.0
    %1156 = vmatmul.mubr.f32.gmra.mrb[0].mxu0 %v948
    %v1157 = vpop.f32.mrb[0].mxu0
    %v1158 = vadd.f32 0.0, %v1157
    %v1159 = vpop.f32.mrb[0].mxu0
    %1160 = vmatprep.mubr.f32.mxu0 0.0
    %1161 = vmatmul.mubr.f32.gmra.mrb[0].mxu0 %v951
    %v1162 = vpop.f32.mrb[0].mxu0
    %v1163 = vadd.f32 0.0, %v1162
    %v1164 = vpop.f32.mrb[0].mxu0
    %1165 = vmatprep.mubr.f32.mxu0 0.0
    %1166 = vmatmul.mubr.f32.gmra.mrb[0].mxu0 %v954
    %v1167 = vpop.f32.mrb[0].mxu0
    %v1168 = vadd.f32 0.0, %v1167
    %v1169 = vpop.f32.mrb[0].mxu0
    %1170 = vmatprep.mubr.f32.mxu0 0.0
    %1171 = vmatmul.mubr.f32.gmra.mrb[0].mxu0 %v957
    %v1172 = vpop.f32.mrb[0].mxu0
    %v1173 = vadd.f32 0.0, %v1172
    %v1174 = vpop.f32.mrb[0].mxu0
    %1175 = vmatprep.mubr.f32.mxu0 0.0
    %1176 = vmatmul.mubr.f32.gmra.mrb[0].mxu0 %v960
    %v1177 = vpop.f32.mrb[0].mxu0
    %v1178 = vadd.f32 0.0, %v1177
    %v1179 = vpop.f32.mrb[0].mxu0
    %1180 = vmatprep.mubr.f32.mxu0 0.0
    %1181 = vmatmul.mubr.f32.gmra.mrb[0].mxu0 %v963
    %v1182 = vpop.f32.mrb[0].mxu0
    %v1183 = vadd.f32 0.0, %v1182
    %v1184 = vpop.f32.mrb[0].mxu0
    %1185 = vmatprep.mubr.f32.mxu0 0.0
    %1186 = vmatmul.mubr.f32.gmra.mrb[0].mxu0 %v966
    %v1187 = vpop.f32.mrb[0].mxu0
    %v1188 = vadd.f32 0.0, %v1187
    %v1189 = vpop.f32.mrb[0].mxu0
    %1190 = vmatprep.mubr.f32.mxu0 0.0
    %1191 = vmatmul.mubr.f32.gmra.mrb[0].mxu0 %v969
    %v1192 = vpop.f32.mrb[0].mxu0
    %v1193 = vadd.f32 0.0, %v1192
    %v1194 = vpop.f32.mrb[0].mxu0
    %1195 = vmatprep.mubr.f32.mxu0 0.0
    %1196 = vmatmul.mubr.f32.gmra.mrb[0].mxu0 %v972
    %v1197 = vpop.f32.mrb[0].mxu0
    %v1198 = vadd.f32 0.0, %v1197
    %v1199 = vpop.f32.mrb[0].mxu0
    %1200 = vmatprep.mubr.f32.mxu0 0.0
    %1201 = vmatmul.mubr.f32.gmra.mrb[0].mxu0 %v975
    %v1202 = vpop.f32.mrb[0].mxu0
    %v1203 = vadd.f32 0.0, %v1202
    %v1204 = vpop.f32.mrb[0].mxu0
    %1205 = vmatprep.mubr.f32.mxu0 0.0
    %1206 = vmatmul.mubr.f32.gmra.mrb[0].mxu0 %v978
    %v1207 = vpop.f32.mrb[0].mxu0
    %v1208 = vadd.f32 0.0, %v1207
    %v1209 = vpop.f32.mrb[0].mxu0
    %1210 = vmatprep.mubr.f32.mxu0 0.0
    %1211 = vmatmul.mubr.f32.gmra.mrb[0].mxu0 %v981
    %v1212 = vpop.f32.mrb[0].mxu0
    %v1213 = vadd.f32 0.0, %v1212
    %v1214 = vpop.f32.mrb[0].mxu0
    %1215 = vmatprep.mubr.f32.mxu0 0.0
    %1216 = vmatmul.mubr.f32.gmra.mrb[0].mxu0 %v984
    %v1217 = vpop.f32.mrb[0].mxu0
    %v1218 = vadd.f32 0.0, %v1217
    %v1219 = vpop.f32.mrb[0].mxu0
    %1220 = vmatprep.mubr.f32.mxu0 0.0
    %1221 = vmatmul.mubr.f32.gmra.mrb[0].mxu0 %v987
    %v1222 = vpop.f32.mrb[0].mxu0
    %v1223 = vadd.f32 0.0, %v1222
    %v1224 = vpop.f32.mrb[0].mxu0
    %1225 = vmatprep.mubr.f32.mxu0 0.0
    %1226 = vmatmul.mubr.f32.gmra.mrb[0].mxu0 %v990
    %v1227 = vpop.f32.mrb[0].mxu0
    %v1228 = vadd.f32 0.0, %v1227
    %v1229 = vpop.f32.mrb[0].mxu0
    %1230 = vmatprep.mubr.f32.mxu0 0.0
    %1231 = vmatmul.mubr.f32.gmra.mrb[0].mxu0 %v993
    %v1232 = vpop.f32.mrb[0].mxu0
    %v1233 = vadd.f32 0.0, %v1232
    %v1234 = vpop.f32.mrb[0].mxu0
    %1235 = vmatprep.mubr.f32.mxu0 0.0
    %1236 = vmatmul.mubr.f32.gmra.mrb[0].mxu0 %v996
    %v1237 = vpop.f32.mrb[0].mxu0
    %v1238 = vadd.f32 0.0, %v1237
    %v1239 = vpop.f32.mrb[0].mxu0
    %1240 = vmatprep.mubr.f32.mxu0 0.0
    %1241 = vmatmul.mubr.f32.gmra.mrb[0].mxu0 %v999
    %v1242 = vpop.f32.mrb[0].mxu0
    %v1243 = vadd.f32 0.0, %v1242
    %v1244 = vpop.f32.mrb[0].mxu0
    %1245 = vdwg.mxu0
    %v1246 = vlaneseq
    %v1247 = vshrl.u32 %v1246, 7
    %v1248 = vsub.s32 0, %v1247
    %v1249 = vrot.slane %v887, %v1248
    %v1250 = vmul.f32 %v1068, %v1249
    %v1251 = vmul.f32 %v1073, %v1249
    %v1252 = vmul.f32 %v1078, %v1249
    %v1253 = vmul.f32 %v1083, %v1249
    %v1254 = vlaneseq
    %v1255 = vshrl.u32 %v1254, 7
    %v1256 = vsub.s32 1, %v1255
    %v1257 = vrot.slane %v887, %v1256
    %v1258 = vmul.f32 %v1088, %v1257
    %v1259 = vmul.f32 %v1093, %v1257
    %v1260 = vmul.f32 %v1098, %v1257
    %v1261 = vmul.f32 %v1103, %v1257
    %v1262 = vadd.f32 %v1250, %v1258
    %v1263 = vadd.f32 %v1251, %v1259
    %v1264 = vadd.f32 %v1252, %v1260
    %v1265 = vadd.f32 %v1253, %v1261
    %v1266 = vlaneseq
    %v1267 = vshrl.u32 %v1266, 7
    %v1268 = vsub.s32 2, %v1267
    %v1269 = vrot.slane %v887, %v1268
    %v1270 = vmul.f32 %v1108, %v1269
    %v1271 = vmul.f32 %v1113, %v1269
    %v1272 = vmul.f32 %v1118, %v1269
    %v1273 = vmul.f32 %v1123, %v1269
    %v1274 = vadd.f32 %v1262, %v1270
    %v1275 = vadd.f32 %v1263, %v1271
    %v1276 = vadd.f32 %v1264, %v1272
    %v1277 = vadd.f32 %v1265, %v1273
    %v1278 = vlaneseq
    %v1279 = vshrl.u32 %v1278, 7
    %v1280 = vsub.s32 3, %v1279
    %v1281 = vrot.slane %v887, %v1280
    %v1282 = vmul.f32 %v1128, %v1281
    %v1283 = vmul.f32 %v1133, %v1281
    %v1284 = vmul.f32 %v1138, %v1281
    %v1285 = vmul.f32 %v1143, %v1281
    %v1286 = vadd.f32 %v1274, %v1282
    %v1287 = vadd.f32 %v1275, %v1283
    %v1288 = vadd.f32 %v1276, %v1284
    %v1289 = vadd.f32 %v1277, %v1285
    %v1290 = vlaneseq
    %v1291 = vshrl.u32 %v1290, 7
    %v1292 = vsub.s32 4, %v1291
    %v1293 = vrot.slane %v887, %v1292
    %v1294 = vmul.f32 %v1148, %v1293
    %v1295 = vmul.f32 %v1153, %v1293
    %v1296 = vmul.f32 %v1158, %v1293
    %v1297 = vmul.f32 %v1163, %v1293
    %v1298 = vadd.f32 %v1286, %v1294
    %v1299 = vadd.f32 %v1287, %v1295
    %v1300 = vadd.f32 %v1288, %v1296
    %v1301 = vadd.f32 %v1289, %v1297
    %v1302 = vlaneseq
    %v1303 = vshrl.u32 %v1302, 7
    %v1304 = vsub.s32 5, %v1303
    %v1305 = vrot.slane %v887, %v1304
    %v1306 = vmul.f32 %v1168, %v1305
    %v1307 = vmul.f32 %v1173, %v1305
    %v1308 = vmul.f32 %v1178, %v1305
    %v1309 = vmul.f32 %v1183, %v1305
    %v1310 = vadd.f32 %v1298, %v1306
    %v1311 = vadd.f32 %v1299, %v1307
    %v1312 = vadd.f32 %v1300, %v1308
    %v1313 = vadd.f32 %v1301, %v1309
    %v1314 = vlaneseq
    %v1315 = vshrl.u32 %v1314, 7
    %v1316 = vsub.s32 6, %v1315
    %v1317 = vrot.slane %v887, %v1316
    %v1318 = vmul.f32 %v1188, %v1317
    %v1319 = vmul.f32 %v1193, %v1317
    %v1320 = vmul.f32 %v1198, %v1317
    %v1321 = vmul.f32 %v1203, %v1317
    %v1322 = vadd.f32 %v1310, %v1318
    %v1323 = vadd.f32 %v1311, %v1319
    %v1324 = vadd.f32 %v1312, %v1320
    %v1325 = vadd.f32 %v1313, %v1321
    %v1326 = vlaneseq
    %v1327 = vshrl.u32 %v1326, 7
    %v1328 = vsub.s32 7, %v1327
    %v1329 = vrot.slane %v887, %v1328
    %v1330 = vmul.f32 %v1208, %v1329
    %v1331 = vmul.f32 %v1213, %v1329
    %v1332 = vmul.f32 %v1218, %v1329
    %v1333 = vmul.f32 %v1223, %v1329
    %v1334 = vadd.f32 %v1322, %v1330
    %v1335 = vadd.f32 %v1323, %v1331
    %v1336 = vadd.f32 %v1324, %v1332
    %v1337 = vadd.f32 %v1325, %v1333
    %v1338 = vlaneseq
    %v1339 = vshrl.u32 %v1338, 7
    %v1340 = vsub.s32 0, %v1339
    %v1341 = vrot.slane %v888, %v1340
    %v1342 = vmul.f32 %v1228, %v1341
    %v1343 = vmul.f32 %v1233, %v1341
    %v1344 = vmul.f32 %v1238, %v1341
    %v1345 = vmul.f32 %v1243, %v1341
    %v1346 = vadd.f32 %v1334, %v1342
    %v1347 = vadd.f32 %v1335, %v1343
    %v1348 = vadd.f32 %v1336, %v1344
    %v1349 = vadd.f32 %v1337, %v1345
    %v1351 = vsel %vm390, %v1346, 0
    %v1354 = vsel %vm390, %v1347, 0
    %v1357 = vsel %vm390, %v1348, 0
    %v1360 = vsel %vm390, %v1349, 0
    %1362 = vmatprep.subr.mxu0 0.0
    %1363 = vmatpush1.msra.mxu0 %v889
    %1364 = vmatprep.subr.mxu0 0.0
    %1365 = vmatpush1.msra.mxu0 %v890
    %1366 = vmatprep.subr.mxu0 0.0
    %1367 = vmatpush1.msra.mxu0 %v891
    %1368 = vmatprep.subr.mxu0 0.0
    %1369 = vmatpush1.msra.mxu0 %v892
    %1370 = vmatprep.subr.mxu0 0.0
    %1371 = vmatpush1.msra.mxu0 0.0
    %1372 = vmatprep.subr.mxu0 0.0
    %1373 = vmatpush1.msra.mxu0 0.0
    %1374 = vmatprep.subr.mxu0 0.0
    %1375 = vmatpush1.msra.mxu0 0.0
    %1376 = vmatprep.subr.mxu0 0.0
    %1377 = vmatpush1.msra.mxu0 0.0
    %1378 = vmatprep.subr.mxu0 0.0
    %1379 = vmatpush1.msra.mxu0 0.0
    %1380 = vmatprep.subr.mxu0 0.0
    %1381 = vmatpush1.msra.mxu0 0.0
    %1382 = vmatprep.subr.mxu0 0.0
    %1383 = vmatpush1.msra.mxu0 0.0
    %1384 = vmatprep.subr.mxu0 0.0
    %1385 = vmatpush1.msra.mxu0 0.0
    %1386 = vmatprep.subr.mxu0 0.0
    %1387 = vmatpush1.msra.mxu0 0.0
    %1388 = vmatprep.subr.mxu0 0.0
    %1389 = vmatpush1.msra.mxu0 0.0
    %1390 = vmatprep.subr.mxu0 0.0
    %1391 = vmatpush1.msra.mxu0 0.0
    %1392 = vmatprep.subr.mxu0 0.0
    %1393 = vmatpush1.msra.mxu0 0.0
    %1394 = vmatprep.subr.mxu0 0.0
    %1395 = vmatpush1.msra.mxu0 0.0
    %1396 = vmatprep.subr.mxu0 0.0
    %1397 = vmatpush1.msra.mxu0 0.0
    %1398 = vmatprep.subr.mxu0 0.0
    %1399 = vmatpush1.msra.mxu0 0.0
    %1400 = vmatprep.subr.mxu0 0.0
    %1401 = vmatpush1.msra.mxu0 0.0
    %1402 = vmatprep.subr.mxu0 0.0
    %1403 = vmatpush1.msra.mxu0 0.0
    %1404 = vmatprep.subr.mxu0 0.0
    %1405 = vmatpush1.msra.mxu0 0.0
    %1406 = vmatprep.subr.mxu0 0.0
    %1407 = vmatpush1.msra.mxu0 0.0
    %1408 = vmatprep.subr.mxu0 0.0
    %1409 = vmatpush1.msra.mxu0 0.0
    %1410 = vmatprep.subr.mxu0 0.0
    %1411 = vmatpush1.msra.mxu0 0.0
    %1412 = vmatprep.subr.mxu0 0.0
    %1413 = vmatpush1.msra.mxu0 0.0
    %1414 = vmatprep.subr.mxu0 0.0
    %1415 = vmatpush1.msra.mxu0 0.0
    %1416 = vmatprep.subr.mxu0 0.0
    %1417 = vmatpush1.msra.mxu0 0.0
    %1418 = vmatprep.subr.mxu0 0.0
    %1419 = vmatpush1.msra.mxu0 0.0
    %1420 = vmatprep.subr.mxu0 0.0
    %1421 = vmatpush1.msra.mxu0 0.0
    %1422 = vmatprep.subr.mxu0 0.0
    %1423 = vmatpush1.msra.mxu0 0.0
    %1424 = vmatprep.subr.mxu0 0.0
    %1425 = vmatpush1.msra.mxu0 0.0
    %1426 = vmatprep.mubr.f32.mxu0 0.0
    %1427 = vmatmul.mubr.f32.gmra.mrb[0].mxu0 %v1351
    %v1428 = vpop.f32.mrb[0].mxu0
    %v1429 = vadd.f32 0.0, %v1428
    %v1430 = vpop.f32.mrb[0].mxu0
    %1431 = vmatprep.mubr.f32.mxu0 0.0
    %1432 = vmatmul.mubr.f32.gmra.mrb[0].mxu0 %v1354
    %v1433 = vpop.f32.mrb[0].mxu0
    %v1434 = vadd.f32 0.0, %v1433
    %v1435 = vpop.f32.mrb[0].mxu0
    %1436 = vmatprep.mubr.f32.mxu0 0.0
    %1437 = vmatmul.mubr.f32.gmra.mrb[0].mxu0 %v1357
    %v1438 = vpop.f32.mrb[0].mxu0
    %v1439 = vadd.f32 0.0, %v1438
    %v1440 = vpop.f32.mrb[0].mxu0
    %1441 = vmatprep.mubr.f32.mxu0 0.0
    %1442 = vmatmul.mubr.f32.gmra.mrb[0].mxu0 %v1360
    %v1443 = vpop.f32.mrb[0].mxu0
    %v1444 = vadd.f32 0.0, %v1443
    %v1445 = vpop.f32.mrb[0].mxu0
    %1446 = vdwg.mxu0
    %v1447 = vmax.f32 %v1429, 0.0
    %v1448 = vmax.f32 %v1434, 0.0
    %v1449 = vmax.f32 %v1439, 0.0
    %v1450 = vmax.f32 %v1444, 0.0
    %v1451 = vld [vmem:[#allocation12] sm:$0xff]
    %v1452 = vld [vmem:[#allocation12 + $0x8] sm:$0xff]
    %v1453 = vld [vmem:[#allocation12 + $0x10] sm:$0xff]
    %v1454 = vld [vmem:[#allocation12 + $0x18] sm:$0xff]
    %v1455 = vld [vmem:[#allocation12 + $0x20] sm:$0xff]
    %v1456 = vld [vmem:[#allocation12 + $0x28] sm:$0xff]
    %v1457 = vld [vmem:[#allocation12 + $0x30] sm:$0xff]
    %v1458 = vld [vmem:[#allocation12 + $0x38] sm:$0xff]
    %v1459 = vld [vmem:[#allocation12 + $0x40] sm:$0xff]
    %v1460 = vld [vmem:[#allocation12 + $0x48] sm:$0xff]
    %v1461 = vld [vmem:[#allocation12 + $0x50] sm:$0xff]
    %v1462 = vld [vmem:[#allocation12 + $0x58] sm:$0xff]
    %v1463 = vld [vmem:[#allocation12 + $0x60] sm:$0xff]
    %v1464 = vld [vmem:[#allocation12 + $0x68] sm:$0xff]
    %v1465 = vld [vmem:[#allocation12 + $0x70] sm:$0xff]
    %v1466 = vld [vmem:[#allocation12 + $0x78] sm:$0xff]
    %v1467 = vld [vmem:[#allocation12 + $0x80] sm:$0xff]
    %v1468 = vld [vmem:[#allocation12 + $0x88] sm:$0xff]
    %v1469 = vld [vmem:[#allocation12 + $0x90] sm:$0xff]
    %v1470 = vld [vmem:[#allocation12 + $0x98] sm:$0xff]
    %v1471 = vld [vmem:[#allocation12 + $0xa0] sm:$0xff]
    %v1472 = vld [vmem:[#allocation12 + $0xa8] sm:$0xff]
    %v1473 = vld [vmem:[#allocation12 + $0xb0] sm:$0xff]
    %v1474 = vld [vmem:[#allocation12 + $0xb8] sm:$0xff]
    %v1475 = vld [vmem:[#allocation12 + $0xc0] sm:$0xff]
    %v1476 = vld [vmem:[#allocation12 + $0xc8] sm:$0xff]
    %v1477 = vld [vmem:[#allocation12 + $0xd0] sm:$0xff]
    %v1478 = vld [vmem:[#allocation12 + $0xd8] sm:$0xff]
    %v1479 = vld [vmem:[#allocation12 + $0xe0] sm:$0xff]
    %v1480 = vld [vmem:[#allocation12 + $0xe8] sm:$0xff]
    %v1481 = vld [vmem:[#allocation12 + $0xf0] sm:$0xff]
    %v1482 = vld [vmem:[#allocation12 + $0xf8] sm:$0xff]
    %v1483 = vld [vmem:[#allocation12 + $0x100] sm:$0xff]
    %v1484 = vld [vmem:[#allocation12 + $0x108] sm:$0xff]
    %v1485 = vld [vmem:[#allocation12 + $0x110] sm:$0xff]
    %v1486 = vld [vmem:[#allocation12 + $0x118] sm:$0xff]
    %v1487 = vld [vmem:[#allocation12 + $0x120] sm:$0xff]
    %v1488 = vld [vmem:[#allocation12 + $0x128] sm:$0xff]
    %v1489 = vld [vmem:[#allocation12 + $0x130] sm:$0xff]
    %v1490 = vld [vmem:[#allocation12 + $0x138] sm:$0xff]
    %v1491 = vld [vmem:[#allocation12 + $0x140] sm:$0xff]
    %v1492 = vld [vmem:[#allocation12 + $0x148] sm:$0xff]
    %v1493 = vld [vmem:[#allocation12 + $0x150] sm:$0xff]
    %v1494 = vld [vmem:[#allocation12 + $0x158] sm:$0xff]
    %v1495 = vld [vmem:[#allocation12 + $0x160] sm:$0xff]
    %v1496 = vld [vmem:[#allocation12 + $0x168] sm:$0xff]
    %v1497 = vld [vmem:[#allocation12 + $0x170] sm:$0xff]
    %v1498 = vld [vmem:[#allocation12 + $0x178] sm:$0xff]
    %v1499 = vld [vmem:[#allocation12 + $0x180] sm:$0xff]
    %v1500 = vld [vmem:[#allocation12 + $0x188] sm:$0xff]
    %v1501 = vld [vmem:[#allocation12 + $0x190] sm:$0xff]
    %v1502 = vld [vmem:[#allocation12 + $0x198] sm:$0xff]
    %v1503 = vld [vmem:[#allocation12 + $0x1a0] sm:$0xff]
    %v1504 = vld [vmem:[#allocation12 + $0x1a8] sm:$0xff]
    %v1505 = vld [vmem:[#allocation12 + $0x1b0] sm:$0xff]
    %v1506 = vld [vmem:[#allocation12 + $0x1b8] sm:$0xff]
    %v1507 = vld [vmem:[#allocation12 + $0x1c0] sm:$0xff]
    %v1508 = vld [vmem:[#allocation12 + $0x1c8] sm:$0xff]
    %v1509 = vld [vmem:[#allocation12 + $0x1d0] sm:$0xff]
    %v1510 = vld [vmem:[#allocation12 + $0x1d8] sm:$0xff]
    %v1511 = vld [vmem:[#allocation12 + $0x1e0] sm:$0xff]
    %v1512 = vld [vmem:[#allocation12 + $0x1e8] sm:$0xff]
    %v1513 = vld [vmem:[#allocation12 + $0x1f0] sm:$0xff]
    %v1514 = vld [vmem:[#allocation12 + $0x1f8] sm:$0xff]
    %v1515 = vld [vmem:[#allocation12 + $0x200] sm:$0xff]
    %v1516 = vld [vmem:[#allocation12 + $0x208] sm:$0xff]
    %v1517 = vld [vmem:[#allocation12 + $0x210] sm:$0xff]
    %v1518 = vld [vmem:[#allocation12 + $0x218] sm:$0xff]
    %v1519 = vld [vmem:[#allocation12 + $0x220] sm:$0xff]
    %v1520 = vld [vmem:[#allocation12 + $0x228] sm:$0xff]
    %v1521 = vld [vmem:[#allocation12 + $0x230] sm:$0xff]
    %v1522 = vld [vmem:[#allocation12 + $0x238] sm:$0xff]
    %v1523 = vld [vmem:[#allocation13] sm:$0xff]
    %v1524 = vld [vmem:[#allocation13 + $0x8] sm:$0x1]
    %v1525 = vld [vmem:[%s12] sm:$0xff]
    %v1526 = vld [vmem:[%s12 + $0x8] sm:$0xff]
    %v1527 = vld [vmem:[%s12 + $0x10] sm:$0xff]
    %v1528 = vld [vmem:[%s12 + $0x18] sm:$0xff]
    %v1530 = vsel %vm390, %v1451, 0
    %v1533 = vsel %vm390, %v1452, 0
    %v1536 = vsel %vm390, %v1453, 0
    %v1539 = vsel %vm390, %v1454, 0
    %v1542 = vsel %vm390, %v1455, 0
    %v1545 = vsel %vm390, %v1456, 0
    %v1548 = vsel %vm390, %v1457, 0
    %v1551 = vsel %vm390, %v1458, 0
    %v1554 = vsel %vm390, %v1459, 0
    %v1557 = vsel %vm390, %v1460, 0
    %v1560 = vsel %vm390, %v1461, 0
    %v1563 = vsel %vm390, %v1462, 0
    %v1566 = vsel %vm390, %v1463, 0
    %v1569 = vsel %vm390, %v1464, 0
    %v1572 = vsel %vm390, %v1465, 0
    %v1575 = vsel %vm390, %v1466, 0
    %v1578 = vsel %vm390, %v1467, 0
    %v1581 = vsel %vm390, %v1468, 0
    %v1584 = vsel %vm390, %v1469, 0
    %v1587 = vsel %vm390, %v1470, 0
    %v1590 = vsel %vm390, %v1471, 0
    %v1593 = vsel %vm390, %v1472, 0
    %v1596 = vsel %vm390, %v1473, 0
    %v1599 = vsel %vm390, %v1474, 0
    %v1602 = vsel %vm390, %v1475, 0
    %v1605 = vsel %vm390, %v1476, 0
    %v1608 = vsel %vm390, %v1477, 0
    %v1611 = vsel %vm390, %v1478, 0
    %v1614 = vsel %vm390, %v1479, 0
    %v1617 = vsel %vm390, %v1480, 0
    %v1620 = vsel %vm390, %v1481, 0
    %v1623 = vsel %vm390, %v1482, 0
    %v1626 = vsel %vm390, %v1483, 0
    %v1629 = vsel %vm390, %v1484, 0
    %v1632 = vsel %vm390, %v1485, 0
    %v1635 = vsel %vm390, %v1486, 0
    %v1638 = vsel %vm390, %v1487, 0
    %v1641 = vsel %vm390, %v1488, 0
    %v1644 = vsel %vm390, %v1489, 0
    %v1647 = vsel %vm390, %v1490, 0
    %v1650 = vsel %vm390, %v1491, 0
    %v1653 = vsel %vm390, %v1492, 0
    %v1656 = vsel %vm390, %v1493, 0
    %v1659 = vsel %vm390, %v1494, 0
    %v1662 = vsel %vm390, %v1495, 0
    %v1665 = vsel %vm390, %v1496, 0
    %v1668 = vsel %vm390, %v1497, 0
    %v1671 = vsel %vm390, %v1498, 0
    %v1674 = vsel %vm390, %v1499, 0
    %v1677 = vsel %vm390, %v1500, 0
    %v1680 = vsel %vm390, %v1501, 0
    %v1683 = vsel %vm390, %v1502, 0
    %v1686 = vsel %vm390, %v1503, 0
    %v1689 = vsel %vm390, %v1504, 0
    %v1692 = vsel %vm390, %v1505, 0
    %v1695 = vsel %vm390, %v1506, 0
    %v1698 = vsel %vm390, %v1507, 0
    %v1701 = vsel %vm390, %v1508, 0
    %v1704 = vsel %vm390, %v1509, 0
    %v1707 = vsel %vm390, %v1510, 0
    %v1710 = vsel %vm390, %v1511, 0
    %v1713 = vsel %vm390, %v1512, 0
    %v1716 = vsel %vm390, %v1513, 0
    %v1719 = vsel %vm390, %v1514, 0
    %v1722 = vsel %vm390, %v1515, 0
    %v1725 = vsel %vm390, %v1516, 0
    %v1728 = vsel %vm390, %v1517, 0
    %v1731 = vsel %vm390, %v1518, 0
    %v1734 = vsel %vm390, %v1519, 0
    %v1737 = vsel %vm390, %v1520, 0
    %v1740 = vsel %vm390, %v1521, 0
    %v1743 = vsel %vm390, %v1522, 0
    %1745 = vmatprep.subr.mxu0 0.0
    %1746 = vmatpush1.msra.mxu0 %v1447
    %1747 = vmatprep.subr.mxu0 0.0
    %1748 = vmatpush1.msra.mxu0 %v1448
    %1749 = vmatprep.subr.mxu0 0.0
    %1750 = vmatpush1.msra.mxu0 %v1449
    %1751 = vmatprep.subr.mxu0 0.0
    %1752 = vmatpush1.msra.mxu0 %v1450
    %1753 = vmatprep.subr.mxu0 0.0
    %1754 = vmatpush1.msra.mxu0 0.0
    %1755 = vmatprep.subr.mxu0 0.0
    %1756 = vmatpush1.msra.mxu0 0.0
    %1757 = vmatprep.subr.mxu0 0.0
    %1758 = vmatpush1.msra.mxu0 0.0
    %1759 = vmatprep.subr.mxu0 0.0
    %1760 = vmatpush1.msra.mxu0 0.0
    %1761 = vmatprep.subr.mxu0 0.0
    %1762 = vmatpush1.msra.mxu0 0.0
    %1763 = vmatprep.subr.mxu0 0.0
    %1764 = vmatpush1.msra.mxu0 0.0
    %1765 = vmatprep.subr.mxu0 0.0
    %1766 = vmatpush1.msra.mxu0 0.0
    %1767 = vmatprep.subr.mxu0 0.0
    %1768 = vmatpush1.msra.mxu0 0.0
    %1769 = vmatprep.subr.mxu0 0.0
    %1770 = vmatpush1.msra.mxu0 0.0
    %1771 = vmatprep.subr.mxu0 0.0
    %1772 = vmatpush1.msra.mxu0 0.0
    %1773 = vmatprep.subr.mxu0 0.0
    %1774 = vmatpush1.msra.mxu0 0.0
    %1775 = vmatprep.subr.mxu0 0.0
    %1776 = vmatpush1.msra.mxu0 0.0
    %1777 = vmatprep.subr.mxu0 0.0
    %1778 = vmatpush1.msra.mxu0 0.0
    %1779 = vmatprep.subr.mxu0 0.0
    %1780 = vmatpush1.msra.mxu0 0.0
    %1781 = vmatprep.subr.mxu0 0.0
    %1782 = vmatpush1.msra.mxu0 0.0
    %1783 = vmatprep.subr.mxu0 0.0
    %1784 = vmatpush1.msra.mxu0 0.0
    %1785 = vmatprep.subr.mxu0 0.0
    %1786 = vmatpush1.msra.mxu0 0.0
    %1787 = vmatprep.subr.mxu0 0.0
    %1788 = vmatpush1.msra.mxu0 0.0
    %1789 = vmatprep.subr.mxu0 0.0
    %1790 = vmatpush1.msra.mxu0 0.0
    %1791 = vmatprep.subr.mxu0 0.0
    %1792 = vmatpush1.msra.mxu0 0.0
    %1793 = vmatprep.subr.mxu0 0.0
    %1794 = vmatpush1.msra.mxu0 0.0
    %1795 = vmatprep.subr.mxu0 0.0
    %1796 = vmatpush1.msra.mxu0 0.0
    %1797 = vmatprep.subr.mxu0 0.0
    %1798 = vmatpush1.msra.mxu0 0.0
    %1799 = vmatprep.subr.mxu0 0.0
    %1800 = vmatpush1.msra.mxu0 0.0
    %1801 = vmatprep.subr.mxu0 0.0
    %1802 = vmatpush1.msra.mxu0 0.0
    %1803 = vmatprep.subr.mxu0 0.0
    %1804 = vmatpush1.msra.mxu0 0.0
    %1805 = vmatprep.subr.mxu0 0.0
    %1806 = vmatpush1.msra.mxu0 0.0
    %1807 = vmatprep.subr.mxu0 0.0
    %1808 = vmatpush1.msra.mxu0 0.0
    %1809 = vmatprep.mubr.f32.mxu0 0.0
    %1810 = vmatmul.mubr.f32.gmra.mrb[0].mxu0 %v1530
    %v1811 = vpop.f32.mrb[0].mxu0
    %v1812 = vadd.f32 0.0, %v1811
    %v1813 = vpop.f32.mrb[0].mxu0
    %1814 = vmatprep.mubr.f32.mxu0 0.0
    %1815 = vmatmul.mubr.f32.gmra.mrb[0].mxu0 %v1533
    %v1816 = vpop.f32.mrb[0].mxu0
    %v1817 = vadd.f32 0.0, %v1816
    %v1818 = vpop.f32.mrb[0].mxu0
    %1819 = vmatprep.mubr.f32.mxu0 0.0
    %1820 = vmatmul.mubr.f32.gmra.mrb[0].mxu0 %v1536
    %v1821 = vpop.f32.mrb[0].mxu0
    %v1822 = vadd.f32 0.0, %v1821
    %v1823 = vpop.f32.mrb[0].mxu0
    %1824 = vmatprep.mubr.f32.mxu0 0.0
    %1825 = vmatmul.mubr.f32.gmra.mrb[0].mxu0 %v1539
    %v1826 = vpop.f32.mrb[0].mxu0
    %v1827 = vadd.f32 0.0, %v1826
    %v1828 = vpop.f32.mrb[0].mxu0
    %1829 = vmatprep.mubr.f32.mxu0 0.0
    %1830 = vmatmul.mubr.f32.gmra.mrb[0].mxu0 %v1542
    %v1831 = vpop.f32.mrb[0].mxu0
    %v1832 = vadd.f32 0.0, %v1831
    %v1833 = vpop.f32.mrb[0].mxu0
    %1834 = vmatprep.mubr.f32.mxu0 0.0
    %1835 = vmatmul.mubr.f32.gmra.mrb[0].mxu0 %v1545
    %v1836 = vpop.f32.mrb[0].mxu0
    %v1837 = vadd.f32 0.0, %v1836
    %v1838 = vpop.f32.mrb[0].mxu0
    %1839 = vmatprep.mubr.f32.mxu0 0.0
    %1840 = vmatmul.mubr.f32.gmra.mrb[0].mxu0 %v1548
    %v1841 = vpop.f32.mrb[0].mxu0
    %v1842 = vadd.f32 0.0, %v1841
    %v1843 = vpop.f32.mrb[0].mxu0
    %1844 = vmatprep.mubr.f32.mxu0 0.0
    %1845 = vmatmul.mubr.f32.gmra.mrb[0].mxu0 %v1551
    %v1846 = vpop.f32.mrb[0].mxu0
    %v1847 = vadd.f32 0.0, %v1846
    %v1848 = vpop.f32.mrb[0].mxu0
    %1849 = vmatprep.mubr.f32.mxu0 0.0
    %1850 = vmatmul.mubr.f32.gmra.mrb[0].mxu0 %v1554
    %v1851 = vpop.f32.mrb[0].mxu0
    %v1852 = vadd.f32 0.0, %v1851
    %v1853 = vpop.f32.mrb[0].mxu0
    %1854 = vmatprep.mubr.f32.mxu0 0.0
    %1855 = vmatmul.mubr.f32.gmra.mrb[0].mxu0 %v1557
    %v1856 = vpop.f32.mrb[0].mxu0
    %v1857 = vadd.f32 0.0, %v1856
    %v1858 = vpop.f32.mrb[0].mxu0
    %1859 = vmatprep.mubr.f32.mxu0 0.0
    %1860 = vmatmul.mubr.f32.gmra.mrb[0].mxu0 %v1560
    %v1861 = vpop.f32.mrb[0].mxu0
    %v1862 = vadd.f32 0.0, %v1861
    %v1863 = vpop.f32.mrb[0].mxu0
    %1864 = vmatprep.mubr.f32.mxu0 0.0
    %1865 = vmatmul.mubr.f32.gmra.mrb[0].mxu0 %v1563
    %v1866 = vpop.f32.mrb[0].mxu0
    %v1867 = vadd.f32 0.0, %v1866
    %v1868 = vpop.f32.mrb[0].mxu0
    %1869 = vmatprep.mubr.f32.mxu0 0.0
    %1870 = vmatmul.mubr.f32.gmra.mrb[0].mxu0 %v1566
    %v1871 = vpop.f32.mrb[0].mxu0
    %v1872 = vadd.f32 0.0, %v1871
    %v1873 = vpop.f32.mrb[0].mxu0
    %1874 = vmatprep.mubr.f32.mxu0 0.0
    %1875 = vmatmul.mubr.f32.gmra.mrb[0].mxu0 %v1569
    %v1876 = vpop.f32.mrb[0].mxu0
    %v1877 = vadd.f32 0.0, %v1876
    %v1878 = vpop.f32.mrb[0].mxu0
    %1879 = vmatprep.mubr.f32.mxu0 0.0
    %1880 = vmatmul.mubr.f32.gmra.mrb[0].mxu0 %v1572
    %v1881 = vpop.f32.mrb[0].mxu0
    %v1882 = vadd.f32 0.0, %v1881
    %v1883 = vpop.f32.mrb[0].mxu0
    %1884 = vmatprep.mubr.f32.mxu0 0.0
    %1885 = vmatmul.mubr.f32.gmra.mrb[0].mxu0 %v1575
    %v1886 = vpop.f32.mrb[0].mxu0
    %v1887 = vadd.f32 0.0, %v1886
    %v1888 = vpop.f32.mrb[0].mxu0
    %1889 = vmatprep.mubr.f32.mxu0 0.0
    %1890 = vmatmul.mubr.f32.gmra.mrb[0].mxu0 %v1578
    %v1891 = vpop.f32.mrb[0].mxu0
    %v1892 = vadd.f32 0.0, %v1891
    %v1893 = vpop.f32.mrb[0].mxu0
    %1894 = vmatprep.mubr.f32.mxu0 0.0
    %1895 = vmatmul.mubr.f32.gmra.mrb[0].mxu0 %v1581
    %v1896 = vpop.f32.mrb[0].mxu0
    %v1897 = vadd.f32 0.0, %v1896
    %v1898 = vpop.f32.mrb[0].mxu0
    %1899 = vmatprep.mubr.f32.mxu0 0.0
    %1900 = vmatmul.mubr.f32.gmra.mrb[0].mxu0 %v1584
    %v1901 = vpop.f32.mrb[0].mxu0
    %v1902 = vadd.f32 0.0, %v1901
    %v1903 = vpop.f32.mrb[0].mxu0
    %1904 = vmatprep.mubr.f32.mxu0 0.0
    %1905 = vmatmul.mubr.f32.gmra.mrb[0].mxu0 %v1587
    %v1906 = vpop.f32.mrb[0].mxu0
    %v1907 = vadd.f32 0.0, %v1906
    %v1908 = vpop.f32.mrb[0].mxu0
    %1909 = vmatprep.mubr.f32.mxu0 0.0
    %1910 = vmatmul.mubr.f32.gmra.mrb[0].mxu0 %v1590
    %v1911 = vpop.f32.mrb[0].mxu0
    %v1912 = vadd.f32 0.0, %v1911
    %v1913 = vpop.f32.mrb[0].mxu0
    %1914 = vmatprep.mubr.f32.mxu0 0.0
    %1915 = vmatmul.mubr.f32.gmra.mrb[0].mxu0 %v1593
    %v1916 = vpop.f32.mrb[0].mxu0
    %v1917 = vadd.f32 0.0, %v1916
    %v1918 = vpop.f32.mrb[0].mxu0
    %1919 = vmatprep.mubr.f32.mxu0 0.0
    %1920 = vmatmul.mubr.f32.gmra.mrb[0].mxu0 %v1596
    %v1921 = vpop.f32.mrb[0].mxu0
    %v1922 = vadd.f32 0.0, %v1921
    %v1923 = vpop.f32.mrb[0].mxu0
    %1924 = vmatprep.mubr.f32.mxu0 0.0
    %1925 = vmatmul.mubr.f32.gmra.mrb[0].mxu0 %v1599
    %v1926 = vpop.f32.mrb[0].mxu0
    %v1927 = vadd.f32 0.0, %v1926
    %v1928 = vpop.f32.mrb[0].mxu0
    %1929 = vmatprep.mubr.f32.mxu0 0.0
    %1930 = vmatmul.mubr.f32.gmra.mrb[0].mxu0 %v1602
    %v1931 = vpop.f32.mrb[0].mxu0
    %v1932 = vadd.f32 0.0, %v1931
    %v1933 = vpop.f32.mrb[0].mxu0
    %1934 = vmatprep.mubr.f32.mxu0 0.0
    %1935 = vmatmul.mubr.f32.gmra.mrb[0].mxu0 %v1605
    %v1936 = vpop.f32.mrb[0].mxu0
    %v1937 = vadd.f32 0.0, %v1936
    %v1938 = vpop.f32.mrb[0].mxu0
    %1939 = vmatprep.mubr.f32.mxu0 0.0
    %1940 = vmatmul.mubr.f32.gmra.mrb[0].mxu0 %v1608
    %v1941 = vpop.f32.mrb[0].mxu0
    %v1942 = vadd.f32 0.0, %v1941
    %v1943 = vpop.f32.mrb[0].mxu0
    %1944 = vmatprep.mubr.f32.mxu0 0.0
    %1945 = vmatmul.mubr.f32.gmra.mrb[0].mxu0 %v1611
    %v1946 = vpop.f32.mrb[0].mxu0
    %v1947 = vadd.f32 0.0, %v1946
    %v1948 = vpop.f32.mrb[0].mxu0
    %1949 = vmatprep.mubr.f32.mxu0 0.0
    %1950 = vmatmul.mubr.f32.gmra.mrb[0].mxu0 %v1614
    %v1951 = vpop.f32.mrb[0].mxu0
    %v1952 = vadd.f32 0.0, %v1951
    %v1953 = vpop.f32.mrb[0].mxu0
    %1954 = vmatprep.mubr.f32.mxu0 0.0
    %1955 = vmatmul.mubr.f32.gmra.mrb[0].mxu0 %v1617
    %v1956 = vpop.f32.mrb[0].mxu0
    %v1957 = vadd.f32 0.0, %v1956
    %v1958 = vpop.f32.mrb[0].mxu0
    %1959 = vmatprep.mubr.f32.mxu0 0.0
    %1960 = vmatmul.mubr.f32.gmra.mrb[0].mxu0 %v1620
    %v1961 = vpop.f32.mrb[0].mxu0
    %v1962 = vadd.f32 0.0, %v1961
    %v1963 = vpop.f32.mrb[0].mxu0
    %1964 = vmatprep.mubr.f32.mxu0 0.0
    %1965 = vmatmul.mubr.f32.gmra.mrb[0].mxu0 %v1623
    %v1966 = vpop.f32.mrb[0].mxu0
    %v1967 = vadd.f32 0.0, %v1966
    %v1968 = vpop.f32.mrb[0].mxu0
    %1969 = vmatprep.mubr.f32.mxu0 0.0
    %1970 = vmatmul.mubr.f32.gmra.mrb[0].mxu0 %v1626
    %v1971 = vpop.f32.mrb[0].mxu0
    %v1972 = vadd.f32 0.0, %v1971
    %v1973 = vpop.f32.mrb[0].mxu0
    %1974 = vmatprep.mubr.f32.mxu0 0.0
    %1975 = vmatmul.mubr.f32.gmra.mrb[0].mxu0 %v1629
    %v1976 = vpop.f32.mrb[0].mxu0
    %v1977 = vadd.f32 0.0, %v1976
    %v1978 = vpop.f32.mrb[0].mxu0
    %1979 = vmatprep.mubr.f32.mxu0 0.0
    %1980 = vmatmul.mubr.f32.gmra.mrb[0].mxu0 %v1632
    %v1981 = vpop.f32.mrb[0].mxu0
    %v1982 = vadd.f32 0.0, %v1981
    %v1983 = vpop.f32.mrb[0].mxu0
    %1984 = vmatprep.mubr.f32.mxu0 0.0
    %1985 = vmatmul.mubr.f32.gmra.mrb[0].mxu0 %v1635
    %v1986 = vpop.f32.mrb[0].mxu0
    %v1987 = vadd.f32 0.0, %v1986
    %v1988 = vpop.f32.mrb[0].mxu0
    %1989 = vmatprep.mubr.f32.mxu0 0.0
    %1990 = vmatmul.mubr.f32.gmra.mrb[0].mxu0 %v1638
    %v1991 = vpop.f32.mrb[0].mxu0
    %v1992 = vadd.f32 0.0, %v1991
    %v1993 = vpop.f32.mrb[0].mxu0
    %1994 = vmatprep.mubr.f32.mxu0 0.0
    %1995 = vmatmul.mubr.f32.gmra.mrb[0].mxu0 %v1641
    %v1996 = vpop.f32.mrb[0].mxu0
    %v1997 = vadd.f32 0.0, %v1996
    %v1998 = vpop.f32.mrb[0].mxu0
    %1999 = vmatprep.mubr.f32.mxu0 0.0
    %2000 = vmatmul.mubr.f32.gmra.mrb[0].mxu0 %v1644
    %v2001 = vpop.f32.mrb[0].mxu0
    %v2002 = vadd.f32 0.0, %v2001
    %v2003 = vpop.f32.mrb[0].mxu0
    %2004 = vmatprep.mubr.f32.mxu0 0.0
    %2005 = vmatmul.mubr.f32.gmra.mrb[0].mxu0 %v1647
    %v2006 = vpop.f32.mrb[0].mxu0
    %v2007 = vadd.f32 0.0, %v2006
    %v2008 = vpop.f32.mrb[0].mxu0
    %2009 = vmatprep.mubr.f32.mxu0 0.0
    %2010 = vmatmul.mubr.f32.gmra.mrb[0].mxu0 %v1650
    %v2011 = vpop.f32.mrb[0].mxu0
    %v2012 = vadd.f32 0.0, %v2011
    %v2013 = vpop.f32.mrb[0].mxu0
    %2014 = vmatprep.mubr.f32.mxu0 0.0
    %2015 = vmatmul.mubr.f32.gmra.mrb[0].mxu0 %v1653
    %v2016 = vpop.f32.mrb[0].mxu0
    %v2017 = vadd.f32 0.0, %v2016
    %v2018 = vpop.f32.mrb[0].mxu0
    %2019 = vmatprep.mubr.f32.mxu0 0.0
    %2020 = vmatmul.mubr.f32.gmra.mrb[0].mxu0 %v1656
    %v2021 = vpop.f32.mrb[0].mxu0
    %v2022 = vadd.f32 0.0, %v2021
    %v2023 = vpop.f32.mrb[0].mxu0
    %2024 = vmatprep.mubr.f32.mxu0 0.0
    %2025 = vmatmul.mubr.f32.gmra.mrb[0].mxu0 %v1659
    %v2026 = vpop.f32.mrb[0].mxu0
    %v2027 = vadd.f32 0.0, %v2026
    %v2028 = vpop.f32.mrb[0].mxu0
    %2029 = vmatprep.mubr.f32.mxu0 0.0
    %2030 = vmatmul.mubr.f32.gmra.mrb[0].mxu0 %v1662
    %v2031 = vpop.f32.mrb[0].mxu0
    %v2032 = vadd.f32 0.0, %v2031
    %v2033 = vpop.f32.mrb[0].mxu0
    %2034 = vmatprep.mubr.f32.mxu0 0.0
    %2035 = vmatmul.mubr.f32.gmra.mrb[0].mxu0 %v1665
    %v2036 = vpop.f32.mrb[0].mxu0
    %v2037 = vadd.f32 0.0, %v2036
    %v2038 = vpop.f32.mrb[0].mxu0
    %2039 = vmatprep.mubr.f32.mxu0 0.0
    %2040 = vmatmul.mubr.f32.gmra.mrb[0].mxu0 %v1668
    %v2041 = vpop.f32.mrb[0].mxu0
    %v2042 = vadd.f32 0.0, %v2041
    %v2043 = vpop.f32.mrb[0].mxu0
    %2044 = vmatprep.mubr.f32.mxu0 0.0
    %2045 = vmatmul.mubr.f32.gmra.mrb[0].mxu0 %v1671
    %v2046 = vpop.f32.mrb[0].mxu0
    %v2047 = vadd.f32 0.0, %v2046
    %v2048 = vpop.f32.mrb[0].mxu0
    %2049 = vmatprep.mubr.f32.mxu0 0.0
    %2050 = vmatmul.mubr.f32.gmra.mrb[0].mxu0 %v1674
    %v2051 = vpop.f32.mrb[0].mxu0
    %v2052 = vadd.f32 0.0, %v2051
    %v2053 = vpop.f32.mrb[0].mxu0
    %2054 = vmatprep.mubr.f32.mxu0 0.0
    %2055 = vmatmul.mubr.f32.gmra.mrb[0].mxu0 %v1677
    %v2056 = vpop.f32.mrb[0].mxu0
    %v2057 = vadd.f32 0.0, %v2056
    %v2058 = vpop.f32.mrb[0].mxu0
    %2059 = vmatprep.mubr.f32.mxu0 0.0
    %2060 = vmatmul.mubr.f32.gmra.mrb[0].mxu0 %v1680
    %v2061 = vpop.f32.mrb[0].mxu0
    %v2062 = vadd.f32 0.0, %v2061
    %v2063 = vpop.f32.mrb[0].mxu0
    %2064 = vmatprep.mubr.f32.mxu0 0.0
    %2065 = vmatmul.mubr.f32.gmra.mrb[0].mxu0 %v1683
    %v2066 = vpop.f32.mrb[0].mxu0
    %v2067 = vadd.f32 0.0, %v2066
    %v2068 = vpop.f32.mrb[0].mxu0
    %2069 = vmatprep.mubr.f32.mxu0 0.0
    %2070 = vmatmul.mubr.f32.gmra.mrb[0].mxu0 %v1686
    %v2071 = vpop.f32.mrb[0].mxu0
    %v2072 = vadd.f32 0.0, %v2071
    %v2073 = vpop.f32.mrb[0].mxu0
    %2074 = vmatprep.mubr.f32.mxu0 0.0
    %2075 = vmatmul.mubr.f32.gmra.mrb[0].mxu0 %v1689
    %v2076 = vpop.f32.mrb[0].mxu0
    %v2077 = vadd.f32 0.0, %v2076
    %v2078 = vpop.f32.mrb[0].mxu0
    %2079 = vmatprep.mubr.f32.mxu0 0.0
    %2080 = vmatmul.mubr.f32.gmra.mrb[0].mxu0 %v1692
    %v2081 = vpop.f32.mrb[0].mxu0
    %v2082 = vadd.f32 0.0, %v2081
    %v2083 = vpop.f32.mrb[0].mxu0
    %2084 = vmatprep.mubr.f32.mxu0 0.0
    %2085 = vmatmul.mubr.f32.gmra.mrb[0].mxu0 %v1695
    %v2086 = vpop.f32.mrb[0].mxu0
    %v2087 = vadd.f32 0.0, %v2086
    %v2088 = vpop.f32.mrb[0].mxu0
    %2089 = vmatprep.mubr.f32.mxu0 0.0
    %2090 = vmatmul.mubr.f32.gmra.mrb[0].mxu0 %v1698
    %v2091 = vpop.f32.mrb[0].mxu0
    %v2092 = vadd.f32 0.0, %v2091
    %v2093 = vpop.f32.mrb[0].mxu0
    %2094 = vmatprep.mubr.f32.mxu0 0.0
    %2095 = vmatmul.mubr.f32.gmra.mrb[0].mxu0 %v1701
    %v2096 = vpop.f32.mrb[0].mxu0
    %v2097 = vadd.f32 0.0, %v2096
    %v2098 = vpop.f32.mrb[0].mxu0
    %2099 = vmatprep.mubr.f32.mxu0 0.0
    %2100 = vmatmul.mubr.f32.gmra.mrb[0].mxu0 %v1704
    %v2101 = vpop.f32.mrb[0].mxu0
    %v2102 = vadd.f32 0.0, %v2101
    %v2103 = vpop.f32.mrb[0].mxu0
    %2104 = vmatprep.mubr.f32.mxu0 0.0
    %2105 = vmatmul.mubr.f32.gmra.mrb[0].mxu0 %v1707
    %v2106 = vpop.f32.mrb[0].mxu0
    %v2107 = vadd.f32 0.0, %v2106
    %v2108 = vpop.f32.mrb[0].mxu0
    %2109 = vmatprep.mubr.f32.mxu0 0.0
    %2110 = vmatmul.mubr.f32.gmra.mrb[0].mxu0 %v1710
    %v2111 = vpop.f32.mrb[0].mxu0
    %v2112 = vadd.f32 0.0, %v2111
    %v2113 = vpop.f32.mrb[0].mxu0
    %2114 = vmatprep.mubr.f32.mxu0 0.0
    %2115 = vmatmul.mubr.f32.gmra.mrb[0].mxu0 %v1713
    %v2116 = vpop.f32.mrb[0].mxu0
    %v2117 = vadd.f32 0.0, %v2116
    %v2118 = vpop.f32.mrb[0].mxu0
    %2119 = vmatprep.mubr.f32.mxu0 0.0
    %2120 = vmatmul.mubr.f32.gmra.mrb[0].mxu0 %v1716
    %v2121 = vpop.f32.mrb[0].mxu0
    %v2122 = vadd.f32 0.0, %v2121
    %v2123 = vpop.f32.mrb[0].mxu0
    %2124 = vmatprep.mubr.f32.mxu0 0.0
    %2125 = vmatmul.mubr.f32.gmra.mrb[0].mxu0 %v1719
    %v2126 = vpop.f32.mrb[0].mxu0
    %v2127 = vadd.f32 0.0, %v2126
    %v2128 = vpop.f32.mrb[0].mxu0
    %2129 = vmatprep.mubr.f32.mxu0 0.0
    %2130 = vmatmul.mubr.f32.gmra.mrb[0].mxu0 %v1722
    %v2131 = vpop.f32.mrb[0].mxu0
    %v2132 = vadd.f32 0.0, %v2131
    %v2133 = vpop.f32.mrb[0].mxu0
    %2134 = vmatprep.mubr.f32.mxu0 0.0
    %2135 = vmatmul.mubr.f32.gmra.mrb[0].mxu0 %v1725
    %v2136 = vpop.f32.mrb[0].mxu0
    %v2137 = vadd.f32 0.0, %v2136
    %v2138 = vpop.f32.mrb[0].mxu0
    %2139 = vmatprep.mubr.f32.mxu0 0.0
    %2140 = vmatmul.mubr.f32.gmra.mrb[0].mxu0 %v1728
    %v2141 = vpop.f32.mrb[0].mxu0
    %v2142 = vadd.f32 0.0, %v2141
    %v2143 = vpop.f32.mrb[0].mxu0
    %2144 = vmatprep.mubr.f32.mxu0 0.0
    %2145 = vmatmul.mubr.f32.gmra.mrb[0].mxu0 %v1731
    %v2146 = vpop.f32.mrb[0].mxu0
    %v2147 = vadd.f32 0.0, %v2146
    %v2148 = vpop.f32.mrb[0].mxu0
    %2149 = vmatprep.mubr.f32.mxu0 0.0
    %2150 = vmatmul.mubr.f32.gmra.mrb[0].mxu0 %v1734
    %v2151 = vpop.f32.mrb[0].mxu0
    %v2152 = vadd.f32 0.0, %v2151
    %v2153 = vpop.f32.mrb[0].mxu0
    %2154 = vmatprep.mubr.f32.mxu0 0.0
    %2155 = vmatmul.mubr.f32.gmra.mrb[0].mxu0 %v1737
    %v2156 = vpop.f32.mrb[0].mxu0
    %v2157 = vadd.f32 0.0, %v2156
    %v2158 = vpop.f32.mrb[0].mxu0
    %2159 = vmatprep.mubr.f32.mxu0 0.0
    %2160 = vmatmul.mubr.f32.gmra.mrb[0].mxu0 %v1740
    %v2161 = vpop.f32.mrb[0].mxu0
    %v2162 = vadd.f32 0.0, %v2161
    %v2163 = vpop.f32.mrb[0].mxu0
    %2164 = vmatprep.mubr.f32.mxu0 0.0
    %2165 = vmatmul.mubr.f32.gmra.mrb[0].mxu0 %v1743
    %v2166 = vpop.f32.mrb[0].mxu0
    %v2167 = vadd.f32 0.0, %v2166
    %v2168 = vpop.f32.mrb[0].mxu0
    %2169 = vdwg.mxu0
    %v2170 = vlaneseq
    %v2171 = vshrl.u32 %v2170, 7
    %v2172 = vsub.s32 0, %v2171
    %v2173 = vrot.slane %v1523, %v2172
    %v2174 = vmul.f32 %v1812, %v2173
    %v2175 = vmul.f32 %v1817, %v2173
    %v2176 = vmul.f32 %v1822, %v2173
    %v2177 = vmul.f32 %v1827, %v2173
    %v2178 = vmul.f32 %v1832, %v2173
    %v2179 = vmul.f32 %v1837, %v2173
    %v2180 = vmul.f32 %v1842, %v2173
    %v2181 = vmul.f32 %v1847, %v2173
    %v2182 = vlaneseq
    %v2183 = vshrl.u32 %v2182, 7
    %v2184 = vsub.s32 1, %v2183
    %v2185 = vrot.slane %v1523, %v2184
    %v2186 = vmul.f32 %v1852, %v2185
    %v2187 = vmul.f32 %v1857, %v2185
    %v2188 = vmul.f32 %v1862, %v2185
    %v2189 = vmul.f32 %v1867, %v2185
    %v2190 = vmul.f32 %v1872, %v2185
    %v2191 = vmul.f32 %v1877, %v2185
    %v2192 = vmul.f32 %v1882, %v2185
    %v2193 = vmul.f32 %v1887, %v2185
    %v2194 = vadd.f32 %v2174, %v2186
    %v2195 = vadd.f32 %v2175, %v2187
    %v2196 = vadd.f32 %v2176, %v2188
    %v2197 = vadd.f32 %v2177, %v2189
    %v2198 = vadd.f32 %v2178, %v2190
    %v2199 = vadd.f32 %v2179, %v2191
    %v2200 = vadd.f32 %v2180, %v2192
    %v2201 = vadd.f32 %v2181, %v2193
    %v2202 = vlaneseq
    %v2203 = vshrl.u32 %v2202, 7
    %v2204 = vsub.s32 2, %v2203
    %v2205 = vrot.slane %v1523, %v2204
    %v2206 = vmul.f32 %v1892, %v2205
    %v2207 = vmul.f32 %v1897, %v2205
    %v2208 = vmul.f32 %v1902, %v2205
    %v2209 = vmul.f32 %v1907, %v2205
    %v2210 = vmul.f32 %v1912, %v2205
    %v2211 = vmul.f32 %v1917, %v2205
    %v2212 = vmul.f32 %v1922, %v2205
    %v2213 = vmul.f32 %v1927, %v2205
    %v2214 = vadd.f32 %v2194, %v2206
    %v2215 = vadd.f32 %v2195, %v2207
    %v2216 = vadd.f32 %v2196, %v2208
    %v2217 = vadd.f32 %v2197, %v2209
    %v2218 = vadd.f32 %v2198, %v2210
    %v2219 = vadd.f32 %v2199, %v2211
    %v2220 = vadd.f32 %v2200, %v2212
    %v2221 = vadd.f32 %v2201, %v2213
    %v2222 = vlaneseq
    %v2223 = vshrl.u32 %v2222, 7
    %v2224 = vsub.s32 3, %v2223
    %v2225 = vrot.slane %v1523, %v2224
    %v2226 = vmul.f32 %v1932, %v2225
    %v2227 = vmul.f32 %v1937, %v2225
    %v2228 = vmul.f32 %v1942, %v2225
    %v2229 = vmul.f32 %v1947, %v2225
    %v2230 = vmul.f32 %v1952, %v2225
    %v2231 = vmul.f32 %v1957, %v2225
    %v2232 = vmul.f32 %v1962, %v2225
    %v2233 = vmul.f32 %v1967, %v2225
    %v2234 = vadd.f32 %v2214, %v2226
    %v2235 = vadd.f32 %v2215, %v2227
    %v2236 = vadd.f32 %v2216, %v2228
    %v2237 = vadd.f32 %v2217, %v2229
    %v2238 = vadd.f32 %v2218, %v2230
    %v2239 = vadd.f32 %v2219, %v2231
    %v2240 = vadd.f32 %v2220, %v2232
    %v2241 = vadd.f32 %v2221, %v2233
    %v2242 = vlaneseq
    %v2243 = vshrl.u32 %v2242, 7
    %v2244 = vsub.s32 4, %v2243
    %v2245 = vrot.slane %v1523, %v2244
    %v2246 = vmul.f32 %v1972, %v2245
    %v2247 = vmul.f32 %v1977, %v2245
    %v2248 = vmul.f32 %v1982, %v2245
    %v2249 = vmul.f32 %v1987, %v2245
    %v2250 = vmul.f32 %v1992, %v2245
    %v2251 = vmul.f32 %v1997, %v2245
    %v2252 = vmul.f32 %v2002, %v2245
    %v2253 = vmul.f32 %v2007, %v2245
    %v2254 = vadd.f32 %v2234, %v2246
    %v2255 = vadd.f32 %v2235, %v2247
    %v2256 = vadd.f32 %v2236, %v2248
    %v2257 = vadd.f32 %v2237, %v2249
    %v2258 = vadd.f32 %v2238, %v2250
    %v2259 = vadd.f32 %v2239, %v2251
    %v2260 = vadd.f32 %v2240, %v2252
    %v2261 = vadd.f32 %v2241, %v2253
    %v2262 = vlaneseq
    %v2263 = vshrl.u32 %v2262, 7
    %v2264 = vsub.s32 5, %v2263
    %v2265 = vrot.slane %v1523, %v2264
    %v2266 = vmul.f32 %v2012, %v2265
    %v2267 = vmul.f32 %v2017, %v2265
    %v2268 = vmul.f32 %v2022, %v2265
    %v2269 = vmul.f32 %v2027, %v2265
    %v2270 = vmul.f32 %v2032, %v2265
    %v2271 = vmul.f32 %v2037, %v2265
    %v2272 = vmul.f32 %v2042, %v2265
    %v2273 = vmul.f32 %v2047, %v2265
    %v2274 = vadd.f32 %v2254, %v2266
    %v2275 = vadd.f32 %v2255, %v2267
    %v2276 = vadd.f32 %v2256, %v2268
    %v2277 = vadd.f32 %v2257, %v2269
    %v2278 = vadd.f32 %v2258, %v2270
    %v2279 = vadd.f32 %v2259, %v2271
    %v2280 = vadd.f32 %v2260, %v2272
    %v2281 = vadd.f32 %v2261, %v2273
    %v2282 = vlaneseq
    %v2283 = vshrl.u32 %v2282, 7
    %v2284 = vsub.s32 6, %v2283
    %v2285 = vrot.slane %v1523, %v2284
    %v2286 = vmul.f32 %v2052, %v2285
    %v2287 = vmul.f32 %v2057, %v2285
    %v2288 = vmul.f32 %v2062, %v2285
    %v2289 = vmul.f32 %v2067, %v2285
    %v2290 = vmul.f32 %v2072, %v2285
    %v2291 = vmul.f32 %v2077, %v2285
    %v2292 = vmul.f32 %v2082, %v2285
    %v2293 = vmul.f32 %v2087, %v2285
    %v2294 = vadd.f32 %v2274, %v2286
    %v2295 = vadd.f32 %v2275, %v2287
    %v2296 = vadd.f32 %v2276, %v2288
    %v2297 = vadd.f32 %v2277, %v2289
    %v2298 = vadd.f32 %v2278, %v2290
    %v2299 = vadd.f32 %v2279, %v2291
    %v2300 = vadd.f32 %v2280, %v2292
    %v2301 = vadd.f32 %v2281, %v2293
    %v2302 = vlaneseq
    %v2303 = vshrl.u32 %v2302, 7
    %v2304 = vsub.s32 7, %v2303
    %v2305 = vrot.slane %v1523, %v2304
    %v2306 = vmul.f32 %v2092, %v2305
    %v2307 = vmul.f32 %v2097, %v2305
    %v2308 = vmul.f32 %v2102, %v2305
    %v2309 = vmul.f32 %v2107, %v2305
    %v2310 = vmul.f32 %v2112, %v2305
    %v2311 = vmul.f32 %v2117, %v2305
    %v2312 = vmul.f32 %v2122, %v2305
    %v2313 = vmul.f32 %v2127, %v2305
    %v2314 = vadd.f32 %v2294, %v2306
    %v2315 = vadd.f32 %v2295, %v2307
    %v2316 = vadd.f32 %v2296, %v2308
    %v2317 = vadd.f32 %v2297, %v2309
    %v2318 = vadd.f32 %v2298, %v2310
    %v2319 = vadd.f32 %v2299, %v2311
    %v2320 = vadd.f32 %v2300, %v2312
    %v2321 = vadd.f32 %v2301, %v2313
    %v2322 = vlaneseq
    %v2323 = vshrl.u32 %v2322, 7
    %v2324 = vsub.s32 0, %v2323
    %v2325 = vrot.slane %v1524, %v2324
    %v2326 = vmul.f32 %v2132, %v2325
    %v2327 = vmul.f32 %v2137, %v2325
    %v2328 = vmul.f32 %v2142, %v2325
    %v2329 = vmul.f32 %v2147, %v2325
    %v2330 = vmul.f32 %v2152, %v2325
    %v2331 = vmul.f32 %v2157, %v2325
    %v2332 = vmul.f32 %v2162, %v2325
    %v2333 = vmul.f32 %v2167, %v2325
    %v2334 = vadd.f32 %v2314, %v2326
    %v2335 = vadd.f32 %v2315, %v2327
    %v2336 = vadd.f32 %v2316, %v2328
    %v2337 = vadd.f32 %v2317, %v2329
    %v2338 = vadd.f32 %v2318, %v2330
    %v2339 = vadd.f32 %v2319, %v2331
    %v2340 = vadd.f32 %v2320, %v2332
    %v2341 = vadd.f32 %v2321, %v2333
    %v2343 = vsel %vm390, %v2334, 0
    %v2346 = vsel %vm390, %v2335, 0
    %v2349 = vsel %vm390, %v2336, 0
    %v2352 = vsel %vm390, %v2337, 0
    %v2355 = vsel %vm390, %v2338, 0
    %v2358 = vsel %vm390, %v2339, 0
    %v2361 = vsel %vm390, %v2340, 0
    %v2364 = vsel %vm390, %v2341, 0
    %2366 = vmatprep.subr.mxu0 0.0
    %2367 = vmatpush1.msra.mxu0 %v1525
    %2368 = vmatprep.subr.mxu0 0.0
    %2369 = vmatpush1.msra.mxu0 %v1526
    %2370 = vmatprep.subr.mxu0 0.0
    %2371 = vmatpush1.msra.mxu0 %v1527
    %2372 = vmatprep.subr.mxu0 0.0
    %2373 = vmatpush1.msra.mxu0 %v1528
    %2374 = vmatprep.subr.mxu0 0.0
    %2375 = vmatpush1.msra.mxu0 0.0
    %2376 = vmatprep.subr.mxu0 0.0
    %2377 = vmatpush1.msra.mxu0 0.0
    %2378 = vmatprep.subr.mxu0 0.0
    %2379 = vmatpush1.msra.mxu0 0.0
    %2380 = vmatprep.subr.mxu0 0.0
    %2381 = vmatpush1.msra.mxu0 0.0
    %2382 = vmatprep.subr.mxu0 0.0
    %2383 = vmatpush1.msra.mxu0 0.0
    %2384 = vmatprep.subr.mxu0 0.0
    %2385 = vmatpush1.msra.mxu0 0.0
    %2386 = vmatprep.subr.mxu0 0.0
    %2387 = vmatpush1.msra.mxu0 0.0
    %2388 = vmatprep.subr.mxu0 0.0
    %2389 = vmatpush1.msra.mxu0 0.0
    %2390 = vmatprep.subr.mxu0 0.0
    %2391 = vmatpush1.msra.mxu0 0.0
    %2392 = vmatprep.subr.mxu0 0.0
    %2393 = vmatpush1.msra.mxu0 0.0
    %2394 = vmatprep.subr.mxu0 0.0
    %2395 = vmatpush1.msra.mxu0 0.0
    %2396 = vmatprep.subr.mxu0 0.0
    %2397 = vmatpush1.msra.mxu0 0.0
    %2398 = vmatprep.subr.mxu0 0.0
    %2399 = vmatpush1.msra.mxu0 0.0
    %2400 = vmatprep.subr.mxu0 0.0
    %2401 = vmatpush1.msra.mxu0 0.0
    %2402 = vmatprep.subr.mxu0 0.0
    %2403 = vmatpush1.msra.mxu0 0.0
    %2404 = vmatprep.subr.mxu0 0.0
    %2405 = vmatpush1.msra.mxu0 0.0
    %2406 = vmatprep.subr.mxu0 0.0
    %2407 = vmatpush1.msra.mxu0 0.0
    %2408 = vmatprep.subr.mxu0 0.0
    %2409 = vmatpush1.msra.mxu0 0.0
    %2410 = vmatprep.subr.mxu0 0.0
    %2411 = vmatpush1.msra.mxu0 0.0
    %2412 = vmatprep.subr.mxu0 0.0
    %2413 = vmatpush1.msra.mxu0 0.0
    %2414 = vmatprep.subr.mxu0 0.0
    %2415 = vmatpush1.msra.mxu0 0.0
    %2416 = vmatprep.subr.mxu0 0.0
    %2417 = vmatpush1.msra.mxu0 0.0
    %2418 = vmatprep.subr.mxu0 0.0
    %2419 = vmatpush1.msra.mxu0 0.0
    %2420 = vmatprep.subr.mxu0 0.0
    %2421 = vmatpush1.msra.mxu0 0.0
    %2422 = vmatprep.subr.mxu0 0.0
    %2423 = vmatpush1.msra.mxu0 0.0
    %2424 = vmatprep.subr.mxu0 0.0
    %2425 = vmatpush1.msra.mxu0 0.0
    %2426 = vmatprep.subr.mxu0 0.0
    %2427 = vmatpush1.msra.mxu0 0.0
    %2428 = vmatprep.subr.mxu0 0.0
    %2429 = vmatpush1.msra.mxu0 0.0
    %2430 = vmatprep.mubr.f32.mxu0 0.0
    %2431 = vmatmul.mubr.f32.gmra.mrb[0].mxu0 %v2343
    %v2432 = vpop.f32.mrb[0].mxu0
    %v2433 = vadd.f32 0.0, %v2432
    %v2434 = vpop.f32.mrb[0].mxu0
    %2435 = vmatprep.mubr.f32.mxu0 0.0
    %2436 = vmatmul.mubr.f32.gmra.mrb[0].mxu0 %v2346
    %v2437 = vpop.f32.mrb[0].mxu0
    %v2438 = vadd.f32 0.0, %v2437
    %v2439 = vpop.f32.mrb[0].mxu0
    %2440 = vmatprep.mubr.f32.mxu0 0.0
    %2441 = vmatmul.mubr.f32.gmra.mrb[0].mxu0 %v2349
    %v2442 = vpop.f32.mrb[0].mxu0
    %v2443 = vadd.f32 0.0, %v2442
    %v2444 = vpop.f32.mrb[0].mxu0
    %2445 = vmatprep.mubr.f32.mxu0 0.0
    %2446 = vmatmul.mubr.f32.gmra.mrb[0].mxu0 %v2352
    %v2447 = vpop.f32.mrb[0].mxu0
    %v2448 = vadd.f32 0.0, %v2447
    %v2449 = vpop.f32.mrb[0].mxu0
    %2450 = vmatprep.mubr.f32.mxu0 0.0
    %2451 = vmatmul.mubr.f32.gmra.mrb[0].mxu0 %v2355
    %v2452 = vpop.f32.mrb[0].mxu0
    %v2453 = vadd.f32 0.0, %v2452
    %v2454 = vpop.f32.mrb[0].mxu0
    %2455 = vmatprep.mubr.f32.mxu0 0.0
    %2456 = vmatmul.mubr.f32.gmra.mrb[0].mxu0 %v2358
    %v2457 = vpop.f32.mrb[0].mxu0
    %v2458 = vadd.f32 0.0, %v2457
    %v2459 = vpop.f32.mrb[0].mxu0
    %2460 = vmatprep.mubr.f32.mxu0 0.0
    %2461 = vmatmul.mubr.f32.gmra.mrb[0].mxu0 %v2361
    %v2462 = vpop.f32.mrb[0].mxu0
    %v2463 = vadd.f32 0.0, %v2462
    %v2464 = vpop.f32.mrb[0].mxu0
    %2465 = vmatprep.mubr.f32.mxu0 0.0
    %2466 = vmatmul.mubr.f32.gmra.mrb[0].mxu0 %v2364
    %v2467 = vpop.f32.mrb[0].mxu0
    %v2468 = vadd.f32 0.0, %v2467
    %v2469 = vpop.f32.mrb[0].mxu0
    %2470 = vdwg.mxu0
    %v2471 = vmax.f32 %v2433, 0.0
    %v2472 = vmax.f32 %v2438, 0.0
    %v2473 = vmax.f32 %v2443, 0.0
    %v2474 = vmax.f32 %v2448, 0.0
    %v2475 = vmax.f32 %v2453, 0.0
    %v2476 = vmax.f32 %v2458, 0.0
    %v2477 = vmax.f32 %v2463, 0.0
    %v2478 = vmax.f32 %v2468, 0.0
    %v2479 = vld [vmem:[#allocation15] sm:$0xff]
    %v2480 = vld [vmem:[#allocation15 + $0x8] sm:$0xff]
    %v2481 = vld [vmem:[#allocation15 + $0x10] sm:$0xff]
    %v2482 = vld [vmem:[#allocation15 + $0x18] sm:$0xff]
    %v2483 = vld [vmem:[#allocation15 + $0x20] sm:$0xff]
    %v2484 = vld [vmem:[#allocation15 + $0x28] sm:$0xff]
    %v2485 = vld [vmem:[#allocation15 + $0x30] sm:$0xff]
    %v2486 = vld [vmem:[#allocation15 + $0x38] sm:$0xff]
    %v2487 = vld [vmem:[#allocation15 + $0x40] sm:$0xff]
    %v2488 = vld [vmem:[#allocation15 + $0x48] sm:$0xff]
    %v2489 = vld [vmem:[#allocation15 + $0x50] sm:$0xff]
    %v2490 = vld [vmem:[#allocation15 + $0x58] sm:$0xff]
    %v2491 = vld [vmem:[#allocation15 + $0x60] sm:$0xff]
    %v2492 = vld [vmem:[#allocation15 + $0x68] sm:$0xff]
    %v2493 = vld [vmem:[#allocation15 + $0x70] sm:$0xff]
    %v2494 = vld [vmem:[#allocation15 + $0x78] sm:$0xff]
    %v2495 = vld [vmem:[#allocation15 + $0x80] sm:$0xff]
    %v2496 = vld [vmem:[#allocation15 + $0x88] sm:$0xff]
    %v2497 = vld [vmem:[#allocation15 + $0x90] sm:$0xff]
    %v2498 = vld [vmem:[#allocation15 + $0x98] sm:$0xff]
    %v2499 = vld [vmem:[#allocation15 + $0xa0] sm:$0xff]
    %v2500 = vld [vmem:[#allocation15 + $0xa8] sm:$0xff]
    %v2501 = vld [vmem:[#allocation15 + $0xb0] sm:$0xff]
    %v2502 = vld [vmem:[#allocation15 + $0xb8] sm:$0xff]
    %v2503 = vld [vmem:[#allocation15 + $0xc0] sm:$0xff]
    %v2504 = vld [vmem:[#allocation15 + $0xc8] sm:$0xff]
    %v2505 = vld [vmem:[#allocation15 + $0xd0] sm:$0xff]
    %v2506 = vld [vmem:[#allocation15 + $0xd8] sm:$0xff]
    %v2507 = vld [vmem:[#allocation15 + $0xe0] sm:$0xff]
    %v2508 = vld [vmem:[#allocation15 + $0xe8] sm:$0xff]
    %v2509 = vld [vmem:[#allocation15 + $0xf0] sm:$0xff]
    %v2510 = vld [vmem:[#allocation15 + $0xf8] sm:$0xff]
    %v2511 = vld [vmem:[#allocation15 + $0x100] sm:$0xff]
    %v2512 = vld [vmem:[#allocation15 + $0x108] sm:$0xff]
    %v2513 = vld [vmem:[#allocation15 + $0x110] sm:$0xff]
    %v2514 = vld [vmem:[#allocation15 + $0x118] sm:$0xff]
    %v2515 = vld [vmem:[#allocation15 + $0x120] sm:$0xff]
    %v2516 = vld [vmem:[#allocation15 + $0x128] sm:$0xff]
    %v2517 = vld [vmem:[#allocation15 + $0x130] sm:$0xff]
    %v2518 = vld [vmem:[#allocation15 + $0x138] sm:$0xff]
    %v2519 = vld [vmem:[#allocation15 + $0x140] sm:$0xff]
    %v2520 = vld [vmem:[#allocation15 + $0x148] sm:$0xff]
    %v2521 = vld [vmem:[#allocation15 + $0x150] sm:$0xff]
    %v2522 = vld [vmem:[#allocation15 + $0x158] sm:$0xff]
    %v2523 = vld [vmem:[#allocation15 + $0x160] sm:$0xff]
    %v2524 = vld [vmem:[#allocation15 + $0x168] sm:$0xff]
    %v2525 = vld [vmem:[#allocation15 + $0x170] sm:$0xff]
    %v2526 = vld [vmem:[#allocation15 + $0x178] sm:$0xff]
    %v2527 = vld [vmem:[#allocation15 + $0x180] sm:$0xff]
    %v2528 = vld [vmem:[#allocation15 + $0x188] sm:$0xff]
    %v2529 = vld [vmem:[#allocation15 + $0x190] sm:$0xff]
    %v2530 = vld [vmem:[#allocation15 + $0x198] sm:$0xff]
    %v2531 = vld [vmem:[#allocation15 + $0x1a0] sm:$0xff]
    %v2532 = vld [vmem:[#allocation15 + $0x1a8] sm:$0xff]
    %v2533 = vld [vmem:[#allocation15 + $0x1b0] sm:$0xff]
    %v2534 = vld [vmem:[#allocation15 + $0x1b8] sm:$0xff]
    %v2535 = vld [vmem:[#allocation15 + $0x1c0] sm:$0xff]
    %v2536 = vld [vmem:[#allocation15 + $0x1c8] sm:$0xff]
    %v2537 = vld [vmem:[#allocation15 + $0x1d0] sm:$0xff]
    %v2538 = vld [vmem:[#allocation15 + $0x1d8] sm:$0xff]
    %v2539 = vld [vmem:[#allocation15 + $0x1e0] sm:$0xff]
    %v2540 = vld [vmem:[#allocation15 + $0x1e8] sm:$0xff]
    %v2541 = vld [vmem:[#allocation15 + $0x1f0] sm:$0xff]
    %v2542 = vld [vmem:[#allocation15 + $0x1f8] sm:$0xff]
    %v2543 = vld [vmem:[#allocation15 + $0x200] sm:$0xff]
    %v2544 = vld [vmem:[#allocation15 + $0x208] sm:$0xff]
    %v2545 = vld [vmem:[#allocation15 + $0x210] sm:$0xff]
    %v2546 = vld [vmem:[#allocation15 + $0x218] sm:$0xff]
    %v2547 = vld [vmem:[#allocation15 + $0x220] sm:$0xff]
    %v2548 = vld [vmem:[#allocation15 + $0x228] sm:$0xff]
    %v2549 = vld [vmem:[#allocation15 + $0x230] sm:$0xff]
    %v2550 = vld [vmem:[#allocation15 + $0x238] sm:$0xff]
    %v2551 = vld [vmem:[#allocation15 + $0x240] sm:$0xff]
    %v2552 = vld [vmem:[#allocation15 + $0x248] sm:$0xff]
    %v2553 = vld [vmem:[#allocation15 + $0x250] sm:$0xff]
    %v2554 = vld [vmem:[#allocation15 + $0x258] sm:$0xff]
    %v2555 = vld [vmem:[#allocation15 + $0x260] sm:$0xff]
    %v2556 = vld [vmem:[#allocation15 + $0x268] sm:$0xff]
    %v2557 = vld [vmem:[#allocation15 + $0x270] sm:$0xff]
    %v2558 = vld [vmem:[#allocation15 + $0x278] sm:$0xff]
    %v2559 = vld [vmem:[#allocation15 + $0x280] sm:$0xff]
    %v2560 = vld [vmem:[#allocation15 + $0x288] sm:$0xff]
    %v2561 = vld [vmem:[#allocation15 + $0x290] sm:$0xff]
    %v2562 = vld [vmem:[#allocation15 + $0x298] sm:$0xff]
    %v2563 = vld [vmem:[#allocation15 + $0x2a0] sm:$0xff]
    %v2564 = vld [vmem:[#allocation15 + $0x2a8] sm:$0xff]
    %v2565 = vld [vmem:[#allocation15 + $0x2b0] sm:$0xff]
    %v2566 = vld [vmem:[#allocation15 + $0x2b8] sm:$0xff]
    %v2567 = vld [vmem:[#allocation15 + $0x2c0] sm:$0xff]
    %v2568 = vld [vmem:[#allocation15 + $0x2c8] sm:$0xff]
    %v2569 = vld [vmem:[#allocation15 + $0x2d0] sm:$0xff]
    %v2570 = vld [vmem:[#allocation15 + $0x2d8] sm:$0xff]
    %v2571 = vld [vmem:[#allocation15 + $0x2e0] sm:$0xff]
    %v2572 = vld [vmem:[#allocation15 + $0x2e8] sm:$0xff]
    %v2573 = vld [vmem:[#allocation15 + $0x2f0] sm:$0xff]
    %v2574 = vld [vmem:[#allocation15 + $0x2f8] sm:$0xff]
    %v2575 = vld [vmem:[#allocation15 + $0x300] sm:$0xff]
    %v2576 = vld [vmem:[#allocation15 + $0x308] sm:$0xff]
    %v2577 = vld [vmem:[#allocation15 + $0x310] sm:$0xff]
    %v2578 = vld [vmem:[#allocation15 + $0x318] sm:$0xff]
    %v2579 = vld [vmem:[#allocation15 + $0x320] sm:$0xff]
    %v2580 = vld [vmem:[#allocation15 + $0x328] sm:$0xff]
    %v2581 = vld [vmem:[#allocation15 + $0x330] sm:$0xff]
    %v2582 = vld [vmem:[#allocation15 + $0x338] sm:$0xff]
    %v2583 = vld [vmem:[#allocation15 + $0x340] sm:$0xff]
    %v2584 = vld [vmem:[#allocation15 + $0x348] sm:$0xff]
    %v2585 = vld [vmem:[#allocation15 + $0x350] sm:$0xff]
    %v2586 = vld [vmem:[#allocation15 + $0x358] sm:$0xff]
    %v2587 = vld [vmem:[#allocation15 + $0x360] sm:$0xff]
    %v2588 = vld [vmem:[#allocation15 + $0x368] sm:$0xff]
    %v2589 = vld [vmem:[#allocation15 + $0x370] sm:$0xff]
    %v2590 = vld [vmem:[#allocation15 + $0x378] sm:$0xff]
    %v2591 = vld [vmem:[#allocation15 + $0x380] sm:$0xff]
    %v2592 = vld [vmem:[#allocation15 + $0x388] sm:$0xff]
    %v2593 = vld [vmem:[#allocation15 + $0x390] sm:$0xff]
    %v2594 = vld [vmem:[#allocation15 + $0x398] sm:$0xff]
    %v2595 = vld [vmem:[#allocation15 + $0x3a0] sm:$0xff]
    %v2596 = vld [vmem:[#allocation15 + $0x3a8] sm:$0xff]
    %v2597 = vld [vmem:[#allocation15 + $0x3b0] sm:$0xff]
    %v2598 = vld [vmem:[#allocation15 + $0x3b8] sm:$0xff]
    %v2599 = vld [vmem:[#allocation15 + $0x3c0] sm:$0xff]
    %v2600 = vld [vmem:[#allocation15 + $0x3c8] sm:$0xff]
    %v2601 = vld [vmem:[#allocation15 + $0x3d0] sm:$0xff]
    %v2602 = vld [vmem:[#allocation15 + $0x3d8] sm:$0xff]
    %v2603 = vld [vmem:[#allocation15 + $0x3e0] sm:$0xff]
    %v2604 = vld [vmem:[#allocation15 + $0x3e8] sm:$0xff]
    %v2605 = vld [vmem:[#allocation15 + $0x3f0] sm:$0xff]
    %v2606 = vld [vmem:[#allocation15 + $0x3f8] sm:$0xff]
    %v2607 = vld [vmem:[#allocation15 + $0x400] sm:$0xff]
    %v2608 = vld [vmem:[#allocation15 + $0x408] sm:$0xff]
    %v2609 = vld [vmem:[#allocation15 + $0x410] sm:$0xff]
    %v2610 = vld [vmem:[#allocation15 + $0x418] sm:$0xff]
    %v2611 = vld [vmem:[#allocation15 + $0x420] sm:$0xff]
    %v2612 = vld [vmem:[#allocation15 + $0x428] sm:$0xff]
    %v2613 = vld [vmem:[#allocation15 + $0x430] sm:$0xff]
    %v2614 = vld [vmem:[#allocation15 + $0x438] sm:$0xff]
    %v2615 = vld [vmem:[#allocation15 + $0x440] sm:$0xff]
    %v2616 = vld [vmem:[#allocation15 + $0x448] sm:$0xff]
    %v2617 = vld [vmem:[#allocation15 + $0x450] sm:$0xff]
    %v2618 = vld [vmem:[#allocation15 + $0x458] sm:$0xff]
    %v2619 = vld [vmem:[#allocation15 + $0x460] sm:$0xff]
    %v2620 = vld [vmem:[#allocation15 + $0x468] sm:$0xff]
    %v2621 = vld [vmem:[#allocation15 + $0x470] sm:$0xff]
    %v2622 = vld [vmem:[#allocation15 + $0x478] sm:$0xff]
    %v2623 = vld [vmem:[#allocation16] sm:$0xff]
    %v2624 = vld [vmem:[#allocation16 + $0x8] sm:$0x1]
    %v2625 = vld [vmem:[#allocation18] sm:$0xff]
    %v2626 = vld [vmem:[#allocation18 + $0x8] sm:$0xff]
    %vm2627 = vcmask 523264
    %v2629 = vsel %vm2627, %v2479, 0
    %v2632 = vsel %vm2627, %v2480, 0
    %v2635 = vsel %vm2627, %v2481, 0
    %v2638 = vsel %vm2627, %v2482, 0
    %v2641 = vsel %vm2627, %v2483, 0
    %v2644 = vsel %vm2627, %v2484, 0
    %v2647 = vsel %vm2627, %v2485, 0
    %v2650 = vsel %vm2627, %v2486, 0
    %v2653 = vsel %vm2627, %v2487, 0
    %v2656 = vsel %vm2627, %v2488, 0
    %v2659 = vsel %vm2627, %v2489, 0
    %v2662 = vsel %vm2627, %v2490, 0
    %v2665 = vsel %vm2627, %v2491, 0
    %v2668 = vsel %vm2627, %v2492, 0
    %v2671 = vsel %vm2627, %v2493, 0
    %v2674 = vsel %vm2627, %v2494, 0
    %v2677 = vsel %vm2627, %v2495, 0
    %v2680 = vsel %vm2627, %v2496, 0
    %v2683 = vsel %vm2627, %v2497, 0
    %v2686 = vsel %vm2627, %v2498, 0
    %v2689 = vsel %vm2627, %v2499, 0
    %v2692 = vsel %vm2627, %v2500, 0
    %v2695 = vsel %vm2627, %v2501, 0
    %v2698 = vsel %vm2627, %v2502, 0
    %v2701 = vsel %vm2627, %v2503, 0
    %v2704 = vsel %vm2627, %v2504, 0
    %v2707 = vsel %vm2627, %v2505, 0
    %v2710 = vsel %vm2627, %v2506, 0
    %v2713 = vsel %vm2627, %v2507, 0
    %v2716 = vsel %vm2627, %v2508, 0
    %v2719 = vsel %vm2627, %v2509, 0
    %v2722 = vsel %vm2627, %v2510, 0
    %v2725 = vsel %vm2627, %v2511, 0
    %v2728 = vsel %vm2627, %v2512, 0
    %v2731 = vsel %vm2627, %v2513, 0
    %v2734 = vsel %vm2627, %v2514, 0
    %v2737 = vsel %vm2627, %v2515, 0
    %v2740 = vsel %vm2627, %v2516, 0
    %v2743 = vsel %vm2627, %v2517, 0
    %v2746 = vsel %vm2627, %v2518, 0
    %v2749 = vsel %vm2627, %v2519, 0
    %v2752 = vsel %vm2627, %v2520, 0
    %v2755 = vsel %vm2627, %v2521, 0
    %v2758 = vsel %vm2627, %v2522, 0
    %v2761 = vsel %vm2627, %v2523, 0
    %v2764 = vsel %vm2627, %v2524, 0
    %v2767 = vsel %vm2627, %v2525, 0
    %v2770 = vsel %vm2627, %v2526, 0
    %v2773 = vsel %vm2627, %v2527, 0
    %v2776 = vsel %vm2627, %v2528, 0
    %v2779 = vsel %vm2627, %v2529, 0
    %v2782 = vsel %vm2627, %v2530, 0
    %v2785 = vsel %vm2627, %v2531, 0
    %v2788 = vsel %vm2627, %v2532, 0
    %v2791 = vsel %vm2627, %v2533, 0
    %v2794 = vsel %vm2627, %v2534, 0
    %v2797 = vsel %vm2627, %v2535, 0
    %v2800 = vsel %vm2627, %v2536, 0
    %v2803 = vsel %vm2627, %v2537, 0
    %v2806 = vsel %vm2627, %v2538, 0
    %v2809 = vsel %vm2627, %v2539, 0
    %v2812 = vsel %vm2627, %v2540, 0
    %v2815 = vsel %vm2627, %v2541, 0
    %v2818 = vsel %vm2627, %v2542, 0
    %v2821 = vsel %vm2627, %v2543, 0
    %v2824 = vsel %vm2627, %v2544, 0
    %v2827 = vsel %vm2627, %v2545, 0
    %v2830 = vsel %vm2627, %v2546, 0
    %v2833 = vsel %vm2627, %v2547, 0
    %v2836 = vsel %vm2627, %v2548, 0
    %v2839 = vsel %vm2627, %v2549, 0
    %v2842 = vsel %vm2627, %v2550, 0
    %v2845 = vsel %vm2627, %v2551, 0
    %v2848 = vsel %vm2627, %v2552, 0
    %v2851 = vsel %vm2627, %v2553, 0
    %v2854 = vsel %vm2627, %v2554, 0
    %v2857 = vsel %vm2627, %v2555, 0
    %v2860 = vsel %vm2627, %v2556, 0
    %v2863 = vsel %vm2627, %v2557, 0
    %v2866 = vsel %vm2627, %v2558, 0
    %v2869 = vsel %vm2627, %v2559, 0
    %v2872 = vsel %vm2627, %v2560, 0
    %v2875 = vsel %vm2627, %v2561, 0
    %v2878 = vsel %vm2627, %v2562, 0
    %v2881 = vsel %vm2627, %v2563, 0
    %v2884 = vsel %vm2627, %v2564, 0
    %v2887 = vsel %vm2627, %v2565, 0
    %v2890 = vsel %vm2627, %v2566, 0
    %v2893 = vsel %vm2627, %v2567, 0
    %v2896 = vsel %vm2627, %v2568, 0
    %v2899 = vsel %vm2627, %v2569, 0
    %v2902 = vsel %vm2627, %v2570, 0
    %v2905 = vsel %vm2627, %v2571, 0
    %v2908 = vsel %vm2627, %v2572, 0
    %v2911 = vsel %vm2627, %v2573, 0
    %v2914 = vsel %vm2627, %v2574, 0
    %v2917 = vsel %vm2627, %v2575, 0
    %v2920 = vsel %vm2627, %v2576, 0
    %v2923 = vsel %vm2627, %v2577, 0
    %v2926 = vsel %vm2627, %v2578, 0
    %v2929 = vsel %vm2627, %v2579, 0
    %v2932 = vsel %vm2627, %v2580, 0
    %v2935 = vsel %vm2627, %v2581, 0
    %v2938 = vsel %vm2627, %v2582, 0
    %v2941 = vsel %vm2627, %v2583, 0
    %v2944 = vsel %vm2627, %v2584, 0
    %v2947 = vsel %vm2627, %v2585, 0
    %v2950 = vsel %vm2627, %v2586, 0
    %v2953 = vsel %vm2627, %v2587, 0
    %v2956 = vsel %vm2627, %v2588, 0
    %v2959 = vsel %vm2627, %v2589, 0
    %v2962 = vsel %vm2627, %v2590, 0
    %v2965 = vsel %vm2627, %v2591, 0
    %v2968 = vsel %vm2627, %v2592, 0
    %v2971 = vsel %vm2627, %v2593, 0
    %v2974 = vsel %vm2627, %v2594, 0
    %v2977 = vsel %vm2627, %v2595, 0
    %v2980 = vsel %vm2627, %v2596, 0
    %v2983 = vsel %vm2627, %v2597, 0
    %v2986 = vsel %vm2627, %v2598, 0
    %v2989 = vsel %vm2627, %v2599, 0
    %v2992 = vsel %vm2627, %v2600, 0
    %v2995 = vsel %vm2627, %v2601, 0
    %v2998 = vsel %vm2627, %v2602, 0
    %v3001 = vsel %vm2627, %v2603, 0
    %v3004 = vsel %vm2627, %v2604, 0
    %v3007 = vsel %vm2627, %v2605, 0
    %v3010 = vsel %vm2627, %v2606, 0
    %v3013 = vsel %vm2627, %v2607, 0
    %v3016 = vsel %vm2627, %v2608, 0
    %v3019 = vsel %vm2627, %v2609, 0
    %v3022 = vsel %vm2627, %v2610, 0
    %v3025 = vsel %vm2627, %v2611, 0
    %v3028 = vsel %vm2627, %v2612, 0
    %v3031 = vsel %vm2627, %v2613, 0
    %v3034 = vsel %vm2627, %v2614, 0
    %v3037 = vsel %vm2627, %v2615, 0
    %v3040 = vsel %vm2627, %v2616, 0
    %v3043 = vsel %vm2627, %v2617, 0
    %v3046 = vsel %vm2627, %v2618, 0
    %v3049 = vsel %vm2627, %v2619, 0
    %v3052 = vsel %vm2627, %v2620, 0
    %v3055 = vsel %vm2627, %v2621, 0
    %v3058 = vsel %vm2627, %v2622, 0
    %3060 = vmatprep.subr.mxu0 0.0
    %3061 = vmatpush1.msra.mxu0 %v2471
    %3062 = vmatprep.subr.mxu0 0.0
    %3063 = vmatpush1.msra.mxu0 %v2472
    %3064 = vmatprep.subr.mxu0 0.0
    %3065 = vmatpush1.msra.mxu0 %v2473
    %3066 = vmatprep.subr.mxu0 0.0
    %3067 = vmatpush1.msra.mxu0 %v2474
    %3068 = vmatprep.subr.mxu0 0.0
    %3069 = vmatpush1.msra.mxu0 %v2475
    %3070 = vmatprep.subr.mxu0 0.0
    %3071 = vmatpush1.msra.mxu0 %v2476
    %3072 = vmatprep.subr.mxu0 0.0
    %3073 = vmatpush1.msra.mxu0 %v2477
    %3074 = vmatprep.subr.mxu0 0.0
    %3075 = vmatpush1.msra.mxu0 %v2478
    %3076 = vmatprep.subr.mxu0 0.0
    %3077 = vmatpush1.msra.mxu0 0.0
    %3078 = vmatprep.subr.mxu0 0.0
    %3079 = vmatpush1.msra.mxu0 0.0
    %3080 = vmatprep.subr.mxu0 0.0
    %3081 = vmatpush1.msra.mxu0 0.0
    %3082 = vmatprep.subr.mxu0 0.0
    %3083 = vmatpush1.msra.mxu0 0.0
    %3084 = vmatprep.subr.mxu0 0.0
    %3085 = vmatpush1.msra.mxu0 0.0
    %3086 = vmatprep.subr.mxu0 0.0
    %3087 = vmatpush1.msra.mxu0 0.0
    %3088 = vmatprep.subr.mxu0 0.0
    %3089 = vmatpush1.msra.mxu0 0.0
    %3090 = vmatprep.subr.mxu0 0.0
    %3091 = vmatpush1.msra.mxu0 0.0
    %3092 = vmatprep.subr.mxu0 0.0
    %3093 = vmatpush1.msra.mxu0 0.0
    %3094 = vmatprep.subr.mxu0 0.0
    %3095 = vmatpush1.msra.mxu0 0.0
    %3096 = vmatprep.subr.mxu0 0.0
    %3097 = vmatpush1.msra.mxu0 0.0
    %3098 = vmatprep.subr.mxu0 0.0
    %3099 = vmatpush1.msra.mxu0 0.0
    %3100 = vmatprep.subr.mxu0 0.0
    %3101 = vmatpush1.msra.mxu0 0.0
    %3102 = vmatprep.subr.mxu0 0.0
    %3103 = vmatpush1.msra.mxu0 0.0
    %3104 = vmatprep.subr.mxu0 0.0
    %3105 = vmatpush1.msra.mxu0 0.0
    %3106 = vmatprep.subr.mxu0 0.0
    %3107 = vmatpush1.msra.mxu0 0.0
    %3108 = vmatprep.subr.mxu0 0.0
    %3109 = vmatpush1.msra.mxu0 0.0
    %3110 = vmatprep.subr.mxu0 0.0
    %3111 = vmatpush1.msra.mxu0 0.0
    %3112 = vmatprep.subr.mxu0 0.0
    %3113 = vmatpush1.msra.mxu0 0.0
    %3114 = vmatprep.subr.mxu0 0.0
    %3115 = vmatpush1.msra.mxu0 0.0
    %3116 = vmatprep.subr.mxu0 0.0
    %3117 = vmatpush1.msra.mxu0 0.0
    %3118 = vmatprep.subr.mxu0 0.0
    %3119 = vmatpush1.msra.mxu0 0.0
    %3120 = vmatprep.subr.mxu0 0.0
    %3121 = vmatpush1.msra.mxu0 0.0
    %3122 = vmatprep.subr.mxu0 0.0
    %3123 = vmatpush1.msra.mxu0 0.0
    %3124 = vmatprep.mubr.f32.mxu0 0.0
    %3125 = vmatmul.mubr.f32.gmra.mrb[0].mxu0 %v2629
    %v3126 = vpop.f32.mrb[0].mxu0
    %v3127 = vadd.f32 0.0, %v3126
    %v3128 = vpop.f32.mrb[0].mxu0
    %3129 = vmatprep.mubr.f32.mxu0 0.0
    %3130 = vmatmul.mubr.f32.gmra.mrb[0].mxu0 %v2632
    %v3131 = vpop.f32.mrb[0].mxu0
    %v3132 = vadd.f32 0.0, %v3131
    %v3133 = vpop.f32.mrb[0].mxu0
    %3134 = vmatprep.mubr.f32.mxu0 0.0
    %3135 = vmatmul.mubr.f32.gmra.mrb[0].mxu0 %v2635
    %v3136 = vpop.f32.mrb[0].mxu0
    %v3137 = vadd.f32 0.0, %v3136
    %v3138 = vpop.f32.mrb[0].mxu0
    %3139 = vmatprep.mubr.f32.mxu0 0.0
    %3140 = vmatmul.mubr.f32.gmra.mrb[0].mxu0 %v2638
    %v3141 = vpop.f32.mrb[0].mxu0
    %v3142 = vadd.f32 0.0, %v3141
    %v3143 = vpop.f32.mrb[0].mxu0
    %3144 = vmatprep.mubr.f32.mxu0 0.0
    %3145 = vmatmul.mubr.f32.gmra.mrb[0].mxu0 %v2641
    %v3146 = vpop.f32.mrb[0].mxu0
    %v3147 = vadd.f32 0.0, %v3146
    %v3148 = vpop.f32.mrb[0].mxu0
    %3149 = vmatprep.mubr.f32.mxu0 0.0
    %3150 = vmatmul.mubr.f32.gmra.mrb[0].mxu0 %v2644
    %v3151 = vpop.f32.mrb[0].mxu0
    %v3152 = vadd.f32 0.0, %v3151
    %v3153 = vpop.f32.mrb[0].mxu0
    %3154 = vmatprep.mubr.f32.mxu0 0.0
    %3155 = vmatmul.mubr.f32.gmra.mrb[0].mxu0 %v2647
    %v3156 = vpop.f32.mrb[0].mxu0
    %v3157 = vadd.f32 0.0, %v3156
    %v3158 = vpop.f32.mrb[0].mxu0
    %3159 = vmatprep.mubr.f32.mxu0 0.0
    %3160 = vmatmul.mubr.f32.gmra.mrb[0].mxu0 %v2650
    %v3161 = vpop.f32.mrb[0].mxu0
    %v3162 = vadd.f32 0.0, %v3161
    %v3163 = vpop.f32.mrb[0].mxu0
    %3164 = vmatprep.mubr.f32.mxu0 0.0
    %3165 = vmatmul.mubr.f32.gmra.mrb[0].mxu0 %v2653
    %v3166 = vpop.f32.mrb[0].mxu0
    %v3167 = vadd.f32 0.0, %v3166
    %v3168 = vpop.f32.mrb[0].mxu0
    %3169 = vmatprep.mubr.f32.mxu0 0.0
    %3170 = vmatmul.mubr.f32.gmra.mrb[0].mxu0 %v2656
    %v3171 = vpop.f32.mrb[0].mxu0
    %v3172 = vadd.f32 0.0, %v3171
    %v3173 = vpop.f32.mrb[0].mxu0
    %3174 = vmatprep.mubr.f32.mxu0 0.0
    %3175 = vmatmul.mubr.f32.gmra.mrb[0].mxu0 %v2659
    %v3176 = vpop.f32.mrb[0].mxu0
    %v3177 = vadd.f32 0.0, %v3176
    %v3178 = vpop.f32.mrb[0].mxu0
    %3179 = vmatprep.mubr.f32.mxu0 0.0
    %3180 = vmatmul.mubr.f32.gmra.mrb[0].mxu0 %v2662
    %v3181 = vpop.f32.mrb[0].mxu0
    %v3182 = vadd.f32 0.0, %v3181
    %v3183 = vpop.f32.mrb[0].mxu0
    %3184 = vmatprep.mubr.f32.mxu0 0.0
    %3185 = vmatmul.mubr.f32.gmra.mrb[0].mxu0 %v2665
    %v3186 = vpop.f32.mrb[0].mxu0
    %v3187 = vadd.f32 0.0, %v3186
    %v3188 = vpop.f32.mrb[0].mxu0
    %3189 = vmatprep.mubr.f32.mxu0 0.0
    %3190 = vmatmul.mubr.f32.gmra.mrb[0].mxu0 %v2668
    %v3191 = vpop.f32.mrb[0].mxu0
    %v3192 = vadd.f32 0.0, %v3191
    %v3193 = vpop.f32.mrb[0].mxu0
    %3194 = vmatprep.mubr.f32.mxu0 0.0
    %3195 = vmatmul.mubr.f32.gmra.mrb[0].mxu0 %v2671
    %v3196 = vpop.f32.mrb[0].mxu0
    %v3197 = vadd.f32 0.0, %v3196
    %v3198 = vpop.f32.mrb[0].mxu0
    %3199 = vmatprep.mubr.f32.mxu0 0.0
    %3200 = vmatmul.mubr.f32.gmra.mrb[0].mxu0 %v2674
    %v3201 = vpop.f32.mrb[0].mxu0
    %v3202 = vadd.f32 0.0, %v3201
    %v3203 = vpop.f32.mrb[0].mxu0
    %3204 = vmatprep.mubr.f32.mxu0 0.0
    %3205 = vmatmul.mubr.f32.gmra.mrb[0].mxu0 %v2677
    %v3206 = vpop.f32.mrb[0].mxu0
    %v3207 = vadd.f32 0.0, %v3206
    %v3208 = vpop.f32.mrb[0].mxu0
    %3209 = vmatprep.mubr.f32.mxu0 0.0
    %3210 = vmatmul.mubr.f32.gmra.mrb[0].mxu0 %v2680
    %v3211 = vpop.f32.mrb[0].mxu0
    %v3212 = vadd.f32 0.0, %v3211
    %v3213 = vpop.f32.mrb[0].mxu0
    %3214 = vmatprep.mubr.f32.mxu0 0.0
    %3215 = vmatmul.mubr.f32.gmra.mrb[0].mxu0 %v2683
    %v3216 = vpop.f32.mrb[0].mxu0
    %v3217 = vadd.f32 0.0, %v3216
    %v3218 = vpop.f32.mrb[0].mxu0
    %3219 = vmatprep.mubr.f32.mxu0 0.0
    %3220 = vmatmul.mubr.f32.gmra.mrb[0].mxu0 %v2686
    %v3221 = vpop.f32.mrb[0].mxu0
    %v3222 = vadd.f32 0.0, %v3221
    %v3223 = vpop.f32.mrb[0].mxu0
    %3224 = vmatprep.mubr.f32.mxu0 0.0
    %3225 = vmatmul.mubr.f32.gmra.mrb[0].mxu0 %v2689
    %v3226 = vpop.f32.mrb[0].mxu0
    %v3227 = vadd.f32 0.0, %v3226
    %v3228 = vpop.f32.mrb[0].mxu0
    %3229 = vmatprep.mubr.f32.mxu0 0.0
    %3230 = vmatmul.mubr.f32.gmra.mrb[0].mxu0 %v2692
    %v3231 = vpop.f32.mrb[0].mxu0
    %v3232 = vadd.f32 0.0, %v3231
    %v3233 = vpop.f32.mrb[0].mxu0
    %3234 = vmatprep.mubr.f32.mxu0 0.0
    %3235 = vmatmul.mubr.f32.gmra.mrb[0].mxu0 %v2695
    %v3236 = vpop.f32.mrb[0].mxu0
    %v3237 = vadd.f32 0.0, %v3236
    %v3238 = vpop.f32.mrb[0].mxu0
    %3239 = vmatprep.mubr.f32.mxu0 0.0
    %3240 = vmatmul.mubr.f32.gmra.mrb[0].mxu0 %v2698
    %v3241 = vpop.f32.mrb[0].mxu0
    %v3242 = vadd.f32 0.0, %v3241
    %v3243 = vpop.f32.mrb[0].mxu0
    %3244 = vmatprep.mubr.f32.mxu0 0.0
    %3245 = vmatmul.mubr.f32.gmra.mrb[0].mxu0 %v2701
    %v3246 = vpop.f32.mrb[0].mxu0
    %v3247 = vadd.f32 0.0, %v3246
    %v3248 = vpop.f32.mrb[0].mxu0
    %3249 = vmatprep.mubr.f32.mxu0 0.0
    %3250 = vmatmul.mubr.f32.gmra.mrb[0].mxu0 %v2704
    %v3251 = vpop.f32.mrb[0].mxu0
    %v3252 = vadd.f32 0.0, %v3251
    %v3253 = vpop.f32.mrb[0].mxu0
    %3254 = vmatprep.mubr.f32.mxu0 0.0
    %3255 = vmatmul.mubr.f32.gmra.mrb[0].mxu0 %v2707
    %v3256 = vpop.f32.mrb[0].mxu0
    %v3257 = vadd.f32 0.0, %v3256
    %v3258 = vpop.f32.mrb[0].mxu0
    %3259 = vmatprep.mubr.f32.mxu0 0.0
    %3260 = vmatmul.mubr.f32.gmra.mrb[0].mxu0 %v2710
    %v3261 = vpop.f32.mrb[0].mxu0
    %v3262 = vadd.f32 0.0, %v3261
    %v3263 = vpop.f32.mrb[0].mxu0
    %3264 = vmatprep.mubr.f32.mxu0 0.0
    %3265 = vmatmul.mubr.f32.gmra.mrb[0].mxu0 %v2713
    %v3266 = vpop.f32.mrb[0].mxu0
    %v3267 = vadd.f32 0.0, %v3266
    %v3268 = vpop.f32.mrb[0].mxu0
    %3269 = vmatprep.mubr.f32.mxu0 0.0
    %3270 = vmatmul.mubr.f32.gmra.mrb[0].mxu0 %v2716
    %v3271 = vpop.f32.mrb[0].mxu0
    %v3272 = vadd.f32 0.0, %v3271
    %v3273 = vpop.f32.mrb[0].mxu0
    %3274 = vmatprep.mubr.f32.mxu0 0.0
    %3275 = vmatmul.mubr.f32.gmra.mrb[0].mxu0 %v2719
    %v3276 = vpop.f32.mrb[0].mxu0
    %v3277 = vadd.f32 0.0, %v3276
    %v3278 = vpop.f32.mrb[0].mxu0
    %3279 = vmatprep.mubr.f32.mxu0 0.0
    %3280 = vmatmul.mubr.f32.gmra.mrb[0].mxu0 %v2722
    %v3281 = vpop.f32.mrb[0].mxu0
    %v3282 = vadd.f32 0.0, %v3281
    %v3283 = vpop.f32.mrb[0].mxu0
    %3284 = vmatprep.mubr.f32.mxu0 0.0
    %3285 = vmatmul.mubr.f32.gmra.mrb[0].mxu0 %v2725
    %v3286 = vpop.f32.mrb[0].mxu0
    %v3287 = vadd.f32 0.0, %v3286
    %v3288 = vpop.f32.mrb[0].mxu0
    %3289 = vmatprep.mubr.f32.mxu0 0.0
    %3290 = vmatmul.mubr.f32.gmra.mrb[0].mxu0 %v2728
    %v3291 = vpop.f32.mrb[0].mxu0
    %v3292 = vadd.f32 0.0, %v3291
    %v3293 = vpop.f32.mrb[0].mxu0
    %3294 = vmatprep.mubr.f32.mxu0 0.0
    %3295 = vmatmul.mubr.f32.gmra.mrb[0].mxu0 %v2731
    %v3296 = vpop.f32.mrb[0].mxu0
    %v3297 = vadd.f32 0.0, %v3296
    %v3298 = vpop.f32.mrb[0].mxu0
    %3299 = vmatprep.mubr.f32.mxu0 0.0
    %3300 = vmatmul.mubr.f32.gmra.mrb[0].mxu0 %v2734
    %v3301 = vpop.f32.mrb[0].mxu0
    %v3302 = vadd.f32 0.0, %v3301
    %v3303 = vpop.f32.mrb[0].mxu0
    %3304 = vmatprep.mubr.f32.mxu0 0.0
    %3305 = vmatmul.mubr.f32.gmra.mrb[0].mxu0 %v2737
    %v3306 = vpop.f32.mrb[0].mxu0
    %v3307 = vadd.f32 0.0, %v3306
    %v3308 = vpop.f32.mrb[0].mxu0
    %3309 = vmatprep.mubr.f32.mxu0 0.0
    %3310 = vmatmul.mubr.f32.gmra.mrb[0].mxu0 %v2740
    %v3311 = vpop.f32.mrb[0].mxu0
    %v3312 = vadd.f32 0.0, %v3311
    %v3313 = vpop.f32.mrb[0].mxu0
    %3314 = vmatprep.mubr.f32.mxu0 0.0
    %3315 = vmatmul.mubr.f32.gmra.mrb[0].mxu0 %v2743
    %v3316 = vpop.f32.mrb[0].mxu0
    %v3317 = vadd.f32 0.0, %v3316
    %v3318 = vpop.f32.mrb[0].mxu0
    %3319 = vmatprep.mubr.f32.mxu0 0.0
    %3320 = vmatmul.mubr.f32.gmra.mrb[0].mxu0 %v2746
    %v3321 = vpop.f32.mrb[0].mxu0
    %v3322 = vadd.f32 0.0, %v3321
    %v3323 = vpop.f32.mrb[0].mxu0
    %3324 = vmatprep.mubr.f32.mxu0 0.0
    %3325 = vmatmul.mubr.f32.gmra.mrb[0].mxu0 %v2749
    %v3326 = vpop.f32.mrb[0].mxu0
    %v3327 = vadd.f32 0.0, %v3326
    %v3328 = vpop.f32.mrb[0].mxu0
    %3329 = vmatprep.mubr.f32.mxu0 0.0
    %3330 = vmatmul.mubr.f32.gmra.mrb[0].mxu0 %v2752
    %v3331 = vpop.f32.mrb[0].mxu0
    %v3332 = vadd.f32 0.0, %v3331
    %v3333 = vpop.f32.mrb[0].mxu0
    %3334 = vmatprep.mubr.f32.mxu0 0.0
    %3335 = vmatmul.mubr.f32.gmra.mrb[0].mxu0 %v2755
    %v3336 = vpop.f32.mrb[0].mxu0
    %v3337 = vadd.f32 0.0, %v3336
    %v3338 = vpop.f32.mrb[0].mxu0
    %3339 = vmatprep.mubr.f32.mxu0 0.0
    %3340 = vmatmul.mubr.f32.gmra.mrb[0].mxu0 %v2758
    %v3341 = vpop.f32.mrb[0].mxu0
    %v3342 = vadd.f32 0.0, %v3341
    %v3343 = vpop.f32.mrb[0].mxu0
    %3344 = vmatprep.mubr.f32.mxu0 0.0
    %3345 = vmatmul.mubr.f32.gmra.mrb[0].mxu0 %v2761
    %v3346 = vpop.f32.mrb[0].mxu0
    %v3347 = vadd.f32 0.0, %v3346
    %v3348 = vpop.f32.mrb[0].mxu0
    %3349 = vmatprep.mubr.f32.mxu0 0.0
    %3350 = vmatmul.mubr.f32.gmra.mrb[0].mxu0 %v2764
    %v3351 = vpop.f32.mrb[0].mxu0
    %v3352 = vadd.f32 0.0, %v3351
    %v3353 = vpop.f32.mrb[0].mxu0
    %3354 = vmatprep.mubr.f32.mxu0 0.0
    %3355 = vmatmul.mubr.f32.gmra.mrb[0].mxu0 %v2767
    %v3356 = vpop.f32.mrb[0].mxu0
    %v3357 = vadd.f32 0.0, %v3356
    %v3358 = vpop.f32.mrb[0].mxu0
    %3359 = vmatprep.mubr.f32.mxu0 0.0
    %3360 = vmatmul.mubr.f32.gmra.mrb[0].mxu0 %v2770
    %v3361 = vpop.f32.mrb[0].mxu0
    %v3362 = vadd.f32 0.0, %v3361
    %v3363 = vpop.f32.mrb[0].mxu0
    %3364 = vmatprep.mubr.f32.mxu0 0.0
    %3365 = vmatmul.mubr.f32.gmra.mrb[0].mxu0 %v2773
    %v3366 = vpop.f32.mrb[0].mxu0
    %v3367 = vadd.f32 0.0, %v3366
    %v3368 = vpop.f32.mrb[0].mxu0
    %3369 = vmatprep.mubr.f32.mxu0 0.0
    %3370 = vmatmul.mubr.f32.gmra.mrb[0].mxu0 %v2776
    %v3371 = vpop.f32.mrb[0].mxu0
    %v3372 = vadd.f32 0.0, %v3371
    %v3373 = vpop.f32.mrb[0].mxu0
    %3374 = vmatprep.mubr.f32.mxu0 0.0
    %3375 = vmatmul.mubr.f32.gmra.mrb[0].mxu0 %v2779
    %v3376 = vpop.f32.mrb[0].mxu0
    %v3377 = vadd.f32 0.0, %v3376
    %v3378 = vpop.f32.mrb[0].mxu0
    %3379 = vmatprep.mubr.f32.mxu0 0.0
    %3380 = vmatmul.mubr.f32.gmra.mrb[0].mxu0 %v2782
    %v3381 = vpop.f32.mrb[0].mxu0
    %v3382 = vadd.f32 0.0, %v3381
    %v3383 = vpop.f32.mrb[0].mxu0
    %3384 = vmatprep.mubr.f32.mxu0 0.0
    %3385 = vmatmul.mubr.f32.gmra.mrb[0].mxu0 %v2785
    %v3386 = vpop.f32.mrb[0].mxu0
    %v3387 = vadd.f32 0.0, %v3386
    %v3388 = vpop.f32.mrb[0].mxu0
    %3389 = vmatprep.mubr.f32.mxu0 0.0
    %3390 = vmatmul.mubr.f32.gmra.mrb[0].mxu0 %v2788
    %v3391 = vpop.f32.mrb[0].mxu0
    %v3392 = vadd.f32 0.0, %v3391
    %v3393 = vpop.f32.mrb[0].mxu0
    %3394 = vmatprep.mubr.f32.mxu0 0.0
    %3395 = vmatmul.mubr.f32.gmra.mrb[0].mxu0 %v2791
    %v3396 = vpop.f32.mrb[0].mxu0
    %v3397 = vadd.f32 0.0, %v3396
    %v3398 = vpop.f32.mrb[0].mxu0
    %3399 = vmatprep.mubr.f32.mxu0 0.0
    %3400 = vmatmul.mubr.f32.gmra.mrb[0].mxu0 %v2794
    %v3401 = vpop.f32.mrb[0].mxu0
    %v3402 = vadd.f32 0.0, %v3401
    %v3403 = vpop.f32.mrb[0].mxu0
    %3404 = vmatprep.mubr.f32.mxu0 0.0
    %3405 = vmatmul.mubr.f32.gmra.mrb[0].mxu0 %v2797
    %v3406 = vpop.f32.mrb[0].mxu0
    %v3407 = vadd.f32 0.0, %v3406
    %v3408 = vpop.f32.mrb[0].mxu0
    %3409 = vmatprep.mubr.f32.mxu0 0.0
    %3410 = vmatmul.mubr.f32.gmra.mrb[0].mxu0 %v2800
    %v3411 = vpop.f32.mrb[0].mxu0
    %v3412 = vadd.f32 0.0, %v3411
    %v3413 = vpop.f32.mrb[0].mxu0
    %3414 = vmatprep.mubr.f32.mxu0 0.0
    %3415 = vmatmul.mubr.f32.gmra.mrb[0].mxu0 %v2803
    %v3416 = vpop.f32.mrb[0].mxu0
    %v3417 = vadd.f32 0.0, %v3416
    %v3418 = vpop.f32.mrb[0].mxu0
    %3419 = vmatprep.mubr.f32.mxu0 0.0
    %3420 = vmatmul.mubr.f32.gmra.mrb[0].mxu0 %v2806
    %v3421 = vpop.f32.mrb[0].mxu0
    %v3422 = vadd.f32 0.0, %v3421
    %v3423 = vpop.f32.mrb[0].mxu0
    %3424 = vmatprep.mubr.f32.mxu0 0.0
    %3425 = vmatmul.mubr.f32.gmra.mrb[0].mxu0 %v2809
    %v3426 = vpop.f32.mrb[0].mxu0
    %v3427 = vadd.f32 0.0, %v3426
    %v3428 = vpop.f32.mrb[0].mxu0
    %3429 = vmatprep.mubr.f32.mxu0 0.0
    %3430 = vmatmul.mubr.f32.gmra.mrb[0].mxu0 %v2812
    %v3431 = vpop.f32.mrb[0].mxu0
    %v3432 = vadd.f32 0.0, %v3431
    %v3433 = vpop.f32.mrb[0].mxu0
    %3434 = vmatprep.mubr.f32.mxu0 0.0
    %3435 = vmatmul.mubr.f32.gmra.mrb[0].mxu0 %v2815
    %v3436 = vpop.f32.mrb[0].mxu0
    %v3437 = vadd.f32 0.0, %v3436
    %v3438 = vpop.f32.mrb[0].mxu0
    %3439 = vmatprep.mubr.f32.mxu0 0.0
    %3440 = vmatmul.mubr.f32.gmra.mrb[0].mxu0 %v2818
    %v3441 = vpop.f32.mrb[0].mxu0
    %v3442 = vadd.f32 0.0, %v3441
    %v3443 = vpop.f32.mrb[0].mxu0
    %3444 = vmatprep.mubr.f32.mxu0 0.0
    %3445 = vmatmul.mubr.f32.gmra.mrb[0].mxu0 %v2821
    %v3446 = vpop.f32.mrb[0].mxu0
    %v3447 = vadd.f32 0.0, %v3446
    %v3448 = vpop.f32.mrb[0].mxu0
    %3449 = vmatprep.mubr.f32.mxu0 0.0
    %3450 = vmatmul.mubr.f32.gmra.mrb[0].mxu0 %v2824
    %v3451 = vpop.f32.mrb[0].mxu0
    %v3452 = vadd.f32 0.0, %v3451
    %v3453 = vpop.f32.mrb[0].mxu0
    %3454 = vmatprep.mubr.f32.mxu0 0.0
    %3455 = vmatmul.mubr.f32.gmra.mrb[0].mxu0 %v2827
    %v3456 = vpop.f32.mrb[0].mxu0
    %v3457 = vadd.f32 0.0, %v3456
    %v3458 = vpop.f32.mrb[0].mxu0
    %3459 = vmatprep.mubr.f32.mxu0 0.0
    %3460 = vmatmul.mubr.f32.gmra.mrb[0].mxu0 %v2830
    %v3461 = vpop.f32.mrb[0].mxu0
    %v3462 = vadd.f32 0.0, %v3461
    %v3463 = vpop.f32.mrb[0].mxu0
    %3464 = vmatprep.mubr.f32.mxu0 0.0
    %3465 = vmatmul.mubr.f32.gmra.mrb[0].mxu0 %v2833
    %v3466 = vpop.f32.mrb[0].mxu0
    %v3467 = vadd.f32 0.0, %v3466
    %v3468 = vpop.f32.mrb[0].mxu0
    %3469 = vmatprep.mubr.f32.mxu0 0.0
    %3470 = vmatmul.mubr.f32.gmra.mrb[0].mxu0 %v2836
    %v3471 = vpop.f32.mrb[0].mxu0
    %v3472 = vadd.f32 0.0, %v3471
    %v3473 = vpop.f32.mrb[0].mxu0
    %3474 = vmatprep.mubr.f32.mxu0 0.0
    %3475 = vmatmul.mubr.f32.gmra.mrb[0].mxu0 %v2839
    %v3476 = vpop.f32.mrb[0].mxu0
    %v3477 = vadd.f32 0.0, %v3476
    %v3478 = vpop.f32.mrb[0].mxu0
    %3479 = vmatprep.mubr.f32.mxu0 0.0
    %3480 = vmatmul.mubr.f32.gmra.mrb[0].mxu0 %v2842
    %v3481 = vpop.f32.mrb[0].mxu0
    %v3482 = vadd.f32 0.0, %v3481
    %v3483 = vpop.f32.mrb[0].mxu0
    %3484 = vmatprep.mubr.f32.mxu0 0.0
    %3485 = vmatmul.mubr.f32.gmra.mrb[0].mxu0 %v2845
    %v3486 = vpop.f32.mrb[0].mxu0
    %v3487 = vadd.f32 0.0, %v3486
    %v3488 = vpop.f32.mrb[0].mxu0
    %3489 = vmatprep.mubr.f32.mxu0 0.0
    %3490 = vmatmul.mubr.f32.gmra.mrb[0].mxu0 %v2848
    %v3491 = vpop.f32.mrb[0].mxu0
    %v3492 = vadd.f32 0.0, %v3491
    %v3493 = vpop.f32.mrb[0].mxu0
    %3494 = vmatprep.mubr.f32.mxu0 0.0
    %3495 = vmatmul.mubr.f32.gmra.mrb[0].mxu0 %v2851
    %v3496 = vpop.f32.mrb[0].mxu0
    %v3497 = vadd.f32 0.0, %v3496
    %v3498 = vpop.f32.mrb[0].mxu0
    %3499 = vmatprep.mubr.f32.mxu0 0.0
    %3500 = vmatmul.mubr.f32.gmra.mrb[0].mxu0 %v2854
    %v3501 = vpop.f32.mrb[0].mxu0
    %v3502 = vadd.f32 0.0, %v3501
    %v3503 = vpop.f32.mrb[0].mxu0
    %3504 = vmatprep.mubr.f32.mxu0 0.0
    %3505 = vmatmul.mubr.f32.gmra.mrb[0].mxu0 %v2857
    %v3506 = vpop.f32.mrb[0].mxu0
    %v3507 = vadd.f32 0.0, %v3506
    %v3508 = vpop.f32.mrb[0].mxu0
    %3509 = vmatprep.mubr.f32.mxu0 0.0
    %3510 = vmatmul.mubr.f32.gmra.mrb[0].mxu0 %v2860
    %v3511 = vpop.f32.mrb[0].mxu0
    %v3512 = vadd.f32 0.0, %v3511
    %v3513 = vpop.f32.mrb[0].mxu0
    %3514 = vmatprep.mubr.f32.mxu0 0.0
    %3515 = vmatmul.mubr.f32.gmra.mrb[0].mxu0 %v2863
    %v3516 = vpop.f32.mrb[0].mxu0
    %v3517 = vadd.f32 0.0, %v3516
    %v3518 = vpop.f32.mrb[0].mxu0
    %3519 = vmatprep.mubr.f32.mxu0 0.0
    %3520 = vmatmul.mubr.f32.gmra.mrb[0].mxu0 %v2866
    %v3521 = vpop.f32.mrb[0].mxu0
    %v3522 = vadd.f32 0.0, %v3521
    %v3523 = vpop.f32.mrb[0].mxu0
    %3524 = vmatprep.mubr.f32.mxu0 0.0
    %3525 = vmatmul.mubr.f32.gmra.mrb[0].mxu0 %v2869
    %v3526 = vpop.f32.mrb[0].mxu0
    %v3527 = vadd.f32 0.0, %v3526
    %v3528 = vpop.f32.mrb[0].mxu0
    %3529 = vmatprep.mubr.f32.mxu0 0.0
    %3530 = vmatmul.mubr.f32.gmra.mrb[0].mxu0 %v2872
    %v3531 = vpop.f32.mrb[0].mxu0
    %v3532 = vadd.f32 0.0, %v3531
    %v3533 = vpop.f32.mrb[0].mxu0
    %3534 = vmatprep.mubr.f32.mxu0 0.0
    %3535 = vmatmul.mubr.f32.gmra.mrb[0].mxu0 %v2875
    %v3536 = vpop.f32.mrb[0].mxu0
    %v3537 = vadd.f32 0.0, %v3536
    %v3538 = vpop.f32.mrb[0].mxu0
    %3539 = vmatprep.mubr.f32.mxu0 0.0
    %3540 = vmatmul.mubr.f32.gmra.mrb[0].mxu0 %v2878
    %v3541 = vpop.f32.mrb[0].mxu0
    %v3542 = vadd.f32 0.0, %v3541
    %v3543 = vpop.f32.mrb[0].mxu0
    %3544 = vmatprep.mubr.f32.mxu0 0.0
    %3545 = vmatmul.mubr.f32.gmra.mrb[0].mxu0 %v2881
    %v3546 = vpop.f32.mrb[0].mxu0
    %v3547 = vadd.f32 0.0, %v3546
    %v3548 = vpop.f32.mrb[0].mxu0
    %3549 = vmatprep.mubr.f32.mxu0 0.0
    %3550 = vmatmul.mubr.f32.gmra.mrb[0].mxu0 %v2884
    %v3551 = vpop.f32.mrb[0].mxu0
    %v3552 = vadd.f32 0.0, %v3551
    %v3553 = vpop.f32.mrb[0].mxu0
    %3554 = vmatprep.mubr.f32.mxu0 0.0
    %3555 = vmatmul.mubr.f32.gmra.mrb[0].mxu0 %v2887
    %v3556 = vpop.f32.mrb[0].mxu0
    %v3557 = vadd.f32 0.0, %v3556
    %v3558 = vpop.f32.mrb[0].mxu0
    %3559 = vmatprep.mubr.f32.mxu0 0.0
    %3560 = vmatmul.mubr.f32.gmra.mrb[0].mxu0 %v2890
    %v3561 = vpop.f32.mrb[0].mxu0
    %v3562 = vadd.f32 0.0, %v3561
    %v3563 = vpop.f32.mrb[0].mxu0
    %3564 = vmatprep.mubr.f32.mxu0 0.0
    %3565 = vmatmul.mubr.f32.gmra.mrb[0].mxu0 %v2893
    %v3566 = vpop.f32.mrb[0].mxu0
    %v3567 = vadd.f32 0.0, %v3566
    %v3568 = vpop.f32.mrb[0].mxu0
    %3569 = vmatprep.mubr.f32.mxu0 0.0
    %3570 = vmatmul.mubr.f32.gmra.mrb[0].mxu0 %v2896
    %v3571 = vpop.f32.mrb[0].mxu0
    %v3572 = vadd.f32 0.0, %v3571
    %v3573 = vpop.f32.mrb[0].mxu0
    %3574 = vmatprep.mubr.f32.mxu0 0.0
    %3575 = vmatmul.mubr.f32.gmra.mrb[0].mxu0 %v2899
    %v3576 = vpop.f32.mrb[0].mxu0
    %v3577 = vadd.f32 0.0, %v3576
    %v3578 = vpop.f32.mrb[0].mxu0
    %3579 = vmatprep.mubr.f32.mxu0 0.0
    %3580 = vmatmul.mubr.f32.gmra.mrb[0].mxu0 %v2902
    %v3581 = vpop.f32.mrb[0].mxu0
    %v3582 = vadd.f32 0.0, %v3581
    %v3583 = vpop.f32.mrb[0].mxu0
    %3584 = vmatprep.mubr.f32.mxu0 0.0
    %3585 = vmatmul.mubr.f32.gmra.mrb[0].mxu0 %v2905
    %v3586 = vpop.f32.mrb[0].mxu0
    %v3587 = vadd.f32 0.0, %v3586
    %v3588 = vpop.f32.mrb[0].mxu0
    %3589 = vmatprep.mubr.f32.mxu0 0.0
    %3590 = vmatmul.mubr.f32.gmra.mrb[0].mxu0 %v2908
    %v3591 = vpop.f32.mrb[0].mxu0
    %v3592 = vadd.f32 0.0, %v3591
    %v3593 = vpop.f32.mrb[0].mxu0
    %3594 = vmatprep.mubr.f32.mxu0 0.0
    %3595 = vmatmul.mubr.f32.gmra.mrb[0].mxu0 %v2911
    %v3596 = vpop.f32.mrb[0].mxu0
    %v3597 = vadd.f32 0.0, %v3596
    %v3598 = vpop.f32.mrb[0].mxu0
    %3599 = vmatprep.mubr.f32.mxu0 0.0
    %3600 = vmatmul.mubr.f32.gmra.mrb[0].mxu0 %v2914
    %v3601 = vpop.f32.mrb[0].mxu0
    %v3602 = vadd.f32 0.0, %v3601
    %v3603 = vpop.f32.mrb[0].mxu0
    %3604 = vmatprep.mubr.f32.mxu0 0.0
    %3605 = vmatmul.mubr.f32.gmra.mrb[0].mxu0 %v2917
    %v3606 = vpop.f32.mrb[0].mxu0
    %v3607 = vadd.f32 0.0, %v3606
    %v3608 = vpop.f32.mrb[0].mxu0
    %3609 = vmatprep.mubr.f32.mxu0 0.0
    %3610 = vmatmul.mubr.f32.gmra.mrb[0].mxu0 %v2920
    %v3611 = vpop.f32.mrb[0].mxu0
    %v3612 = vadd.f32 0.0, %v3611
    %v3613 = vpop.f32.mrb[0].mxu0
    %3614 = vmatprep.mubr.f32.mxu0 0.0
    %3615 = vmatmul.mubr.f32.gmra.mrb[0].mxu0 %v2923
    %v3616 = vpop.f32.mrb[0].mxu0
    %v3617 = vadd.f32 0.0, %v3616
    %v3618 = vpop.f32.mrb[0].mxu0
    %3619 = vmatprep.mubr.f32.mxu0 0.0
    %3620 = vmatmul.mubr.f32.gmra.mrb[0].mxu0 %v2926
    %v3621 = vpop.f32.mrb[0].mxu0
    %v3622 = vadd.f32 0.0, %v3621
    %v3623 = vpop.f32.mrb[0].mxu0
    %3624 = vmatprep.mubr.f32.mxu0 0.0
    %3625 = vmatmul.mubr.f32.gmra.mrb[0].mxu0 %v2929
    %v3626 = vpop.f32.mrb[0].mxu0
    %v3627 = vadd.f32 0.0, %v3626
    %v3628 = vpop.f32.mrb[0].mxu0
    %3629 = vmatprep.mubr.f32.mxu0 0.0
    %3630 = vmatmul.mubr.f32.gmra.mrb[0].mxu0 %v2932
    %v3631 = vpop.f32.mrb[0].mxu0
    %v3632 = vadd.f32 0.0, %v3631
    %v3633 = vpop.f32.mrb[0].mxu0
    %3634 = vmatprep.mubr.f32.mxu0 0.0
    %3635 = vmatmul.mubr.f32.gmra.mrb[0].mxu0 %v2935
    %v3636 = vpop.f32.mrb[0].mxu0
    %v3637 = vadd.f32 0.0, %v3636
    %v3638 = vpop.f32.mrb[0].mxu0
    %3639 = vmatprep.mubr.f32.mxu0 0.0
    %3640 = vmatmul.mubr.f32.gmra.mrb[0].mxu0 %v2938
    %v3641 = vpop.f32.mrb[0].mxu0
    %v3642 = vadd.f32 0.0, %v3641
    %v3643 = vpop.f32.mrb[0].mxu0
    %3644 = vmatprep.mubr.f32.mxu0 0.0
    %3645 = vmatmul.mubr.f32.gmra.mrb[0].mxu0 %v2941
    %v3646 = vpop.f32.mrb[0].mxu0
    %v3647 = vadd.f32 0.0, %v3646
    %v3648 = vpop.f32.mrb[0].mxu0
    %3649 = vmatprep.mubr.f32.mxu0 0.0
    %3650 = vmatmul.mubr.f32.gmra.mrb[0].mxu0 %v2944
    %v3651 = vpop.f32.mrb[0].mxu0
    %v3652 = vadd.f32 0.0, %v3651
    %v3653 = vpop.f32.mrb[0].mxu0
    %3654 = vmatprep.mubr.f32.mxu0 0.0
    %3655 = vmatmul.mubr.f32.gmra.mrb[0].mxu0 %v2947
    %v3656 = vpop.f32.mrb[0].mxu0
    %v3657 = vadd.f32 0.0, %v3656
    %v3658 = vpop.f32.mrb[0].mxu0
    %3659 = vmatprep.mubr.f32.mxu0 0.0
    %3660 = vmatmul.mubr.f32.gmra.mrb[0].mxu0 %v2950
    %v3661 = vpop.f32.mrb[0].mxu0
    %v3662 = vadd.f32 0.0, %v3661
    %v3663 = vpop.f32.mrb[0].mxu0
    %3664 = vmatprep.mubr.f32.mxu0 0.0
    %3665 = vmatmul.mubr.f32.gmra.mrb[0].mxu0 %v2953
    %v3666 = vpop.f32.mrb[0].mxu0
    %v3667 = vadd.f32 0.0, %v3666
    %v3668 = vpop.f32.mrb[0].mxu0
    %3669 = vmatprep.mubr.f32.mxu0 0.0
    %3670 = vmatmul.mubr.f32.gmra.mrb[0].mxu0 %v2956
    %v3671 = vpop.f32.mrb[0].mxu0
    %v3672 = vadd.f32 0.0, %v3671
    %v3673 = vpop.f32.mrb[0].mxu0
    %3674 = vmatprep.mubr.f32.mxu0 0.0
    %3675 = vmatmul.mubr.f32.gmra.mrb[0].mxu0 %v2959
    %v3676 = vpop.f32.mrb[0].mxu0
    %v3677 = vadd.f32 0.0, %v3676
    %v3678 = vpop.f32.mrb[0].mxu0
    %3679 = vmatprep.mubr.f32.mxu0 0.0
    %3680 = vmatmul.mubr.f32.gmra.mrb[0].mxu0 %v2962
    %v3681 = vpop.f32.mrb[0].mxu0
    %v3682 = vadd.f32 0.0, %v3681
    %v3683 = vpop.f32.mrb[0].mxu0
    %3684 = vmatprep.mubr.f32.mxu0 0.0
    %3685 = vmatmul.mubr.f32.gmra.mrb[0].mxu0 %v2965
    %v3686 = vpop.f32.mrb[0].mxu0
    %v3687 = vadd.f32 0.0, %v3686
    %v3688 = vpop.f32.mrb[0].mxu0
    %3689 = vmatprep.mubr.f32.mxu0 0.0
    %3690 = vmatmul.mubr.f32.gmra.mrb[0].mxu0 %v2968
    %v3691 = vpop.f32.mrb[0].mxu0
    %v3692 = vadd.f32 0.0, %v3691
    %v3693 = vpop.f32.mrb[0].mxu0
    %3694 = vmatprep.mubr.f32.mxu0 0.0
    %3695 = vmatmul.mubr.f32.gmra.mrb[0].mxu0 %v2971
    %v3696 = vpop.f32.mrb[0].mxu0
    %v3697 = vadd.f32 0.0, %v3696
    %v3698 = vpop.f32.mrb[0].mxu0
    %3699 = vmatprep.mubr.f32.mxu0 0.0
    %3700 = vmatmul.mubr.f32.gmra.mrb[0].mxu0 %v2974
    %v3701 = vpop.f32.mrb[0].mxu0
    %v3702 = vadd.f32 0.0, %v3701
    %v3703 = vpop.f32.mrb[0].mxu0
    %3704 = vmatprep.mubr.f32.mxu0 0.0
    %3705 = vmatmul.mubr.f32.gmra.mrb[0].mxu0 %v2977
    %v3706 = vpop.f32.mrb[0].mxu0
    %v3707 = vadd.f32 0.0, %v3706
    %v3708 = vpop.f32.mrb[0].mxu0
    %3709 = vmatprep.mubr.f32.mxu0 0.0
    %3710 = vmatmul.mubr.f32.gmra.mrb[0].mxu0 %v2980
    %v3711 = vpop.f32.mrb[0].mxu0
    %v3712 = vadd.f32 0.0, %v3711
    %v3713 = vpop.f32.mrb[0].mxu0
    %3714 = vmatprep.mubr.f32.mxu0 0.0
    %3715 = vmatmul.mubr.f32.gmra.mrb[0].mxu0 %v2983
    %v3716 = vpop.f32.mrb[0].mxu0
    %v3717 = vadd.f32 0.0, %v3716
    %v3718 = vpop.f32.mrb[0].mxu0
    %3719 = vmatprep.mubr.f32.mxu0 0.0
    %3720 = vmatmul.mubr.f32.gmra.mrb[0].mxu0 %v2986
    %v3721 = vpop.f32.mrb[0].mxu0
    %v3722 = vadd.f32 0.0, %v3721
    %v3723 = vpop.f32.mrb[0].mxu0
    %3724 = vmatprep.mubr.f32.mxu0 0.0
    %3725 = vmatmul.mubr.f32.gmra.mrb[0].mxu0 %v2989
    %v3726 = vpop.f32.mrb[0].mxu0
    %v3727 = vadd.f32 0.0, %v3726
    %v3728 = vpop.f32.mrb[0].mxu0
    %3729 = vmatprep.mubr.f32.mxu0 0.0
    %3730 = vmatmul.mubr.f32.gmra.mrb[0].mxu0 %v2992
    %v3731 = vpop.f32.mrb[0].mxu0
    %v3732 = vadd.f32 0.0, %v3731
    %v3733 = vpop.f32.mrb[0].mxu0
    %3734 = vmatprep.mubr.f32.mxu0 0.0
    %3735 = vmatmul.mubr.f32.gmra.mrb[0].mxu0 %v2995
    %v3736 = vpop.f32.mrb[0].mxu0
    %v3737 = vadd.f32 0.0, %v3736
    %v3738 = vpop.f32.mrb[0].mxu0
    %3739 = vmatprep.mubr.f32.mxu0 0.0
    %3740 = vmatmul.mubr.f32.gmra.mrb[0].mxu0 %v2998
    %v3741 = vpop.f32.mrb[0].mxu0
    %v3742 = vadd.f32 0.0, %v3741
    %v3743 = vpop.f32.mrb[0].mxu0
    %3744 = vmatprep.mubr.f32.mxu0 0.0
    %3745 = vmatmul.mubr.f32.gmra.mrb[0].mxu0 %v3001
    %v3746 = vpop.f32.mrb[0].mxu0
    %v3747 = vadd.f32 0.0, %v3746
    %v3748 = vpop.f32.mrb[0].mxu0
    %3749 = vmatprep.mubr.f32.mxu0 0.0
    %3750 = vmatmul.mubr.f32.gmra.mrb[0].mxu0 %v3004
    %v3751 = vpop.f32.mrb[0].mxu0
    %v3752 = vadd.f32 0.0, %v3751
    %v3753 = vpop.f32.mrb[0].mxu0
    %3754 = vmatprep.mubr.f32.mxu0 0.0
    %3755 = vmatmul.mubr.f32.gmra.mrb[0].mxu0 %v3007
    %v3756 = vpop.f32.mrb[0].mxu0
    %v3757 = vadd.f32 0.0, %v3756
    %v3758 = vpop.f32.mrb[0].mxu0
    %3759 = vmatprep.mubr.f32.mxu0 0.0
    %3760 = vmatmul.mubr.f32.gmra.mrb[0].mxu0 %v3010
    %v3761 = vpop.f32.mrb[0].mxu0
    %v3762 = vadd.f32 0.0, %v3761
    %v3763 = vpop.f32.mrb[0].mxu0
    %3764 = vmatprep.mubr.f32.mxu0 0.0
    %3765 = vmatmul.mubr.f32.gmra.mrb[0].mxu0 %v3013
    %v3766 = vpop.f32.mrb[0].mxu0
    %v3767 = vadd.f32 0.0, %v3766
    %v3768 = vpop.f32.mrb[0].mxu0
    %3769 = vmatprep.mubr.f32.mxu0 0.0
    %3770 = vmatmul.mubr.f32.gmra.mrb[0].mxu0 %v3016
    %v3771 = vpop.f32.mrb[0].mxu0
    %v3772 = vadd.f32 0.0, %v3771
    %v3773 = vpop.f32.mrb[0].mxu0
    %3774 = vmatprep.mubr.f32.mxu0 0.0
    %3775 = vmatmul.mubr.f32.gmra.mrb[0].mxu0 %v3019
    %v3776 = vpop.f32.mrb[0].mxu0
    %v3777 = vadd.f32 0.0, %v3776
    %v3778 = vpop.f32.mrb[0].mxu0
    %3779 = vmatprep.mubr.f32.mxu0 0.0
    %3780 = vmatmul.mubr.f32.gmra.mrb[0].mxu0 %v3022
    %v3781 = vpop.f32.mrb[0].mxu0
    %v3782 = vadd.f32 0.0, %v3781
    %v3783 = vpop.f32.mrb[0].mxu0
    %3784 = vmatprep.mubr.f32.mxu0 0.0
    %3785 = vmatmul.mubr.f32.gmra.mrb[0].mxu0 %v3025
    %v3786 = vpop.f32.mrb[0].mxu0
    %v3787 = vadd.f32 0.0, %v3786
    %v3788 = vpop.f32.mrb[0].mxu0
    %3789 = vmatprep.mubr.f32.mxu0 0.0
    %3790 = vmatmul.mubr.f32.gmra.mrb[0].mxu0 %v3028
    %v3791 = vpop.f32.mrb[0].mxu0
    %v3792 = vadd.f32 0.0, %v3791
    %v3793 = vpop.f32.mrb[0].mxu0
    %3794 = vmatprep.mubr.f32.mxu0 0.0
    %3795 = vmatmul.mubr.f32.gmra.mrb[0].mxu0 %v3031
    %v3796 = vpop.f32.mrb[0].mxu0
    %v3797 = vadd.f32 0.0, %v3796
    %v3798 = vpop.f32.mrb[0].mxu0
    %3799 = vmatprep.mubr.f32.mxu0 0.0
    %3800 = vmatmul.mubr.f32.gmra.mrb[0].mxu0 %v3034
    %v3801 = vpop.f32.mrb[0].mxu0
    %v3802 = vadd.f32 0.0, %v3801
    %v3803 = vpop.f32.mrb[0].mxu0
    %3804 = vmatprep.mubr.f32.mxu0 0.0
    %3805 = vmatmul.mubr.f32.gmra.mrb[0].mxu0 %v3037
    %v3806 = vpop.f32.mrb[0].mxu0
    %v3807 = vadd.f32 0.0, %v3806
    %v3808 = vpop.f32.mrb[0].mxu0
    %3809 = vmatprep.mubr.f32.mxu0 0.0
    %3810 = vmatmul.mubr.f32.gmra.mrb[0].mxu0 %v3040
    %v3811 = vpop.f32.mrb[0].mxu0
    %v3812 = vadd.f32 0.0, %v3811
    %v3813 = vpop.f32.mrb[0].mxu0
    %3814 = vmatprep.mubr.f32.mxu0 0.0
    %3815 = vmatmul.mubr.f32.gmra.mrb[0].mxu0 %v3043
    %v3816 = vpop.f32.mrb[0].mxu0
    %v3817 = vadd.f32 0.0, %v3816
    %v3818 = vpop.f32.mrb[0].mxu0
    %3819 = vmatprep.mubr.f32.mxu0 0.0
    %3820 = vmatmul.mubr.f32.gmra.mrb[0].mxu0 %v3046
    %v3821 = vpop.f32.mrb[0].mxu0
    %v3822 = vadd.f32 0.0, %v3821
    %v3823 = vpop.f32.mrb[0].mxu0
    %3824 = vmatprep.mubr.f32.mxu0 0.0
    %3825 = vmatmul.mubr.f32.gmra.mrb[0].mxu0 %v3049
    %v3826 = vpop.f32.mrb[0].mxu0
    %v3827 = vadd.f32 0.0, %v3826
    %v3828 = vpop.f32.mrb[0].mxu0
    %3829 = vmatprep.mubr.f32.mxu0 0.0
    %3830 = vmatmul.mubr.f32.gmra.mrb[0].mxu0 %v3052
    %v3831 = vpop.f32.mrb[0].mxu0
    %v3832 = vadd.f32 0.0, %v3831
    %v3833 = vpop.f32.mrb[0].mxu0
    %3834 = vmatprep.mubr.f32.mxu0 0.0
    %3835 = vmatmul.mubr.f32.gmra.mrb[0].mxu0 %v3055
    %v3836 = vpop.f32.mrb[0].mxu0
    %v3837 = vadd.f32 0.0, %v3836
    %v3838 = vpop.f32.mrb[0].mxu0
    %3839 = vmatprep.mubr.f32.mxu0 0.0
    %3840 = vmatmul.mubr.f32.gmra.mrb[0].mxu0 %v3058
    %v3841 = vpop.f32.mrb[0].mxu0
    %v3842 = vadd.f32 0.0, %v3841
    %v3843 = vpop.f32.mrb[0].mxu0
    %3844 = vdwg.mxu0
    %v3845 = vlaneseq
    %v3846 = vshrl.u32 %v3845, 7
    %v3847 = vsub.s32 0, %v3846
    %v3848 = vrot.slane %v2623, %v3847
    %v3849 = vmul.f32 %v3127, %v3848
    %v3850 = vmul.f32 %v3132, %v3848
    %v3851 = vmul.f32 %v3137, %v3848
    %v3852 = vmul.f32 %v3142, %v3848
    %v3853 = vmul.f32 %v3147, %v3848
    %v3854 = vmul.f32 %v3152, %v3848
    %v3855 = vmul.f32 %v3157, %v3848
    %v3856 = vmul.f32 %v3162, %v3848
    %v3857 = vmul.f32 %v3167, %v3848
    %v3858 = vmul.f32 %v3172, %v3848
    %v3859 = vmul.f32 %v3177, %v3848
    %v3860 = vmul.f32 %v3182, %v3848
    %v3861 = vmul.f32 %v3187, %v3848
    %v3862 = vmul.f32 %v3192, %v3848
    %v3863 = vmul.f32 %v3197, %v3848
    %v3864 = vmul.f32 %v3202, %v3848
    %v3865 = vlaneseq
    %v3866 = vshrl.u32 %v3865, 7
    %v3867 = vsub.s32 1, %v3866
    %v3868 = vrot.slane %v2623, %v3867
    %v3869 = vmul.f32 %v3207, %v3868
    %v3870 = vmul.f32 %v3212, %v3868
    %v3871 = vmul.f32 %v3217, %v3868
    %v3872 = vmul.f32 %v3222, %v3868
    %v3873 = vmul.f32 %v3227, %v3868
    %v3874 = vmul.f32 %v3232, %v3868
    %v3875 = vmul.f32 %v3237, %v3868
    %v3876 = vmul.f32 %v3242, %v3868
    %v3877 = vmul.f32 %v3247, %v3868
    %v3878 = vmul.f32 %v3252, %v3868
    %v3879 = vmul.f32 %v3257, %v3868
    %v3880 = vmul.f32 %v3262, %v3868
    %v3881 = vmul.f32 %v3267, %v3868
    %v3882 = vmul.f32 %v3272, %v3868
    %v3883 = vmul.f32 %v3277, %v3868
    %v3884 = vmul.f32 %v3282, %v3868
    %v3885 = vadd.f32 %v3849, %v3869
    %v3886 = vadd.f32 %v3850, %v3870
    %v3887 = vadd.f32 %v3851, %v3871
    %v3888 = vadd.f32 %v3852, %v3872
    %v3889 = vadd.f32 %v3853, %v3873
    %v3890 = vadd.f32 %v3854, %v3874
    %v3891 = vadd.f32 %v3855, %v3875
    %v3892 = vadd.f32 %v3856, %v3876
    %v3893 = vadd.f32 %v3857, %v3877
    %v3894 = vadd.f32 %v3858, %v3878
    %v3895 = vadd.f32 %v3859, %v3879
    %v3896 = vadd.f32 %v3860, %v3880
    %v3897 = vadd.f32 %v3861, %v3881
    %v3898 = vadd.f32 %v3862, %v3882
    %v3899 = vadd.f32 %v3863, %v3883
    %v3900 = vadd.f32 %v3864, %v3884
    %v3901 = vlaneseq
    %v3902 = vshrl.u32 %v3901, 7
    %v3903 = vsub.s32 2, %v3902
    %v3904 = vrot.slane %v2623, %v3903
    %v3905 = vmul.f32 %v3287, %v3904
    %v3906 = vmul.f32 %v3292, %v3904
    %v3907 = vmul.f32 %v3297, %v3904
    %v3908 = vmul.f32 %v3302, %v3904
    %v3909 = vmul.f32 %v3307, %v3904
    %v3910 = vmul.f32 %v3312, %v3904
    %v3911 = vmul.f32 %v3317, %v3904
    %v3912 = vmul.f32 %v3322, %v3904
    %v3913 = vmul.f32 %v3327, %v3904
    %v3914 = vmul.f32 %v3332, %v3904
    %v3915 = vmul.f32 %v3337, %v3904
    %v3916 = vmul.f32 %v3342, %v3904
    %v3917 = vmul.f32 %v3347, %v3904
    %v3918 = vmul.f32 %v3352, %v3904
    %v3919 = vmul.f32 %v3357, %v3904
    %v3920 = vmul.f32 %v3362, %v3904
    %v3921 = vadd.f32 %v3885, %v3905
    %v3922 = vadd.f32 %v3886, %v3906
    %v3923 = vadd.f32 %v3887, %v3907
    %v3924 = vadd.f32 %v3888, %v3908
    %v3925 = vadd.f32 %v3889, %v3909
    %v3926 = vadd.f32 %v3890, %v3910
    %v3927 = vadd.f32 %v3891, %v3911
    %v3928 = vadd.f32 %v3892, %v3912
    %v3929 = vadd.f32 %v3893, %v3913
    %v3930 = vadd.f32 %v3894, %v3914
    %v3931 = vadd.f32 %v3895, %v3915
    %v3932 = vadd.f32 %v3896, %v3916
    %v3933 = vadd.f32 %v3897, %v3917
    %v3934 = vadd.f32 %v3898, %v3918
    %v3935 = vadd.f32 %v3899, %v3919
    %v3936 = vadd.f32 %v3900, %v3920
    %v3937 = vlaneseq
    %v3938 = vshrl.u32 %v3937, 7
    %v3939 = vsub.s32 3, %v3938
    %v3940 = vrot.slane %v2623, %v3939
    %v3941 = vmul.f32 %v3367, %v3940
    %v3942 = vmul.f32 %v3372, %v3940
    %v3943 = vmul.f32 %v3377, %v3940
    %v3944 = vmul.f32 %v3382, %v3940
    %v3945 = vmul.f32 %v3387, %v3940
    %v3946 = vmul.f32 %v3392, %v3940
    %v3947 = vmul.f32 %v3397, %v3940
    %v3948 = vmul.f32 %v3402, %v3940
    %v3949 = vmul.f32 %v3407, %v3940
    %v3950 = vmul.f32 %v3412, %v3940
    %v3951 = vmul.f32 %v3417, %v3940
    %v3952 = vmul.f32 %v3422, %v3940
    %v3953 = vmul.f32 %v3427, %v3940
    %v3954 = vmul.f32 %v3432, %v3940
    %v3955 = vmul.f32 %v3437, %v3940
    %v3956 = vmul.f32 %v3442, %v3940
    %v3957 = vadd.f32 %v3921, %v3941
    %v3958 = vadd.f32 %v3922, %v3942
    %v3959 = vadd.f32 %v3923, %v3943
    %v3960 = vadd.f32 %v3924, %v3944
    %v3961 = vadd.f32 %v3925, %v3945
    %v3962 = vadd.f32 %v3926, %v3946
    %v3963 = vadd.f32 %v3927, %v3947
    %v3964 = vadd.f32 %v3928, %v3948
    %v3965 = vadd.f32 %v3929, %v3949
    %v3966 = vadd.f32 %v3930, %v3950
    %v3967 = vadd.f32 %v3931, %v3951
    %v3968 = vadd.f32 %v3932, %v3952
    %v3969 = vadd.f32 %v3933, %v3953
    %v3970 = vadd.f32 %v3934, %v3954
    %v3971 = vadd.f32 %v3935, %v3955
    %v3972 = vadd.f32 %v3936, %v3956
    %v3973 = vlaneseq
    %v3974 = vshrl.u32 %v3973, 7
    %v3975 = vsub.s32 4, %v3974
    %v3976 = vrot.slane %v2623, %v3975
    %v3977 = vmul.f32 %v3447, %v3976
    %v3978 = vmul.f32 %v3452, %v3976
    %v3979 = vmul.f32 %v3457, %v3976
    %v3980 = vmul.f32 %v3462, %v3976
    %v3981 = vmul.f32 %v3467, %v3976
    %v3982 = vmul.f32 %v3472, %v3976
    %v3983 = vmul.f32 %v3477, %v3976
    %v3984 = vmul.f32 %v3482, %v3976
    %v3985 = vmul.f32 %v3487, %v3976
    %v3986 = vmul.f32 %v3492, %v3976
    %v3987 = vmul.f32 %v3497, %v3976
    %v3988 = vmul.f32 %v3502, %v3976
    %v3989 = vmul.f32 %v3507, %v3976
    %v3990 = vmul.f32 %v3512, %v3976
    %v3991 = vmul.f32 %v3517, %v3976
    %v3992 = vmul.f32 %v3522, %v3976
    %v3993 = vadd.f32 %v3957, %v3977
    %v3994 = vadd.f32 %v3958, %v3978
    %v3995 = vadd.f32 %v3959, %v3979
    %v3996 = vadd.f32 %v3960, %v3980
    %v3997 = vadd.f32 %v3961, %v3981
    %v3998 = vadd.f32 %v3962, %v3982
    %v3999 = vadd.f32 %v3963, %v3983
    %v4000 = vadd.f32 %v3964, %v3984
    %v4001 = vadd.f32 %v3965, %v3985
    %v4002 = vadd.f32 %v3966, %v3986
    %v4003 = vadd.f32 %v3967, %v3987
    %v4004 = vadd.f32 %v3968, %v3988
    %v4005 = vadd.f32 %v3969, %v3989
    %v4006 = vadd.f32 %v3970, %v3990
    %v4007 = vadd.f32 %v3971, %v3991
    %v4008 = vadd.f32 %v3972, %v3992
    %v4009 = vlaneseq
    %v4010 = vshrl.u32 %v4009, 7
    %v4011 = vsub.s32 5, %v4010
    %v4012 = vrot.slane %v2623, %v4011
    %v4013 = vmul.f32 %v3527, %v4012
    %v4014 = vmul.f32 %v3532, %v4012
    %v4015 = vmul.f32 %v3537, %v4012
    %v4016 = vmul.f32 %v3542, %v4012
    %v4017 = vmul.f32 %v3547, %v4012
    %v4018 = vmul.f32 %v3552, %v4012
    %v4019 = vmul.f32 %v3557, %v4012
    %v4020 = vmul.f32 %v3562, %v4012
    %v4021 = vmul.f32 %v3567, %v4012
    %v4022 = vmul.f32 %v3572, %v4012
    %v4023 = vmul.f32 %v3577, %v4012
    %v4024 = vmul.f32 %v3582, %v4012
    %v4025 = vmul.f32 %v3587, %v4012
    %v4026 = vmul.f32 %v3592, %v4012
    %v4027 = vmul.f32 %v3597, %v4012
    %v4028 = vmul.f32 %v3602, %v4012
    %v4029 = vadd.f32 %v3993, %v4013
    %v4030 = vadd.f32 %v3994, %v4014
    %v4031 = vadd.f32 %v3995, %v4015
    %v4032 = vadd.f32 %v3996, %v4016
    %v4033 = vadd.f32 %v3997, %v4017
    %v4034 = vadd.f32 %v3998, %v4018
    %v4035 = vadd.f32 %v3999, %v4019
    %v4036 = vadd.f32 %v4000, %v4020
    %v4037 = vadd.f32 %v4001, %v4021
    %v4038 = vadd.f32 %v4002, %v4022
    %v4039 = vadd.f32 %v4003, %v4023
    %v4040 = vadd.f32 %v4004, %v4024
    %v4041 = vadd.f32 %v4005, %v4025
    %v4042 = vadd.f32 %v4006, %v4026
    %v4043 = vadd.f32 %v4007, %v4027
    %v4044 = vadd.f32 %v4008, %v4028
    %v4045 = vlaneseq
    %v4046 = vshrl.u32 %v4045, 7
    %v4047 = vsub.s32 6, %v4046
    %v4048 = vrot.slane %v2623, %v4047
    %v4049 = vmul.f32 %v3607, %v4048
    %v4050 = vmul.f32 %v3612, %v4048
    %v4051 = vmul.f32 %v3617, %v4048
    %v4052 = vmul.f32 %v3622, %v4048
    %v4053 = vmul.f32 %v3627, %v4048
    %v4054 = vmul.f32 %v3632, %v4048
    %v4055 = vmul.f32 %v3637, %v4048
    %v4056 = vmul.f32 %v3642, %v4048
    %v4057 = vmul.f32 %v3647, %v4048
    %v4058 = vmul.f32 %v3652, %v4048
    %v4059 = vmul.f32 %v3657, %v4048
    %v4060 = vmul.f32 %v3662, %v4048
    %v4061 = vmul.f32 %v3667, %v4048
    %v4062 = vmul.f32 %v3672, %v4048
    %v4063 = vmul.f32 %v3677, %v4048
    %v4064 = vmul.f32 %v3682, %v4048
    %v4065 = vadd.f32 %v4029, %v4049
    %v4066 = vadd.f32 %v4030, %v4050
    %v4067 = vadd.f32 %v4031, %v4051
    %v4068 = vadd.f32 %v4032, %v4052
    %v4069 = vadd.f32 %v4033, %v4053
    %v4070 = vadd.f32 %v4034, %v4054
    %v4071 = vadd.f32 %v4035, %v4055
    %v4072 = vadd.f32 %v4036, %v4056
    %v4073 = vadd.f32 %v4037, %v4057
    %v4074 = vadd.f32 %v4038, %v4058
    %v4075 = vadd.f32 %v4039, %v4059
    %v4076 = vadd.f32 %v4040, %v4060
    %v4077 = vadd.f32 %v4041, %v4061
    %v4078 = vadd.f32 %v4042, %v4062
    %v4079 = vadd.f32 %v4043, %v4063
    %v4080 = vadd.f32 %v4044, %v4064
    %v4081 = vlaneseq
    %v4082 = vshrl.u32 %v4081, 7
    %v4083 = vsub.s32 7, %v4082
    %v4084 = vrot.slane %v2623, %v4083
    %v4085 = vmul.f32 %v3687, %v4084
    %v4086 = vmul.f32 %v3692, %v4084
    %v4087 = vmul.f32 %v3697, %v4084
    %v4088 = vmul.f32 %v3702, %v4084
    %v4089 = vmul.f32 %v3707, %v4084
    %v4090 = vmul.f32 %v3712, %v4084
    %v4091 = vmul.f32 %v3717, %v4084
    %v4092 = vmul.f32 %v3722, %v4084
    %v4093 = vmul.f32 %v3727, %v4084
    %v4094 = vmul.f32 %v3732, %v4084
    %v4095 = vmul.f32 %v3737, %v4084
    %v4096 = vmul.f32 %v3742, %v4084
    %v4097 = vmul.f32 %v3747, %v4084
    %v4098 = vmul.f32 %v3752, %v4084
    %v4099 = vmul.f32 %v3757, %v4084
    %v4100 = vmul.f32 %v3762, %v4084
    %v4101 = vadd.f32 %v4065, %v4085
    %v4102 = vadd.f32 %v4066, %v4086
    %v4103 = vadd.f32 %v4067, %v4087
    %v4104 = vadd.f32 %v4068, %v4088
    %v4105 = vadd.f32 %v4069, %v4089
    %v4106 = vadd.f32 %v4070, %v4090
    %v4107 = vadd.f32 %v4071, %v4091
    %v4108 = vadd.f32 %v4072, %v4092
    %v4109 = vadd.f32 %v4073, %v4093
    %v4110 = vadd.f32 %v4074, %v4094
    %v4111 = vadd.f32 %v4075, %v4095
    %v4112 = vadd.f32 %v4076, %v4096
    %v4113 = vadd.f32 %v4077, %v4097
    %v4114 = vadd.f32 %v4078, %v4098
    %v4115 = vadd.f32 %v4079, %v4099
    %v4116 = vadd.f32 %v4080, %v4100
    %v4117 = vlaneseq
    %v4118 = vshrl.u32 %v4117, 7
    %v4119 = vsub.s32 0, %v4118
    %v4120 = vrot.slane %v2624, %v4119
    %v4121 = vmul.f32 %v3767, %v4120
    %v4122 = vmul.f32 %v3772, %v4120
    %v4123 = vmul.f32 %v3777, %v4120
    %v4124 = vmul.f32 %v3782, %v4120
    %v4125 = vmul.f32 %v3787, %v4120
    %v4126 = vmul.f32 %v3792, %v4120
    %v4127 = vmul.f32 %v3797, %v4120
    %v4128 = vmul.f32 %v3802, %v4120
    %v4129 = vmul.f32 %v3807, %v4120
    %v4130 = vmul.f32 %v3812, %v4120
    %v4131 = vmul.f32 %v3817, %v4120
    %v4132 = vmul.f32 %v3822, %v4120
    %v4133 = vmul.f32 %v3827, %v4120
    %v4134 = vmul.f32 %v3832, %v4120
    %v4135 = vmul.f32 %v3837, %v4120
    %v4136 = vmul.f32 %v3842, %v4120
    %v4137 = vadd.f32 %v4101, %v4121
    %v4138 = vadd.f32 %v4102, %v4122
    %v4139 = vadd.f32 %v4103, %v4123
    %v4140 = vadd.f32 %v4104, %v4124
    %v4141 = vadd.f32 %v4105, %v4125
    %v4142 = vadd.f32 %v4106, %v4126
    %v4143 = vadd.f32 %v4107, %v4127
    %v4144 = vadd.f32 %v4108, %v4128
    %v4145 = vadd.f32 %v4109, %v4129
    %v4146 = vadd.f32 %v4110, %v4130
    %v4147 = vadd.f32 %v4111, %v4131
    %v4148 = vadd.f32 %v4112, %v4132
    %v4149 = vadd.f32 %v4113, %v4133
    %v4150 = vadd.f32 %v4114, %v4134
    %v4151 = vadd.f32 %v4115, %v4135
    %v4152 = vadd.f32 %v4116, %v4136
    %v4154 = vsel %vm226, %v4137, 0
    %v4157 = vsel %vm226, %v4138, 0
    %v4160 = vsel %vm226, %v4139, 0
    %v4163 = vsel %vm226, %v4140, 0
    %v4166 = vsel %vm226, %v4141, 0
    %v4169 = vsel %vm226, %v4142, 0
    %v4172 = vsel %vm226, %v4143, 0
    %v4175 = vsel %vm226, %v4144, 0
    %v4178 = vsel %vm226, %v4145, 0
    %v4181 = vsel %vm226, %v4146, 0
    %v4184 = vsel %vm226, %v4147, 0
    %v4187 = vsel %vm226, %v4148, 0
    %v4190 = vsel %vm226, %v4149, 0
    %v4193 = vsel %vm226, %v4150, 0
    %v4196 = vsel %vm226, %v4151, 0
    %v4199 = vsel %vm226, %v4152, 0
    %4201 = vmatprep.subr.mxu0 0.0
    %4202 = vmatpush1.msra.mxu0 %v2625
    %4203 = vmatprep.subr.mxu0 0.0
    %4204 = vmatpush1.msra.mxu0 %v2626
    %4205 = vmatprep.subr.mxu0 0.0
    %4206 = vmatpush1.msra.mxu0 0.0
    %4207 = vmatprep.subr.mxu0 0.0
    %4208 = vmatpush1.msra.mxu0 0.0
    %4209 = vmatprep.subr.mxu0 0.0
    %4210 = vmatpush1.msra.mxu0 0.0
    %4211 = vmatprep.subr.mxu0 0.0
    %4212 = vmatpush1.msra.mxu0 0.0
    %4213 = vmatprep.subr.mxu0 0.0
    %4214 = vmatpush1.msra.mxu0 0.0
    %4215 = vmatprep.subr.mxu0 0.0
    %4216 = vmatpush1.msra.mxu0 0.0
    %4217 = vmatprep.subr.mxu0 0.0
    %4218 = vmatpush1.msra.mxu0 0.0
    %4219 = vmatprep.subr.mxu0 0.0
    %4220 = vmatpush1.msra.mxu0 0.0
    %4221 = vmatprep.subr.mxu0 0.0
    %4222 = vmatpush1.msra.mxu0 0.0
    %4223 = vmatprep.subr.mxu0 0.0
    %4224 = vmatpush1.msra.mxu0 0.0
    %4225 = vmatprep.subr.mxu0 0.0
    %4226 = vmatpush1.msra.mxu0 0.0
    %4227 = vmatprep.subr.mxu0 0.0
    %4228 = vmatpush1.msra.mxu0 0.0
    %4229 = vmatprep.subr.mxu0 0.0
    %4230 = vmatpush1.msra.mxu0 0.0
    %4231 = vmatprep.subr.mxu0 0.0
    %4232 = vmatpush1.msra.mxu0 0.0
    %4233 = vmatprep.subr.mxu0 0.0
    %4234 = vmatpush1.msra.mxu0 0.0
    %4235 = vmatprep.subr.mxu0 0.0
    %4236 = vmatpush1.msra.mxu0 0.0
    %4237 = vmatprep.subr.mxu0 0.0
    %4238 = vmatpush1.msra.mxu0 0.0
    %4239 = vmatprep.subr.mxu0 0.0
    %4240 = vmatpush1.msra.mxu0 0.0
    %4241 = vmatprep.subr.mxu0 0.0
    %4242 = vmatpush1.msra.mxu0 0.0
    %4243 = vmatprep.subr.mxu0 0.0
    %4244 = vmatpush1.msra.mxu0 0.0
    %4245 = vmatprep.subr.mxu0 0.0
    %4246 = vmatpush1.msra.mxu0 0.0
    %4247 = vmatprep.subr.mxu0 0.0
    %4248 = vmatpush1.msra.mxu0 0.0
    %4249 = vmatprep.subr.mxu0 0.0
    %4250 = vmatpush1.msra.mxu0 0.0
    %4251 = vmatprep.subr.mxu0 0.0
    %4252 = vmatpush1.msra.mxu0 0.0
    %4253 = vmatprep.subr.mxu0 0.0
    %4254 = vmatpush1.msra.mxu0 0.0
    %4255 = vmatprep.subr.mxu0 0.0
    %4256 = vmatpush1.msra.mxu0 0.0
    %4257 = vmatprep.subr.mxu0 0.0
    %4258 = vmatpush1.msra.mxu0 0.0
    %4259 = vmatprep.subr.mxu0 0.0
    %4260 = vmatpush1.msra.mxu0 0.0
    %4261 = vmatprep.subr.mxu0 0.0
    %4262 = vmatpush1.msra.mxu0 0.0
    %4263 = vmatprep.subr.mxu0 0.0
    %4264 = vmatpush1.msra.mxu0 0.0
    %4265 = vmatprep.mubr.f32.mxu0 0.0
    %4266 = vmatmul.mubr.f32.gmra.mrb[0].mxu0 %v4154
    %v4267 = vpop.f32.mrb[0].mxu0
    %v4268 = vadd.f32 0.0, %v4267
    %v4269 = vpop.f32.mrb[0].mxu0
    %4270 = vmatprep.mubr.f32.mxu0 0.0
    %4271 = vmatmul.mubr.f32.gmra.mrb[0].mxu0 %v4157
    %v4272 = vpop.f32.mrb[0].mxu0
    %v4273 = vadd.f32 0.0, %v4272
    %v4274 = vpop.f32.mrb[0].mxu0
    %4275 = vmatprep.mubr.f32.mxu0 0.0
    %4276 = vmatmul.mubr.f32.gmra.mrb[0].mxu0 %v4160
    %v4277 = vpop.f32.mrb[0].mxu0
    %v4278 = vadd.f32 0.0, %v4277
    %v4279 = vpop.f32.mrb[0].mxu0
    %4280 = vmatprep.mubr.f32.mxu0 0.0
    %4281 = vmatmul.mubr.f32.gmra.mrb[0].mxu0 %v4163
    %v4282 = vpop.f32.mrb[0].mxu0
    %v4283 = vadd.f32 0.0, %v4282
    %v4284 = vpop.f32.mrb[0].mxu0
    %4285 = vmatprep.mubr.f32.mxu0 0.0
    %4286 = vmatmul.mubr.f32.gmra.mrb[0].mxu0 %v4166
    %v4287 = vpop.f32.mrb[0].mxu0
    %v4288 = vadd.f32 0.0, %v4287
    %v4289 = vpop.f32.mrb[0].mxu0
    %4290 = vmatprep.mubr.f32.mxu0 0.0
    %4291 = vmatmul.mubr.f32.gmra.mrb[0].mxu0 %v4169
    %v4292 = vpop.f32.mrb[0].mxu0
    %v4293 = vadd.f32 0.0, %v4292
    %v4294 = vpop.f32.mrb[0].mxu0
    %4295 = vmatprep.mubr.f32.mxu0 0.0
    %4296 = vmatmul.mubr.f32.gmra.mrb[0].mxu0 %v4172
    %v4297 = vpop.f32.mrb[0].mxu0
    %v4298 = vadd.f32 0.0, %v4297
    %v4299 = vpop.f32.mrb[0].mxu0
    %4300 = vmatprep.mubr.f32.mxu0 0.0
    %4301 = vmatmul.mubr.f32.gmra.mrb[0].mxu0 %v4175
    %v4302 = vpop.f32.mrb[0].mxu0
    %v4303 = vadd.f32 0.0, %v4302
    %v4304 = vpop.f32.mrb[0].mxu0
    %4305 = vmatprep.mubr.f32.mxu0 0.0
    %4306 = vmatmul.mubr.f32.gmra.mrb[0].mxu0 %v4178
    %v4307 = vpop.f32.mrb[0].mxu0
    %v4308 = vadd.f32 0.0, %v4307
    %v4309 = vpop.f32.mrb[0].mxu0
    %4310 = vmatprep.mubr.f32.mxu0 0.0
    %4311 = vmatmul.mubr.f32.gmra.mrb[0].mxu0 %v4181
    %v4312 = vpop.f32.mrb[0].mxu0
    %v4313 = vadd.f32 0.0, %v4312
    %v4314 = vpop.f32.mrb[0].mxu0
    %4315 = vmatprep.mubr.f32.mxu0 0.0
    %4316 = vmatmul.mubr.f32.gmra.mrb[0].mxu0 %v4184
    %v4317 = vpop.f32.mrb[0].mxu0
    %v4318 = vadd.f32 0.0, %v4317
    %v4319 = vpop.f32.mrb[0].mxu0
    %4320 = vmatprep.mubr.f32.mxu0 0.0
    %4321 = vmatmul.mubr.f32.gmra.mrb[0].mxu0 %v4187
    %v4322 = vpop.f32.mrb[0].mxu0
    %v4323 = vadd.f32 0.0, %v4322
    %v4324 = vpop.f32.mrb[0].mxu0
    %4325 = vmatprep.mubr.f32.mxu0 0.0
    %4326 = vmatmul.mubr.f32.gmra.mrb[0].mxu0 %v4190
    %v4327 = vpop.f32.mrb[0].mxu0
    %v4328 = vadd.f32 0.0, %v4327
    %v4329 = vpop.f32.mrb[0].mxu0
    %4330 = vmatprep.mubr.f32.mxu0 0.0
    %4331 = vmatmul.mubr.f32.gmra.mrb[0].mxu0 %v4193
    %v4332 = vpop.f32.mrb[0].mxu0
    %v4333 = vadd.f32 0.0, %v4332
    %v4334 = vpop.f32.mrb[0].mxu0
    %4335 = vmatprep.mubr.f32.mxu0 0.0
    %4336 = vmatmul.mubr.f32.gmra.mrb[0].mxu0 %v4196
    %v4337 = vpop.f32.mrb[0].mxu0
    %v4338 = vadd.f32 0.0, %v4337
    %v4339 = vpop.f32.mrb[0].mxu0
    %4340 = vmatprep.mubr.f32.mxu0 0.0
    %4341 = vmatmul.mubr.f32.gmra.mrb[0].mxu0 %v4199
    %v4342 = vpop.f32.mrb[0].mxu0
    %v4343 = vadd.f32 0.0, %v4342
    %v4344 = vpop.f32.mrb[0].mxu0
    %4345 = vdwg.mxu0
    %v4346 = vmax.f32 %v4268, 0.0
    %v4347 = vmax.f32 %v4273, 0.0
    %v4348 = vmax.f32 %v4278, 0.0
    %v4349 = vmax.f32 %v4283, 0.0
    %v4350 = vmax.f32 %v4288, 0.0
    %v4351 = vmax.f32 %v4293, 0.0
    %v4352 = vmax.f32 %v4298, 0.0
    %v4353 = vmax.f32 %v4303, 0.0
    %v4354 = vmax.f32 %v4308, 0.0
    %v4355 = vmax.f32 %v4313, 0.0
    %v4356 = vmax.f32 %v4318, 0.0
    %v4357 = vmax.f32 %v4323, 0.0
    %v4358 = vmax.f32 %v4328, 0.0
    %v4359 = vmax.f32 %v4333, 0.0
    %v4360 = vmax.f32 %v4338, 0.0
    %v4361 = vmax.f32 %v4343, 0.0
    %v4362 = vld [vmem:[#allocation19] sm:$0xff]
    %v4363 = vld [vmem:[#allocation19 + $0x8] sm:$0xff]
    %v4364 = vld [vmem:[#allocation19 + $0x10] sm:$0xff]
    %v4365 = vld [vmem:[#allocation19 + $0x18] sm:$0xff]
    %v4366 = vld [vmem:[#allocation19 + $0x20] sm:$0xff]
    %v4367 = vld [vmem:[#allocation19 + $0x28] sm:$0xff]
    %v4368 = vld [vmem:[#allocation19 + $0x30] sm:$0xff]
    %v4369 = vld [vmem:[#allocation19 + $0x38] sm:$0xff]
    %v4370 = vld [vmem:[#allocation19 + $0x40] sm:$0xff]
    %v4371 = vld [vmem:[#allocation19 + $0x48] sm:$0xff]
    %v4372 = vld [vmem:[#allocation19 + $0x50] sm:$0xff]
    %v4373 = vld [vmem:[#allocation19 + $0x58] sm:$0xff]
    %v4374 = vld [vmem:[#allocation19 + $0x60] sm:$0xff]
    %v4375 = vld [vmem:[#allocation19 + $0x68] sm:$0xff]
    %v4376 = vld [vmem:[#allocation19 + $0x70] sm:$0xff]
    %v4377 = vld [vmem:[#allocation19 + $0x78] sm:$0xff]
    %v4378 = vld [vmem:[#allocation19 + $0x80] sm:$0xff]
    %v4379 = vld [vmem:[#allocation19 + $0x88] sm:$0xff]
    %v4380 = vld [vmem:[#allocation19 + $0x90] sm:$0xff]
    %v4381 = vld [vmem:[#allocation19 + $0x98] sm:$0xff]
    %v4382 = vld [vmem:[#allocation19 + $0xa0] sm:$0xff]
    %v4383 = vld [vmem:[#allocation19 + $0xa8] sm:$0xff]
    %v4384 = vld [vmem:[#allocation19 + $0xb0] sm:$0xff]
    %v4385 = vld [vmem:[#allocation19 + $0xb8] sm:$0xff]
    %v4386 = vld [vmem:[#allocation19 + $0xc0] sm:$0xff]
    %v4387 = vld [vmem:[#allocation19 + $0xc8] sm:$0xff]
    %v4388 = vld [vmem:[#allocation19 + $0xd0] sm:$0xff]
    %v4389 = vld [vmem:[#allocation19 + $0xd8] sm:$0xff]
    %v4390 = vld [vmem:[#allocation19 + $0xe0] sm:$0xff]
    %v4391 = vld [vmem:[#allocation19 + $0xe8] sm:$0xff]
    %v4392 = vld [vmem:[#allocation19 + $0xf0] sm:$0xff]
    %v4393 = vld [vmem:[#allocation19 + $0xf8] sm:$0xff]
    %v4394 = vld [vmem:[#allocation19 + $0x100] sm:$0xff]
    %v4395 = vld [vmem:[#allocation19 + $0x108] sm:$0xff]
    %v4396 = vld [vmem:[#allocation19 + $0x110] sm:$0xff]
    %v4397 = vld [vmem:[#allocation19 + $0x118] sm:$0xff]
    %v4398 = vld [vmem:[#allocation19 + $0x120] sm:$0xff]
    %v4399 = vld [vmem:[#allocation19 + $0x128] sm:$0xff]
    %v4400 = vld [vmem:[#allocation19 + $0x130] sm:$0xff]
    %v4401 = vld [vmem:[#allocation19 + $0x138] sm:$0xff]
    %v4402 = vld [vmem:[#allocation19 + $0x140] sm:$0xff]
    %v4403 = vld [vmem:[#allocation19 + $0x148] sm:$0xff]
    %v4404 = vld [vmem:[#allocation19 + $0x150] sm:$0xff]
    %v4405 = vld [vmem:[#allocation19 + $0x158] sm:$0xff]
    %v4406 = vld [vmem:[#allocation19 + $0x160] sm:$0xff]
    %v4407 = vld [vmem:[#allocation19 + $0x168] sm:$0xff]
    %v4408 = vld [vmem:[#allocation19 + $0x170] sm:$0xff]
    %v4409 = vld [vmem:[#allocation19 + $0x178] sm:$0xff]
    %v4410 = vld [vmem:[#allocation19 + $0x180] sm:$0xff]
    %v4411 = vld [vmem:[#allocation19 + $0x188] sm:$0xff]
    %v4412 = vld [vmem:[#allocation19 + $0x190] sm:$0xff]
    %v4413 = vld [vmem:[#allocation19 + $0x198] sm:$0xff]
    %v4414 = vld [vmem:[#allocation19 + $0x1a0] sm:$0xff]
    %v4415 = vld [vmem:[#allocation19 + $0x1a8] sm:$0xff]
    %v4416 = vld [vmem:[#allocation19 + $0x1b0] sm:$0xff]
    %v4417 = vld [vmem:[#allocation19 + $0x1b8] sm:$0xff]
    %v4418 = vld [vmem:[#allocation19 + $0x1c0] sm:$0xff]
    %v4419 = vld [vmem:[#allocation19 + $0x1c8] sm:$0xff]
    %v4420 = vld [vmem:[#allocation19 + $0x1d0] sm:$0xff]
    %v4421 = vld [vmem:[#allocation19 + $0x1d8] sm:$0xff]
    %v4422 = vld [vmem:[#allocation19 + $0x1e0] sm:$0xff]
    %v4423 = vld [vmem:[#allocation19 + $0x1e8] sm:$0xff]
    %v4424 = vld [vmem:[#allocation19 + $0x1f0] sm:$0xff]
    %v4425 = vld [vmem:[#allocation19 + $0x1f8] sm:$0xff]
    %v4426 = vld [vmem:[#allocation19 + $0x200] sm:$0xff]
    %v4427 = vld [vmem:[#allocation19 + $0x208] sm:$0xff]
    %v4428 = vld [vmem:[#allocation19 + $0x210] sm:$0xff]
    %v4429 = vld [vmem:[#allocation19 + $0x218] sm:$0xff]
    %v4430 = vld [vmem:[#allocation19 + $0x220] sm:$0xff]
    %v4431 = vld [vmem:[#allocation19 + $0x228] sm:$0xff]
    %v4432 = vld [vmem:[#allocation19 + $0x230] sm:$0xff]
    %v4433 = vld [vmem:[#allocation19 + $0x238] sm:$0xff]
    %v4434 = vld [vmem:[#allocation19 + $0x240] sm:$0xff]
    %v4435 = vld [vmem:[#allocation19 + $0x248] sm:$0xff]
    %v4436 = vld [vmem:[#allocation19 + $0x250] sm:$0xff]
    %v4437 = vld [vmem:[#allocation19 + $0x258] sm:$0xff]
    %v4438 = vld [vmem:[#allocation19 + $0x260] sm:$0xff]
    %v4439 = vld [vmem:[#allocation19 + $0x268] sm:$0xff]
    %v4440 = vld [vmem:[#allocation19 + $0x270] sm:$0xff]
    %v4441 = vld [vmem:[#allocation19 + $0x278] sm:$0xff]
    %v4442 = vld [vmem:[#allocation19 + $0x280] sm:$0xff]
    %v4443 = vld [vmem:[#allocation19 + $0x288] sm:$0xff]
    %v4444 = vld [vmem:[#allocation19 + $0x290] sm:$0xff]
    %v4445 = vld [vmem:[#allocation19 + $0x298] sm:$0xff]
    %v4446 = vld [vmem:[#allocation19 + $0x2a0] sm:$0xff]
    %v4447 = vld [vmem:[#allocation19 + $0x2a8] sm:$0xff]
    %v4448 = vld [vmem:[#allocation19 + $0x2b0] sm:$0xff]
    %v4449 = vld [vmem:[#allocation19 + $0x2b8] sm:$0xff]
    %v4450 = vld [vmem:[#allocation19 + $0x2c0] sm:$0xff]
    %v4451 = vld [vmem:[#allocation19 + $0x2c8] sm:$0xff]
    %v4452 = vld [vmem:[#allocation19 + $0x2d0] sm:$0xff]
    %v4453 = vld [vmem:[#allocation19 + $0x2d8] sm:$0xff]
    %v4454 = vld [vmem:[#allocation19 + $0x2e0] sm:$0xff]
    %v4455 = vld [vmem:[#allocation19 + $0x2e8] sm:$0xff]
    %v4456 = vld [vmem:[#allocation19 + $0x2f0] sm:$0xff]
    %v4457 = vld [vmem:[#allocation19 + $0x2f8] sm:$0xff]
    %v4458 = vld [vmem:[#allocation19 + $0x300] sm:$0xff]
    %v4459 = vld [vmem:[#allocation19 + $0x308] sm:$0xff]
    %v4460 = vld [vmem:[#allocation19 + $0x310] sm:$0xff]
    %v4461 = vld [vmem:[#allocation19 + $0x318] sm:$0xff]
    %v4462 = vld [vmem:[#allocation19 + $0x320] sm:$0xff]
    %v4463 = vld [vmem:[#allocation19 + $0x328] sm:$0xff]
    %v4464 = vld [vmem:[#allocation19 + $0x330] sm:$0xff]
    %v4465 = vld [vmem:[#allocation19 + $0x338] sm:$0xff]
    %v4466 = vld [vmem:[#allocation19 + $0x340] sm:$0xff]
    %v4467 = vld [vmem:[#allocation19 + $0x348] sm:$0xff]
    %v4468 = vld [vmem:[#allocation19 + $0x350] sm:$0xff]
    %v4469 = vld [vmem:[#allocation19 + $0x358] sm:$0xff]
    %v4470 = vld [vmem:[#allocation19 + $0x360] sm:$0xff]
    %v4471 = vld [vmem:[#allocation19 + $0x368] sm:$0xff]
    %v4472 = vld [vmem:[#allocation19 + $0x370] sm:$0xff]
    %v4473 = vld [vmem:[#allocation19 + $0x378] sm:$0xff]
    %v4474 = vld [vmem:[#allocation19 + $0x380] sm:$0xff]
    %v4475 = vld [vmem:[#allocation19 + $0x388] sm:$0xff]
    %v4476 = vld [vmem:[#allocation19 + $0x390] sm:$0xff]
    %v4477 = vld [vmem:[#allocation19 + $0x398] sm:$0xff]
    %v4478 = vld [vmem:[#allocation19 + $0x3a0] sm:$0xff]
    %v4479 = vld [vmem:[#allocation19 + $0x3a8] sm:$0xff]
    %v4480 = vld [vmem:[#allocation19 + $0x3b0] sm:$0xff]
    %v4481 = vld [vmem:[#allocation19 + $0x3b8] sm:$0xff]
    %v4482 = vld [vmem:[#allocation19 + $0x3c0] sm:$0xff]
    %v4483 = vld [vmem:[#allocation19 + $0x3c8] sm:$0xff]
    %v4484 = vld [vmem:[#allocation19 + $0x3d0] sm:$0xff]
    %v4485 = vld [vmem:[#allocation19 + $0x3d8] sm:$0xff]
    %v4486 = vld [vmem:[#allocation19 + $0x3e0] sm:$0xff]
    %v4487 = vld [vmem:[#allocation19 + $0x3e8] sm:$0xff]
    %v4488 = vld [vmem:[#allocation19 + $0x3f0] sm:$0xff]
    %v4489 = vld [vmem:[#allocation19 + $0x3f8] sm:$0xff]
    %v4490 = vld [vmem:[#allocation19 + $0x400] sm:$0xff]
    %v4491 = vld [vmem:[#allocation19 + $0x408] sm:$0xff]
    %v4492 = vld [vmem:[#allocation19 + $0x410] sm:$0xff]
    %v4493 = vld [vmem:[#allocation19 + $0x418] sm:$0xff]
    %v4494 = vld [vmem:[#allocation19 + $0x420] sm:$0xff]
    %v4495 = vld [vmem:[#allocation19 + $0x428] sm:$0xff]
    %v4496 = vld [vmem:[#allocation19 + $0x430] sm:$0xff]
    %v4497 = vld [vmem:[#allocation19 + $0x438] sm:$0xff]
    %v4498 = vld [vmem:[#allocation19 + $0x440] sm:$0xff]
    %v4499 = vld [vmem:[#allocation19 + $0x448] sm:$0xff]
    %v4500 = vld [vmem:[#allocation19 + $0x450] sm:$0xff]
    %v4501 = vld [vmem:[#allocation19 + $0x458] sm:$0xff]
    %v4502 = vld [vmem:[#allocation19 + $0x460] sm:$0xff]
    %v4503 = vld [vmem:[#allocation19 + $0x468] sm:$0xff]
    %v4504 = vld [vmem:[#allocation19 + $0x470] sm:$0xff]
    %v4505 = vld [vmem:[#allocation19 + $0x478] sm:$0xff]
    %v4506 = vld [vmem:[%s17] sm:$0xff]
    %v4507 = vld [vmem:[%s17 + $0x8] sm:$0x1]
    %v4508 = vld [vmem:[%s18] sm:$0xff]
    %v4509 = vld [vmem:[%s18 + $0x8] sm:$0xff]
    %4510 = vmatprep.subr.mxu0 0.0
    %4511 = vmatpush1.msra.mxu0 %v4346
    %4512 = vmatprep.subr.mxu0 0.0
    %4513 = vmatpush1.msra.mxu0 %v4347
    %4514 = vmatprep.subr.mxu0 0.0
    %4515 = vmatpush1.msra.mxu0 %v4348
    %4516 = vmatprep.subr.mxu0 0.0
    %4517 = vmatpush1.msra.mxu0 %v4349
    %4518 = vmatprep.subr.mxu0 0.0
    %4519 = vmatpush1.msra.mxu0 %v4350
    %4520 = vmatprep.subr.mxu0 0.0
    %4521 = vmatpush1.msra.mxu0 %v4351
    %4522 = vmatprep.subr.mxu0 0.0
    %4523 = vmatpush1.msra.mxu0 %v4352
    %4524 = vmatprep.subr.mxu0 0.0
    %4525 = vmatpush1.msra.mxu0 %v4353
    %4526 = vmatprep.subr.mxu0 0.0
    %4527 = vmatpush1.msra.mxu0 %v4354
    %4528 = vmatprep.subr.mxu0 0.0
    %4529 = vmatpush1.msra.mxu0 %v4355
    %4530 = vmatprep.subr.mxu0 0.0
    %4531 = vmatpush1.msra.mxu0 %v4356
    %4532 = vmatprep.subr.mxu0 0.0
    %4533 = vmatpush1.msra.mxu0 %v4357
    %4534 = vmatprep.subr.mxu0 0.0
    %4535 = vmatpush1.msra.mxu0 %v4358
    %4536 = vmatprep.subr.mxu0 0.0
    %4537 = vmatpush1.msra.mxu0 %v4359
    %4538 = vmatprep.subr.mxu0 0.0
    %4539 = vmatpush1.msra.mxu0 %v4360
    %4540 = vmatprep.subr.mxu0 0.0
    %4541 = vmatpush1.msra.mxu0 %v4361
    %4542 = vmatprep.subr.mxu0 0.0
    %4543 = vmatpush1.msra.mxu0 0.0
    %4544 = vmatprep.subr.mxu0 0.0
    %4545 = vmatpush1.msra.mxu0 0.0
    %4546 = vmatprep.subr.mxu0 0.0
    %4547 = vmatpush1.msra.mxu0 0.0
    %4548 = vmatprep.subr.mxu0 0.0
    %4549 = vmatpush1.msra.mxu0 0.0
    %4550 = vmatprep.subr.mxu0 0.0
    %4551 = vmatpush1.msra.mxu0 0.0
    %4552 = vmatprep.subr.mxu0 0.0
    %4553 = vmatpush1.msra.mxu0 0.0
    %4554 = vmatprep.subr.mxu0 0.0
    %4555 = vmatpush1.msra.mxu0 0.0
    %4556 = vmatprep.subr.mxu0 0.0
    %4557 = vmatpush1.msra.mxu0 0.0
    %4558 = vmatprep.subr.mxu0 0.0
    %4559 = vmatpush1.msra.mxu0 0.0
    %4560 = vmatprep.subr.mxu0 0.0
    %4561 = vmatpush1.msra.mxu0 0.0
    %4562 = vmatprep.subr.mxu0 0.0
    %4563 = vmatpush1.msra.mxu0 0.0
    %4564 = vmatprep.subr.mxu0 0.0
    %4565 = vmatpush1.msra.mxu0 0.0
    %4566 = vmatprep.subr.mxu0 0.0
    %4567 = vmatpush1.msra.mxu0 0.0
    %4568 = vmatprep.subr.mxu0 0.0
    %4569 = vmatpush1.msra.mxu0 0.0
    %4570 = vmatprep.subr.mxu0 0.0
    %4571 = vmatpush1.msra.mxu0 0.0
    %4572 = vmatprep.subr.mxu0 0.0
    %4573 = vmatpush1.msra.mxu0 0.0
    %4574 = vmatprep.mubr.f32.mxu0 0.0
    %4575 = vmatmul.mubr.f32.gmra.mrb[0].mxu0 %v4362
    %v4576 = vpop.f32.mrb[0].mxu0
    %v4577 = vadd.f32 0.0, %v4576
    %v4578 = vpop.f32.mrb[0].mxu0
    %4579 = vmatprep.mubr.f32.mxu0 0.0
    %4580 = vmatmul.mubr.f32.gmra.mrb[0].mxu0 %v4363
    %v4581 = vpop.f32.mrb[0].mxu0
    %v4582 = vadd.f32 0.0, %v4581
    %v4583 = vpop.f32.mrb[0].mxu0
    %4584 = vmatprep.mubr.f32.mxu0 0.0
    %4585 = vmatmul.mubr.f32.gmra.mrb[0].mxu0 %v4364
    %v4586 = vpop.f32.mrb[0].mxu0
    %v4587 = vadd.f32 0.0, %v4586
    %v4588 = vpop.f32.mrb[0].mxu0
    %4589 = vmatprep.mubr.f32.mxu0 0.0
    %4590 = vmatmul.mubr.f32.gmra.mrb[0].mxu0 %v4365
    %v4591 = vpop.f32.mrb[0].mxu0
    %v4592 = vadd.f32 0.0, %v4591
    %v4593 = vpop.f32.mrb[0].mxu0
    %4594 = vmatprep.mubr.f32.mxu0 0.0
    %4595 = vmatmul.mubr.f32.gmra.mrb[0].mxu0 %v4366
    %v4596 = vpop.f32.mrb[0].mxu0
    %v4597 = vadd.f32 0.0, %v4596
    %v4598 = vpop.f32.mrb[0].mxu0
    %4599 = vmatprep.mubr.f32.mxu0 0.0
    %4600 = vmatmul.mubr.f32.gmra.mrb[0].mxu0 %v4367
    %v4601 = vpop.f32.mrb[0].mxu0
    %v4602 = vadd.f32 0.0, %v4601
    %v4603 = vpop.f32.mrb[0].mxu0
    %4604 = vmatprep.mubr.f32.mxu0 0.0
    %4605 = vmatmul.mubr.f32.gmra.mrb[0].mxu0 %v4368
    %v4606 = vpop.f32.mrb[0].mxu0
    %v4607 = vadd.f32 0.0, %v4606
    %v4608 = vpop.f32.mrb[0].mxu0
    %4609 = vmatprep.mubr.f32.mxu0 0.0
    %4610 = vmatmul.mubr.f32.gmra.mrb[0].mxu0 %v4369
    %v4611 = vpop.f32.mrb[0].mxu0
    %v4612 = vadd.f32 0.0, %v4611
    %v4613 = vpop.f32.mrb[0].mxu0
    %4614 = vmatprep.mubr.f32.mxu0 0.0
    %4615 = vmatmul.mubr.f32.gmra.mrb[0].mxu0 %v4370
    %v4616 = vpop.f32.mrb[0].mxu0
    %v4617 = vadd.f32 0.0, %v4616
    %v4618 = vpop.f32.mrb[0].mxu0
    %4619 = vmatprep.mubr.f32.mxu0 0.0
    %4620 = vmatmul.mubr.f32.gmra.mrb[0].mxu0 %v4371
    %v4621 = vpop.f32.mrb[0].mxu0
    %v4622 = vadd.f32 0.0, %v4621
    %v4623 = vpop.f32.mrb[0].mxu0
    %4624 = vmatprep.mubr.f32.mxu0 0.0
    %4625 = vmatmul.mubr.f32.gmra.mrb[0].mxu0 %v4372
    %v4626 = vpop.f32.mrb[0].mxu0
    %v4627 = vadd.f32 0.0, %v4626
    %v4628 = vpop.f32.mrb[0].mxu0
    %4629 = vmatprep.mubr.f32.mxu0 0.0
    %4630 = vmatmul.mubr.f32.gmra.mrb[0].mxu0 %v4373
    %v4631 = vpop.f32.mrb[0].mxu0
    %v4632 = vadd.f32 0.0, %v4631
    %v4633 = vpop.f32.mrb[0].mxu0
    %4634 = vmatprep.mubr.f32.mxu0 0.0
    %4635 = vmatmul.mubr.f32.gmra.mrb[0].mxu0 %v4374
    %v4636 = vpop.f32.mrb[0].mxu0
    %v4637 = vadd.f32 0.0, %v4636
    %v4638 = vpop.f32.mrb[0].mxu0
    %4639 = vmatprep.mubr.f32.mxu0 0.0
    %4640 = vmatmul.mubr.f32.gmra.mrb[0].mxu0 %v4375
    %v4641 = vpop.f32.mrb[0].mxu0
    %v4642 = vadd.f32 0.0, %v4641
    %v4643 = vpop.f32.mrb[0].mxu0
    %4644 = vmatprep.mubr.f32.mxu0 0.0
    %4645 = vmatmul.mubr.f32.gmra.mrb[0].mxu0 %v4376
    %v4646 = vpop.f32.mrb[0].mxu0
    %v4647 = vadd.f32 0.0, %v4646
    %v4648 = vpop.f32.mrb[0].mxu0
    %4649 = vmatprep.mubr.f32.mxu0 0.0
    %4650 = vmatmul.mubr.f32.gmra.mrb[0].mxu0 %v4377
    %v4651 = vpop.f32.mrb[0].mxu0
    %v4652 = vadd.f32 0.0, %v4651
    %v4653 = vpop.f32.mrb[0].mxu0
    %4654 = vmatprep.mubr.f32.mxu0 0.0
    %4655 = vmatmul.mubr.f32.gmra.mrb[0].mxu0 %v4378
    %v4656 = vpop.f32.mrb[0].mxu0
    %v4657 = vadd.f32 0.0, %v4656
    %v4658 = vpop.f32.mrb[0].mxu0
    %4659 = vmatprep.mubr.f32.mxu0 0.0
    %4660 = vmatmul.mubr.f32.gmra.mrb[0].mxu0 %v4379
    %v4661 = vpop.f32.mrb[0].mxu0
    %v4662 = vadd.f32 0.0, %v4661
    %v4663 = vpop.f32.mrb[0].mxu0
    %4664 = vmatprep.mubr.f32.mxu0 0.0
    %4665 = vmatmul.mubr.f32.gmra.mrb[0].mxu0 %v4380
    %v4666 = vpop.f32.mrb[0].mxu0
    %v4667 = vadd.f32 0.0, %v4666
    %v4668 = vpop.f32.mrb[0].mxu0
    %4669 = vmatprep.mubr.f32.mxu0 0.0
    %4670 = vmatmul.mubr.f32.gmra.mrb[0].mxu0 %v4381
    %v4671 = vpop.f32.mrb[0].mxu0
    %v4672 = vadd.f32 0.0, %v4671
    %v4673 = vpop.f32.mrb[0].mxu0
    %4674 = vmatprep.mubr.f32.mxu0 0.0
    %4675 = vmatmul.mubr.f32.gmra.mrb[0].mxu0 %v4382
    %v4676 = vpop.f32.mrb[0].mxu0
    %v4677 = vadd.f32 0.0, %v4676
    %v4678 = vpop.f32.mrb[0].mxu0
    %4679 = vmatprep.mubr.f32.mxu0 0.0
    %4680 = vmatmul.mubr.f32.gmra.mrb[0].mxu0 %v4383
    %v4681 = vpop.f32.mrb[0].mxu0
    %v4682 = vadd.f32 0.0, %v4681
    %v4683 = vpop.f32.mrb[0].mxu0
    %4684 = vmatprep.mubr.f32.mxu0 0.0
    %4685 = vmatmul.mubr.f32.gmra.mrb[0].mxu0 %v4384
    %v4686 = vpop.f32.mrb[0].mxu0
    %v4687 = vadd.f32 0.0, %v4686
    %v4688 = vpop.f32.mrb[0].mxu0
    %4689 = vmatprep.mubr.f32.mxu0 0.0
    %4690 = vmatmul.mubr.f32.gmra.mrb[0].mxu0 %v4385
    %v4691 = vpop.f32.mrb[0].mxu0
    %v4692 = vadd.f32 0.0, %v4691
    %v4693 = vpop.f32.mrb[0].mxu0
    %4694 = vmatprep.mubr.f32.mxu0 0.0
    %4695 = vmatmul.mubr.f32.gmra.mrb[0].mxu0 %v4386
    %v4696 = vpop.f32.mrb[0].mxu0
    %v4697 = vadd.f32 0.0, %v4696
    %v4698 = vpop.f32.mrb[0].mxu0
    %4699 = vmatprep.mubr.f32.mxu0 0.0
    %4700 = vmatmul.mubr.f32.gmra.mrb[0].mxu0 %v4387
    %v4701 = vpop.f32.mrb[0].mxu0
    %v4702 = vadd.f32 0.0, %v4701
    %v4703 = vpop.f32.mrb[0].mxu0
    %4704 = vmatprep.mubr.f32.mxu0 0.0
    %4705 = vmatmul.mubr.f32.gmra.mrb[0].mxu0 %v4388
    %v4706 = vpop.f32.mrb[0].mxu0
    %v4707 = vadd.f32 0.0, %v4706
    %v4708 = vpop.f32.mrb[0].mxu0
    %4709 = vmatprep.mubr.f32.mxu0 0.0
    %4710 = vmatmul.mubr.f32.gmra.mrb[0].mxu0 %v4389
    %v4711 = vpop.f32.mrb[0].mxu0
    %v4712 = vadd.f32 0.0, %v4711
    %v4713 = vpop.f32.mrb[0].mxu0
    %4714 = vmatprep.mubr.f32.mxu0 0.0
    %4715 = vmatmul.mubr.f32.gmra.mrb[0].mxu0 %v4390
    %v4716 = vpop.f32.mrb[0].mxu0
    %v4717 = vadd.f32 0.0, %v4716
    %v4718 = vpop.f32.mrb[0].mxu0
    %4719 = vmatprep.mubr.f32.mxu0 0.0
    %4720 = vmatmul.mubr.f32.gmra.mrb[0].mxu0 %v4391
    %v4721 = vpop.f32.mrb[0].mxu0
    %v4722 = vadd.f32 0.0, %v4721
    %v4723 = vpop.f32.mrb[0].mxu0
    %4724 = vmatprep.mubr.f32.mxu0 0.0
    %4725 = vmatmul.mubr.f32.gmra.mrb[0].mxu0 %v4392
    %v4726 = vpop.f32.mrb[0].mxu0
    %v4727 = vadd.f32 0.0, %v4726
    %v4728 = vpop.f32.mrb[0].mxu0
    %4729 = vmatprep.mubr.f32.mxu0 0.0
    %4730 = vmatmul.mubr.f32.gmra.mrb[0].mxu0 %v4393
    %v4731 = vpop.f32.mrb[0].mxu0
    %v4732 = vadd.f32 0.0, %v4731
    %v4733 = vpop.f32.mrb[0].mxu0
    %4734 = vmatprep.mubr.f32.mxu0 0.0
    %4735 = vmatmul.mubr.f32.gmra.mrb[0].mxu0 %v4394
    %v4736 = vpop.f32.mrb[0].mxu0
    %v4737 = vadd.f32 0.0, %v4736
    %v4738 = vpop.f32.mrb[0].mxu0
    %4739 = vmatprep.mubr.f32.mxu0 0.0
    %4740 = vmatmul.mubr.f32.gmra.mrb[0].mxu0 %v4395
    %v4741 = vpop.f32.mrb[0].mxu0
    %v4742 = vadd.f32 0.0, %v4741
    %v4743 = vpop.f32.mrb[0].mxu0
    %4744 = vmatprep.mubr.f32.mxu0 0.0
    %4745 = vmatmul.mubr.f32.gmra.mrb[0].mxu0 %v4396
    %v4746 = vpop.f32.mrb[0].mxu0
    %v4747 = vadd.f32 0.0, %v4746
    %v4748 = vpop.f32.mrb[0].mxu0
    %4749 = vmatprep.mubr.f32.mxu0 0.0
    %4750 = vmatmul.mubr.f32.gmra.mrb[0].mxu0 %v4397
    %v4751 = vpop.f32.mrb[0].mxu0
    %v4752 = vadd.f32 0.0, %v4751
    %v4753 = vpop.f32.mrb[0].mxu0
    %4754 = vmatprep.mubr.f32.mxu0 0.0
    %4755 = vmatmul.mubr.f32.gmra.mrb[0].mxu0 %v4398
    %v4756 = vpop.f32.mrb[0].mxu0
    %v4757 = vadd.f32 0.0, %v4756
    %v4758 = vpop.f32.mrb[0].mxu0
    %4759 = vmatprep.mubr.f32.mxu0 0.0
    %4760 = vmatmul.mubr.f32.gmra.mrb[0].mxu0 %v4399
    %v4761 = vpop.f32.mrb[0].mxu0
    %v4762 = vadd.f32 0.0, %v4761
    %v4763 = vpop.f32.mrb[0].mxu0
    %4764 = vmatprep.mubr.f32.mxu0 0.0
    %4765 = vmatmul.mubr.f32.gmra.mrb[0].mxu0 %v4400
    %v4766 = vpop.f32.mrb[0].mxu0
    %v4767 = vadd.f32 0.0, %v4766
    %v4768 = vpop.f32.mrb[0].mxu0
    %4769 = vmatprep.mubr.f32.mxu0 0.0
    %4770 = vmatmul.mubr.f32.gmra.mrb[0].mxu0 %v4401
    %v4771 = vpop.f32.mrb[0].mxu0
    %v4772 = vadd.f32 0.0, %v4771
    %v4773 = vpop.f32.mrb[0].mxu0
    %4774 = vmatprep.mubr.f32.mxu0 0.0
    %4775 = vmatmul.mubr.f32.gmra.mrb[0].mxu0 %v4402
    %v4776 = vpop.f32.mrb[0].mxu0
    %v4777 = vadd.f32 0.0, %v4776
    %v4778 = vpop.f32.mrb[0].mxu0
    %4779 = vmatprep.mubr.f32.mxu0 0.0
    %4780 = vmatmul.mubr.f32.gmra.mrb[0].mxu0 %v4403
    %v4781 = vpop.f32.mrb[0].mxu0
    %v4782 = vadd.f32 0.0, %v4781
    %v4783 = vpop.f32.mrb[0].mxu0
    %4784 = vmatprep.mubr.f32.mxu0 0.0
    %4785 = vmatmul.mubr.f32.gmra.mrb[0].mxu0 %v4404
    %v4786 = vpop.f32.mrb[0].mxu0
    %v4787 = vadd.f32 0.0, %v4786
    %v4788 = vpop.f32.mrb[0].mxu0
    %4789 = vmatprep.mubr.f32.mxu0 0.0
    %4790 = vmatmul.mubr.f32.gmra.mrb[0].mxu0 %v4405
    %v4791 = vpop.f32.mrb[0].mxu0
    %v4792 = vadd.f32 0.0, %v4791
    %v4793 = vpop.f32.mrb[0].mxu0
    %4794 = vmatprep.mubr.f32.mxu0 0.0
    %4795 = vmatmul.mubr.f32.gmra.mrb[0].mxu0 %v4406
    %v4796 = vpop.f32.mrb[0].mxu0
    %v4797 = vadd.f32 0.0, %v4796
    %v4798 = vpop.f32.mrb[0].mxu0
    %4799 = vmatprep.mubr.f32.mxu0 0.0
    %4800 = vmatmul.mubr.f32.gmra.mrb[0].mxu0 %v4407
    %v4801 = vpop.f32.mrb[0].mxu0
    %v4802 = vadd.f32 0.0, %v4801
    %v4803 = vpop.f32.mrb[0].mxu0
    %4804 = vmatprep.mubr.f32.mxu0 0.0
    %4805 = vmatmul.mubr.f32.gmra.mrb[0].mxu0 %v4408
    %v4806 = vpop.f32.mrb[0].mxu0
    %v4807 = vadd.f32 0.0, %v4806
    %v4808 = vpop.f32.mrb[0].mxu0
    %4809 = vmatprep.mubr.f32.mxu0 0.0
    %4810 = vmatmul.mubr.f32.gmra.mrb[0].mxu0 %v4409
    %v4811 = vpop.f32.mrb[0].mxu0
    %v4812 = vadd.f32 0.0, %v4811
    %v4813 = vpop.f32.mrb[0].mxu0
    %4814 = vmatprep.mubr.f32.mxu0 0.0
    %4815 = vmatmul.mubr.f32.gmra.mrb[0].mxu0 %v4410
    %v4816 = vpop.f32.mrb[0].mxu0
    %v4817 = vadd.f32 0.0, %v4816
    %v4818 = vpop.f32.mrb[0].mxu0
    %4819 = vmatprep.mubr.f32.mxu0 0.0
    %4820 = vmatmul.mubr.f32.gmra.mrb[0].mxu0 %v4411
    %v4821 = vpop.f32.mrb[0].mxu0
    %v4822 = vadd.f32 0.0, %v4821
    %v4823 = vpop.f32.mrb[0].mxu0
    %4824 = vmatprep.mubr.f32.mxu0 0.0
    %4825 = vmatmul.mubr.f32.gmra.mrb[0].mxu0 %v4412
    %v4826 = vpop.f32.mrb[0].mxu0
    %v4827 = vadd.f32 0.0, %v4826
    %v4828 = vpop.f32.mrb[0].mxu0
    %4829 = vmatprep.mubr.f32.mxu0 0.0
    %4830 = vmatmul.mubr.f32.gmra.mrb[0].mxu0 %v4413
    %v4831 = vpop.f32.mrb[0].mxu0
    %v4832 = vadd.f32 0.0, %v4831
    %v4833 = vpop.f32.mrb[0].mxu0
    %4834 = vmatprep.mubr.f32.mxu0 0.0
    %4835 = vmatmul.mubr.f32.gmra.mrb[0].mxu0 %v4414
    %v4836 = vpop.f32.mrb[0].mxu0
    %v4837 = vadd.f32 0.0, %v4836
    %v4838 = vpop.f32.mrb[0].mxu0
    %4839 = vmatprep.mubr.f32.mxu0 0.0
    %4840 = vmatmul.mubr.f32.gmra.mrb[0].mxu0 %v4415
    %v4841 = vpop.f32.mrb[0].mxu0
    %v4842 = vadd.f32 0.0, %v4841
    %v4843 = vpop.f32.mrb[0].mxu0
    %4844 = vmatprep.mubr.f32.mxu0 0.0
    %4845 = vmatmul.mubr.f32.gmra.mrb[0].mxu0 %v4416
    %v4846 = vpop.f32.mrb[0].mxu0
    %v4847 = vadd.f32 0.0, %v4846
    %v4848 = vpop.f32.mrb[0].mxu0
    %4849 = vmatprep.mubr.f32.mxu0 0.0
    %4850 = vmatmul.mubr.f32.gmra.mrb[0].mxu0 %v4417
    %v4851 = vpop.f32.mrb[0].mxu0
    %v4852 = vadd.f32 0.0, %v4851
    %v4853 = vpop.f32.mrb[0].mxu0
    %4854 = vmatprep.mubr.f32.mxu0 0.0
    %4855 = vmatmul.mubr.f32.gmra.mrb[0].mxu0 %v4418
    %v4856 = vpop.f32.mrb[0].mxu0
    %v4857 = vadd.f32 0.0, %v4856
    %v4858 = vpop.f32.mrb[0].mxu0
    %4859 = vmatprep.mubr.f32.mxu0 0.0
    %4860 = vmatmul.mubr.f32.gmra.mrb[0].mxu0 %v4419
    %v4861 = vpop.f32.mrb[0].mxu0
    %v4862 = vadd.f32 0.0, %v4861
    %v4863 = vpop.f32.mrb[0].mxu0
    %4864 = vmatprep.mubr.f32.mxu0 0.0
    %4865 = vmatmul.mubr.f32.gmra.mrb[0].mxu0 %v4420
    %v4866 = vpop.f32.mrb[0].mxu0
    %v4867 = vadd.f32 0.0, %v4866
    %v4868 = vpop.f32.mrb[0].mxu0
    %4869 = vmatprep.mubr.f32.mxu0 0.0
    %4870 = vmatmul.mubr.f32.gmra.mrb[0].mxu0 %v4421
    %v4871 = vpop.f32.mrb[0].mxu0
    %v4872 = vadd.f32 0.0, %v4871
    %v4873 = vpop.f32.mrb[0].mxu0
    %4874 = vmatprep.mubr.f32.mxu0 0.0
    %4875 = vmatmul.mubr.f32.gmra.mrb[0].mxu0 %v4422
    %v4876 = vpop.f32.mrb[0].mxu0
    %v4877 = vadd.f32 0.0, %v4876
    %v4878 = vpop.f32.mrb[0].mxu0
    %4879 = vmatprep.mubr.f32.mxu0 0.0
    %4880 = vmatmul.mubr.f32.gmra.mrb[0].mxu0 %v4423
    %v4881 = vpop.f32.mrb[0].mxu0
    %v4882 = vadd.f32 0.0, %v4881
    %v4883 = vpop.f32.mrb[0].mxu0
    %4884 = vmatprep.mubr.f32.mxu0 0.0
    %4885 = vmatmul.mubr.f32.gmra.mrb[0].mxu0 %v4424
    %v4886 = vpop.f32.mrb[0].mxu0
    %v4887 = vadd.f32 0.0, %v4886
    %v4888 = vpop.f32.mrb[0].mxu0
    %4889 = vmatprep.mubr.f32.mxu0 0.0
    %4890 = vmatmul.mubr.f32.gmra.mrb[0].mxu0 %v4425
    %v4891 = vpop.f32.mrb[0].mxu0
    %v4892 = vadd.f32 0.0, %v4891
    %v4893 = vpop.f32.mrb[0].mxu0
    %4894 = vmatprep.mubr.f32.mxu0 0.0
    %4895 = vmatmul.mubr.f32.gmra.mrb[0].mxu0 %v4426
    %v4896 = vpop.f32.mrb[0].mxu0
    %v4897 = vadd.f32 0.0, %v4896
    %v4898 = vpop.f32.mrb[0].mxu0
    %4899 = vmatprep.mubr.f32.mxu0 0.0
    %4900 = vmatmul.mubr.f32.gmra.mrb[0].mxu0 %v4427
    %v4901 = vpop.f32.mrb[0].mxu0
    %v4902 = vadd.f32 0.0, %v4901
    %v4903 = vpop.f32.mrb[0].mxu0
    %4904 = vmatprep.mubr.f32.mxu0 0.0
    %4905 = vmatmul.mubr.f32.gmra.mrb[0].mxu0 %v4428
    %v4906 = vpop.f32.mrb[0].mxu0
    %v4907 = vadd.f32 0.0, %v4906
    %v4908 = vpop.f32.mrb[0].mxu0
    %4909 = vmatprep.mubr.f32.mxu0 0.0
    %4910 = vmatmul.mubr.f32.gmra.mrb[0].mxu0 %v4429
    %v4911 = vpop.f32.mrb[0].mxu0
    %v4912 = vadd.f32 0.0, %v4911
    %v4913 = vpop.f32.mrb[0].mxu0
    %4914 = vmatprep.mubr.f32.mxu0 0.0
    %4915 = vmatmul.mubr.f32.gmra.mrb[0].mxu0 %v4430
    %v4916 = vpop.f32.mrb[0].mxu0
    %v4917 = vadd.f32 0.0, %v4916
    %v4918 = vpop.f32.mrb[0].mxu0
    %4919 = vmatprep.mubr.f32.mxu0 0.0
    %4920 = vmatmul.mubr.f32.gmra.mrb[0].mxu0 %v4431
    %v4921 = vpop.f32.mrb[0].mxu0
    %v4922 = vadd.f32 0.0, %v4921
    %v4923 = vpop.f32.mrb[0].mxu0
    %4924 = vmatprep.mubr.f32.mxu0 0.0
    %4925 = vmatmul.mubr.f32.gmra.mrb[0].mxu0 %v4432
    %v4926 = vpop.f32.mrb[0].mxu0
    %v4927 = vadd.f32 0.0, %v4926
    %v4928 = vpop.f32.mrb[0].mxu0
    %4929 = vmatprep.mubr.f32.mxu0 0.0
    %4930 = vmatmul.mubr.f32.gmra.mrb[0].mxu0 %v4433
    %v4931 = vpop.f32.mrb[0].mxu0
    %v4932 = vadd.f32 0.0, %v4931
    %v4933 = vpop.f32.mrb[0].mxu0
    %4934 = vmatprep.mubr.f32.mxu0 0.0
    %4935 = vmatmul.mubr.f32.gmra.mrb[0].mxu0 %v4434
    %v4936 = vpop.f32.mrb[0].mxu0
    %v4937 = vadd.f32 0.0, %v4936
    %v4938 = vpop.f32.mrb[0].mxu0
    %4939 = vmatprep.mubr.f32.mxu0 0.0
    %4940 = vmatmul.mubr.f32.gmra.mrb[0].mxu0 %v4435
    %v4941 = vpop.f32.mrb[0].mxu0
    %v4942 = vadd.f32 0.0, %v4941
    %v4943 = vpop.f32.mrb[0].mxu0
    %4944 = vmatprep.mubr.f32.mxu0 0.0
    %4945 = vmatmul.mubr.f32.gmra.mrb[0].mxu0 %v4436
    %v4946 = vpop.f32.mrb[0].mxu0
    %v4947 = vadd.f32 0.0, %v4946
    %v4948 = vpop.f32.mrb[0].mxu0
    %4949 = vmatprep.mubr.f32.mxu0 0.0
    %4950 = vmatmul.mubr.f32.gmra.mrb[0].mxu0 %v4437
    %v4951 = vpop.f32.mrb[0].mxu0
    %v4952 = vadd.f32 0.0, %v4951
    %v4953 = vpop.f32.mrb[0].mxu0
    %4954 = vmatprep.mubr.f32.mxu0 0.0
    %4955 = vmatmul.mubr.f32.gmra.mrb[0].mxu0 %v4438
    %v4956 = vpop.f32.mrb[0].mxu0
    %v4957 = vadd.f32 0.0, %v4956
    %v4958 = vpop.f32.mrb[0].mxu0
    %4959 = vmatprep.mubr.f32.mxu0 0.0
    %4960 = vmatmul.mubr.f32.gmra.mrb[0].mxu0 %v4439
    %v4961 = vpop.f32.mrb[0].mxu0
    %v4962 = vadd.f32 0.0, %v4961
    %v4963 = vpop.f32.mrb[0].mxu0
    %4964 = vmatprep.mubr.f32.mxu0 0.0
    %4965 = vmatmul.mubr.f32.gmra.mrb[0].mxu0 %v4440
    %v4966 = vpop.f32.mrb[0].mxu0
    %v4967 = vadd.f32 0.0, %v4966
    %v4968 = vpop.f32.mrb[0].mxu0
    %4969 = vmatprep.mubr.f32.mxu0 0.0
    %4970 = vmatmul.mubr.f32.gmra.mrb[0].mxu0 %v4441
    %v4971 = vpop.f32.mrb[0].mxu0
    %v4972 = vadd.f32 0.0, %v4971
    %v4973 = vpop.f32.mrb[0].mxu0
    %4974 = vmatprep.mubr.f32.mxu0 0.0
    %4975 = vmatmul.mubr.f32.gmra.mrb[0].mxu0 %v4442
    %v4976 = vpop.f32.mrb[0].mxu0
    %v4977 = vadd.f32 0.0, %v4976
    %v4978 = vpop.f32.mrb[0].mxu0
    %4979 = vmatprep.mubr.f32.mxu0 0.0
    %4980 = vmatmul.mubr.f32.gmra.mrb[0].mxu0 %v4443
    %v4981 = vpop.f32.mrb[0].mxu0
    %v4982 = vadd.f32 0.0, %v4981
    %v4983 = vpop.f32.mrb[0].mxu0
    %4984 = vmatprep.mubr.f32.mxu0 0.0
    %4985 = vmatmul.mubr.f32.gmra.mrb[0].mxu0 %v4444
    %v4986 = vpop.f32.mrb[0].mxu0
    %v4987 = vadd.f32 0.0, %v4986
    %v4988 = vpop.f32.mrb[0].mxu0
    %4989 = vmatprep.mubr.f32.mxu0 0.0
    %4990 = vmatmul.mubr.f32.gmra.mrb[0].mxu0 %v4445
    %v4991 = vpop.f32.mrb[0].mxu0
    %v4992 = vadd.f32 0.0, %v4991
    %v4993 = vpop.f32.mrb[0].mxu0
    %4994 = vmatprep.mubr.f32.mxu0 0.0
    %4995 = vmatmul.mubr.f32.gmra.mrb[0].mxu0 %v4446
    %v4996 = vpop.f32.mrb[0].mxu0
    %v4997 = vadd.f32 0.0, %v4996
    %v4998 = vpop.f32.mrb[0].mxu0
    %4999 = vmatprep.mubr.f32.mxu0 0.0
    %5000 = vmatmul.mubr.f32.gmra.mrb[0].mxu0 %v4447
    %v5001 = vpop.f32.mrb[0].mxu0
    %v5002 = vadd.f32 0.0, %v5001
    %v5003 = vpop.f32.mrb[0].mxu0
    %5004 = vmatprep.mubr.f32.mxu0 0.0
    %5005 = vmatmul.mubr.f32.gmra.mrb[0].mxu0 %v4448
    %v5006 = vpop.f32.mrb[0].mxu0
    %v5007 = vadd.f32 0.0, %v5006
    %v5008 = vpop.f32.mrb[0].mxu0
    %5009 = vmatprep.mubr.f32.mxu0 0.0
    %5010 = vmatmul.mubr.f32.gmra.mrb[0].mxu0 %v4449
    %v5011 = vpop.f32.mrb[0].mxu0
    %v5012 = vadd.f32 0.0, %v5011
    %v5013 = vpop.f32.mrb[0].mxu0
    %5014 = vmatprep.mubr.f32.mxu0 0.0
    %5015 = vmatmul.mubr.f32.gmra.mrb[0].mxu0 %v4450
    %v5016 = vpop.f32.mrb[0].mxu0
    %v5017 = vadd.f32 0.0, %v5016
    %v5018 = vpop.f32.mrb[0].mxu0
    %5019 = vmatprep.mubr.f32.mxu0 0.0
    %5020 = vmatmul.mubr.f32.gmra.mrb[0].mxu0 %v4451
    %v5021 = vpop.f32.mrb[0].mxu0
    %v5022 = vadd.f32 0.0, %v5021
    %v5023 = vpop.f32.mrb[0].mxu0
    %5024 = vmatprep.mubr.f32.mxu0 0.0
    %5025 = vmatmul.mubr.f32.gmra.mrb[0].mxu0 %v4452
    %v5026 = vpop.f32.mrb[0].mxu0
    %v5027 = vadd.f32 0.0, %v5026
    %v5028 = vpop.f32.mrb[0].mxu0
    %5029 = vmatprep.mubr.f32.mxu0 0.0
    %5030 = vmatmul.mubr.f32.gmra.mrb[0].mxu0 %v4453
    %v5031 = vpop.f32.mrb[0].mxu0
    %v5032 = vadd.f32 0.0, %v5031
    %v5033 = vpop.f32.mrb[0].mxu0
    %5034 = vmatprep.mubr.f32.mxu0 0.0
    %5035 = vmatmul.mubr.f32.gmra.mrb[0].mxu0 %v4454
    %v5036 = vpop.f32.mrb[0].mxu0
    %v5037 = vadd.f32 0.0, %v5036
    %v5038 = vpop.f32.mrb[0].mxu0
    %5039 = vmatprep.mubr.f32.mxu0 0.0
    %5040 = vmatmul.mubr.f32.gmra.mrb[0].mxu0 %v4455
    %v5041 = vpop.f32.mrb[0].mxu0
    %v5042 = vadd.f32 0.0, %v5041
    %v5043 = vpop.f32.mrb[0].mxu0
    %5044 = vmatprep.mubr.f32.mxu0 0.0
    %5045 = vmatmul.mubr.f32.gmra.mrb[0].mxu0 %v4456
    %v5046 = vpop.f32.mrb[0].mxu0
    %v5047 = vadd.f32 0.0, %v5046
    %v5048 = vpop.f32.mrb[0].mxu0
    %5049 = vmatprep.mubr.f32.mxu0 0.0
    %5050 = vmatmul.mubr.f32.gmra.mrb[0].mxu0 %v4457
    %v5051 = vpop.f32.mrb[0].mxu0
    %v5052 = vadd.f32 0.0, %v5051
    %v5053 = vpop.f32.mrb[0].mxu0
    %5054 = vmatprep.mubr.f32.mxu0 0.0
    %5055 = vmatmul.mubr.f32.gmra.mrb[0].mxu0 %v4458
    %v5056 = vpop.f32.mrb[0].mxu0
    %v5057 = vadd.f32 0.0, %v5056
    %v5058 = vpop.f32.mrb[0].mxu0
    %5059 = vmatprep.mubr.f32.mxu0 0.0
    %5060 = vmatmul.mubr.f32.gmra.mrb[0].mxu0 %v4459
    %v5061 = vpop.f32.mrb[0].mxu0
    %v5062 = vadd.f32 0.0, %v5061
    %v5063 = vpop.f32.mrb[0].mxu0
    %5064 = vmatprep.mubr.f32.mxu0 0.0
    %5065 = vmatmul.mubr.f32.gmra.mrb[0].mxu0 %v4460
    %v5066 = vpop.f32.mrb[0].mxu0
    %v5067 = vadd.f32 0.0, %v5066
    %v5068 = vpop.f32.mrb[0].mxu0
    %5069 = vmatprep.mubr.f32.mxu0 0.0
    %5070 = vmatmul.mubr.f32.gmra.mrb[0].mxu0 %v4461
    %v5071 = vpop.f32.mrb[0].mxu0
    %v5072 = vadd.f32 0.0, %v5071
    %v5073 = vpop.f32.mrb[0].mxu0
    %5074 = vmatprep.mubr.f32.mxu0 0.0
    %5075 = vmatmul.mubr.f32.gmra.mrb[0].mxu0 %v4462
    %v5076 = vpop.f32.mrb[0].mxu0
    %v5077 = vadd.f32 0.0, %v5076
    %v5078 = vpop.f32.mrb[0].mxu0
    %5079 = vmatprep.mubr.f32.mxu0 0.0
    %5080 = vmatmul.mubr.f32.gmra.mrb[0].mxu0 %v4463
    %v5081 = vpop.f32.mrb[0].mxu0
    %v5082 = vadd.f32 0.0, %v5081
    %v5083 = vpop.f32.mrb[0].mxu0
    %5084 = vmatprep.mubr.f32.mxu0 0.0
    %5085 = vmatmul.mubr.f32.gmra.mrb[0].mxu0 %v4464
    %v5086 = vpop.f32.mrb[0].mxu0
    %v5087 = vadd.f32 0.0, %v5086
    %v5088 = vpop.f32.mrb[0].mxu0
    %5089 = vmatprep.mubr.f32.mxu0 0.0
    %5090 = vmatmul.mubr.f32.gmra.mrb[0].mxu0 %v4465
    %v5091 = vpop.f32.mrb[0].mxu0
    %v5092 = vadd.f32 0.0, %v5091
    %v5093 = vpop.f32.mrb[0].mxu0
    %5094 = vmatprep.mubr.f32.mxu0 0.0
    %5095 = vmatmul.mubr.f32.gmra.mrb[0].mxu0 %v4466
    %v5096 = vpop.f32.mrb[0].mxu0
    %v5097 = vadd.f32 0.0, %v5096
    %v5098 = vpop.f32.mrb[0].mxu0
    %5099 = vmatprep.mubr.f32.mxu0 0.0
    %5100 = vmatmul.mubr.f32.gmra.mrb[0].mxu0 %v4467
    %v5101 = vpop.f32.mrb[0].mxu0
    %v5102 = vadd.f32 0.0, %v5101
    %v5103 = vpop.f32.mrb[0].mxu0
    %5104 = vmatprep.mubr.f32.mxu0 0.0
    %5105 = vmatmul.mubr.f32.gmra.mrb[0].mxu0 %v4468
    %v5106 = vpop.f32.mrb[0].mxu0
    %v5107 = vadd.f32 0.0, %v5106
    %v5108 = vpop.f32.mrb[0].mxu0
    %5109 = vmatprep.mubr.f32.mxu0 0.0
    %5110 = vmatmul.mubr.f32.gmra.mrb[0].mxu0 %v4469
    %v5111 = vpop.f32.mrb[0].mxu0
    %v5112 = vadd.f32 0.0, %v5111
    %v5113 = vpop.f32.mrb[0].mxu0
    %5114 = vmatprep.mubr.f32.mxu0 0.0
    %5115 = vmatmul.mubr.f32.gmra.mrb[0].mxu0 %v4470
    %v5116 = vpop.f32.mrb[0].mxu0
    %v5117 = vadd.f32 0.0, %v5116
    %v5118 = vpop.f32.mrb[0].mxu0
    %5119 = vmatprep.mubr.f32.mxu0 0.0
    %5120 = vmatmul.mubr.f32.gmra.mrb[0].mxu0 %v4471
    %v5121 = vpop.f32.mrb[0].mxu0
    %v5122 = vadd.f32 0.0, %v5121
    %v5123 = vpop.f32.mrb[0].mxu0
    %5124 = vmatprep.mubr.f32.mxu0 0.0
    %5125 = vmatmul.mubr.f32.gmra.mrb[0].mxu0 %v4472
    %v5126 = vpop.f32.mrb[0].mxu0
    %v5127 = vadd.f32 0.0, %v5126
    %v5128 = vpop.f32.mrb[0].mxu0
    %5129 = vmatprep.mubr.f32.mxu0 0.0
    %5130 = vmatmul.mubr.f32.gmra.mrb[0].mxu0 %v4473
    %v5131 = vpop.f32.mrb[0].mxu0
    %v5132 = vadd.f32 0.0, %v5131
    %v5133 = vpop.f32.mrb[0].mxu0
    %5134 = vmatprep.mubr.f32.mxu0 0.0
    %5135 = vmatmul.mubr.f32.gmra.mrb[0].mxu0 %v4474
    %v5136 = vpop.f32.mrb[0].mxu0
    %v5137 = vadd.f32 0.0, %v5136
    %v5138 = vpop.f32.mrb[0].mxu0
    %5139 = vmatprep.mubr.f32.mxu0 0.0
    %5140 = vmatmul.mubr.f32.gmra.mrb[0].mxu0 %v4475
    %v5141 = vpop.f32.mrb[0].mxu0
    %v5142 = vadd.f32 0.0, %v5141
    %v5143 = vpop.f32.mrb[0].mxu0
    %5144 = vmatprep.mubr.f32.mxu0 0.0
    %5145 = vmatmul.mubr.f32.gmra.mrb[0].mxu0 %v4476
    %v5146 = vpop.f32.mrb[0].mxu0
    %v5147 = vadd.f32 0.0, %v5146
    %v5148 = vpop.f32.mrb[0].mxu0
    %5149 = vmatprep.mubr.f32.mxu0 0.0
    %5150 = vmatmul.mubr.f32.gmra.mrb[0].mxu0 %v4477
    %v5151 = vpop.f32.mrb[0].mxu0
    %v5152 = vadd.f32 0.0, %v5151
    %v5153 = vpop.f32.mrb[0].mxu0
    %5154 = vmatprep.mubr.f32.mxu0 0.0
    %5155 = vmatmul.mubr.f32.gmra.mrb[0].mxu0 %v4478
    %v5156 = vpop.f32.mrb[0].mxu0
    %v5157 = vadd.f32 0.0, %v5156
    %v5158 = vpop.f32.mrb[0].mxu0
    %5159 = vmatprep.mubr.f32.mxu0 0.0
    %5160 = vmatmul.mubr.f32.gmra.mrb[0].mxu0 %v4479
    %v5161 = vpop.f32.mrb[0].mxu0
    %v5162 = vadd.f32 0.0, %v5161
    %v5163 = vpop.f32.mrb[0].mxu0
    %5164 = vmatprep.mubr.f32.mxu0 0.0
    %5165 = vmatmul.mubr.f32.gmra.mrb[0].mxu0 %v4480
    %v5166 = vpop.f32.mrb[0].mxu0
    %v5167 = vadd.f32 0.0, %v5166
    %v5168 = vpop.f32.mrb[0].mxu0
    %5169 = vmatprep.mubr.f32.mxu0 0.0
    %5170 = vmatmul.mubr.f32.gmra.mrb[0].mxu0 %v4481
    %v5171 = vpop.f32.mrb[0].mxu0
    %v5172 = vadd.f32 0.0, %v5171
    %v5173 = vpop.f32.mrb[0].mxu0
    %5174 = vmatprep.mubr.f32.mxu0 0.0
    %5175 = vmatmul.mubr.f32.gmra.mrb[0].mxu0 %v4482
    %v5176 = vpop.f32.mrb[0].mxu0
    %v5177 = vadd.f32 0.0, %v5176
    %v5178 = vpop.f32.mrb[0].mxu0
    %5179 = vmatprep.mubr.f32.mxu0 0.0
    %5180 = vmatmul.mubr.f32.gmra.mrb[0].mxu0 %v4483
    %v5181 = vpop.f32.mrb[0].mxu0
    %v5182 = vadd.f32 0.0, %v5181
    %v5183 = vpop.f32.mrb[0].mxu0
    %5184 = vmatprep.mubr.f32.mxu0 0.0
    %5185 = vmatmul.mubr.f32.gmra.mrb[0].mxu0 %v4484
    %v5186 = vpop.f32.mrb[0].mxu0
    %v5187 = vadd.f32 0.0, %v5186
    %v5188 = vpop.f32.mrb[0].mxu0
    %5189 = vmatprep.mubr.f32.mxu0 0.0
    %5190 = vmatmul.mubr.f32.gmra.mrb[0].mxu0 %v4485
    %v5191 = vpop.f32.mrb[0].mxu0
    %v5192 = vadd.f32 0.0, %v5191
    %v5193 = vpop.f32.mrb[0].mxu0
    %5194 = vmatprep.mubr.f32.mxu0 0.0
    %5195 = vmatmul.mubr.f32.gmra.mrb[0].mxu0 %v4486
    %v5196 = vpop.f32.mrb[0].mxu0
    %v5197 = vadd.f32 0.0, %v5196
    %v5198 = vpop.f32.mrb[0].mxu0
    %5199 = vmatprep.mubr.f32.mxu0 0.0
    %5200 = vmatmul.mubr.f32.gmra.mrb[0].mxu0 %v4487
    %v5201 = vpop.f32.mrb[0].mxu0
    %v5202 = vadd.f32 0.0, %v5201
    %v5203 = vpop.f32.mrb[0].mxu0
    %5204 = vmatprep.mubr.f32.mxu0 0.0
    %5205 = vmatmul.mubr.f32.gmra.mrb[0].mxu0 %v4488
    %v5206 = vpop.f32.mrb[0].mxu0
    %v5207 = vadd.f32 0.0, %v5206
    %v5208 = vpop.f32.mrb[0].mxu0
    %5209 = vmatprep.mubr.f32.mxu0 0.0
    %5210 = vmatmul.mubr.f32.gmra.mrb[0].mxu0 %v4489
    %v5211 = vpop.f32.mrb[0].mxu0
    %v5212 = vadd.f32 0.0, %v5211
    %v5213 = vpop.f32.mrb[0].mxu0
    %5214 = vmatprep.mubr.f32.mxu0 0.0
    %5215 = vmatmul.mubr.f32.gmra.mrb[0].mxu0 %v4490
    %v5216 = vpop.f32.mrb[0].mxu0
    %v5217 = vadd.f32 0.0, %v5216
    %v5218 = vpop.f32.mrb[0].mxu0
    %5219 = vmatprep.mubr.f32.mxu0 0.0
    %5220 = vmatmul.mubr.f32.gmra.mrb[0].mxu0 %v4491
    %v5221 = vpop.f32.mrb[0].mxu0
    %v5222 = vadd.f32 0.0, %v5221
    %v5223 = vpop.f32.mrb[0].mxu0
    %5224 = vmatprep.mubr.f32.mxu0 0.0
    %5225 = vmatmul.mubr.f32.gmra.mrb[0].mxu0 %v4492
    %v5226 = vpop.f32.mrb[0].mxu0
    %v5227 = vadd.f32 0.0, %v5226
    %v5228 = vpop.f32.mrb[0].mxu0
    %5229 = vmatprep.mubr.f32.mxu0 0.0
    %5230 = vmatmul.mubr.f32.gmra.mrb[0].mxu0 %v4493
    %v5231 = vpop.f32.mrb[0].mxu0
    %v5232 = vadd.f32 0.0, %v5231
    %v5233 = vpop.f32.mrb[0].mxu0
    %5234 = vmatprep.mubr.f32.mxu0 0.0
    %5235 = vmatmul.mubr.f32.gmra.mrb[0].mxu0 %v4494
    %v5236 = vpop.f32.mrb[0].mxu0
    %v5237 = vadd.f32 0.0, %v5236
    %v5238 = vpop.f32.mrb[0].mxu0
    %5239 = vmatprep.mubr.f32.mxu0 0.0
    %5240 = vmatmul.mubr.f32.gmra.mrb[0].mxu0 %v4495
    %v5241 = vpop.f32.mrb[0].mxu0
    %v5242 = vadd.f32 0.0, %v5241
    %v5243 = vpop.f32.mrb[0].mxu0
    %5244 = vmatprep.mubr.f32.mxu0 0.0
    %5245 = vmatmul.mubr.f32.gmra.mrb[0].mxu0 %v4496
    %v5246 = vpop.f32.mrb[0].mxu0
    %v5247 = vadd.f32 0.0, %v5246
    %v5248 = vpop.f32.mrb[0].mxu0
    %5249 = vmatprep.mubr.f32.mxu0 0.0
    %5250 = vmatmul.mubr.f32.gmra.mrb[0].mxu0 %v4497
    %v5251 = vpop.f32.mrb[0].mxu0
    %v5252 = vadd.f32 0.0, %v5251
    %v5253 = vpop.f32.mrb[0].mxu0
    %5254 = vmatprep.mubr.f32.mxu0 0.0
    %5255 = vmatmul.mubr.f32.gmra.mrb[0].mxu0 %v4498
    %v5256 = vpop.f32.mrb[0].mxu0
    %v5257 = vadd.f32 0.0, %v5256
    %v5258 = vpop.f32.mrb[0].mxu0
    %5259 = vmatprep.mubr.f32.mxu0 0.0
    %5260 = vmatmul.mubr.f32.gmra.mrb[0].mxu0 %v4499
    %v5261 = vpop.f32.mrb[0].mxu0
    %v5262 = vadd.f32 0.0, %v5261
    %v5263 = vpop.f32.mrb[0].mxu0
    %5264 = vmatprep.mubr.f32.mxu0 0.0
    %5265 = vmatmul.mubr.f32.gmra.mrb[0].mxu0 %v4500
    %v5266 = vpop.f32.mrb[0].mxu0
    %v5267 = vadd.f32 0.0, %v5266
    %v5268 = vpop.f32.mrb[0].mxu0
    %5269 = vmatprep.mubr.f32.mxu0 0.0
    %5270 = vmatmul.mubr.f32.gmra.mrb[0].mxu0 %v4501
    %v5271 = vpop.f32.mrb[0].mxu0
    %v5272 = vadd.f32 0.0, %v5271
    %v5273 = vpop.f32.mrb[0].mxu0
    %5274 = vmatprep.mubr.f32.mxu0 0.0
    %5275 = vmatmul.mubr.f32.gmra.mrb[0].mxu0 %v4502
    %v5276 = vpop.f32.mrb[0].mxu0
    %v5277 = vadd.f32 0.0, %v5276
    %v5278 = vpop.f32.mrb[0].mxu0
    %5279 = vmatprep.mubr.f32.mxu0 0.0
    %5280 = vmatmul.mubr.f32.gmra.mrb[0].mxu0 %v4503
    %v5281 = vpop.f32.mrb[0].mxu0
    %v5282 = vadd.f32 0.0, %v5281
    %v5283 = vpop.f32.mrb[0].mxu0
    %5284 = vmatprep.mubr.f32.mxu0 0.0
    %5285 = vmatmul.mubr.f32.gmra.mrb[0].mxu0 %v4504
    %v5286 = vpop.f32.mrb[0].mxu0
    %v5287 = vadd.f32 0.0, %v5286
    %v5288 = vpop.f32.mrb[0].mxu0
    %5289 = vmatprep.mubr.f32.mxu0 0.0
    %5290 = vmatmul.mubr.f32.gmra.mrb[0].mxu0 %v4505
    %v5291 = vpop.f32.mrb[0].mxu0
    %v5292 = vadd.f32 0.0, %v5291
    %v5293 = vpop.f32.mrb[0].mxu0
    %5294 = vdwg.mxu0
    %v5295 = vlaneseq
    %v5296 = vshrl.u32 %v5295, 7
    %v5297 = vsub.s32 0, %v5296
    %v5298 = vrot.slane %v4506, %v5297
    %v5299 = vmul.f32 %v4577, %v5298
    %v5300 = vmul.f32 %v4582, %v5298
    %v5301 = vmul.f32 %v4587, %v5298
    %v5302 = vmul.f32 %v4592, %v5298
    %v5303 = vmul.f32 %v4597, %v5298
    %v5304 = vmul.f32 %v4602, %v5298
    %v5305 = vmul.f32 %v4607, %v5298
    %v5306 = vmul.f32 %v4612, %v5298
    %v5307 = vmul.f32 %v4617, %v5298
    %v5308 = vmul.f32 %v4622, %v5298
    %v5309 = vmul.f32 %v4627, %v5298
    %v5310 = vmul.f32 %v4632, %v5298
    %v5311 = vmul.f32 %v4637, %v5298
    %v5312 = vmul.f32 %v4642, %v5298
    %v5313 = vmul.f32 %v4647, %v5298
    %v5314 = vmul.f32 %v4652, %v5298
    %v5315 = vlaneseq
    %v5316 = vshrl.u32 %v5315, 7
    %v5317 = vsub.s32 1, %v5316
    %v5318 = vrot.slane %v4506, %v5317
    %v5319 = vmul.f32 %v4657, %v5318
    %v5320 = vmul.f32 %v4662, %v5318
    %v5321 = vmul.f32 %v4667, %v5318
    %v5322 = vmul.f32 %v4672, %v5318
    %v5323 = vmul.f32 %v4677, %v5318
    %v5324 = vmul.f32 %v4682, %v5318
    %v5325 = vmul.f32 %v4687, %v5318
    %v5326 = vmul.f32 %v4692, %v5318
    %v5327 = vmul.f32 %v4697, %v5318
    %v5328 = vmul.f32 %v4702, %v5318
    %v5329 = vmul.f32 %v4707, %v5318
    %v5330 = vmul.f32 %v4712, %v5318
    %v5331 = vmul.f32 %v4717, %v5318
    %v5332 = vmul.f32 %v4722, %v5318
    %v5333 = vmul.f32 %v4727, %v5318
    %v5334 = vmul.f32 %v4732, %v5318
    %v5335 = vadd.f32 %v5299, %v5319
    %v5336 = vadd.f32 %v5300, %v5320
    %v5337 = vadd.f32 %v5301, %v5321
    %v5338 = vadd.f32 %v5302, %v5322
    %v5339 = vadd.f32 %v5303, %v5323
    %v5340 = vadd.f32 %v5304, %v5324
    %v5341 = vadd.f32 %v5305, %v5325
    %v5342 = vadd.f32 %v5306, %v5326
    %v5343 = vadd.f32 %v5307, %v5327
    %v5344 = vadd.f32 %v5308, %v5328
    %v5345 = vadd.f32 %v5309, %v5329
    %v5346 = vadd.f32 %v5310, %v5330
    %v5347 = vadd.f32 %v5311, %v5331
    %v5348 = vadd.f32 %v5312, %v5332
    %v5349 = vadd.f32 %v5313, %v5333
    %v5350 = vadd.f32 %v5314, %v5334
    %v5351 = vlaneseq
    %v5352 = vshrl.u32 %v5351, 7
    %v5353 = vsub.s32 2, %v5352
    %v5354 = vrot.slane %v4506, %v5353
    %v5355 = vmul.f32 %v4737, %v5354
    %v5356 = vmul.f32 %v4742, %v5354
    %v5357 = vmul.f32 %v4747, %v5354
    %v5358 = vmul.f32 %v4752, %v5354
    %v5359 = vmul.f32 %v4757, %v5354
    %v5360 = vmul.f32 %v4762, %v5354
    %v5361 = vmul.f32 %v4767, %v5354
    %v5362 = vmul.f32 %v4772, %v5354
    %v5363 = vmul.f32 %v4777, %v5354
    %v5364 = vmul.f32 %v4782, %v5354
    %v5365 = vmul.f32 %v4787, %v5354
    %v5366 = vmul.f32 %v4792, %v5354
    %v5367 = vmul.f32 %v4797, %v5354
    %v5368 = vmul.f32 %v4802, %v5354
    %v5369 = vmul.f32 %v4807, %v5354
    %v5370 = vmul.f32 %v4812, %v5354
    %v5371 = vadd.f32 %v5335, %v5355
    %v5372 = vadd.f32 %v5336, %v5356
    %v5373 = vadd.f32 %v5337, %v5357
    %v5374 = vadd.f32 %v5338, %v5358
    %v5375 = vadd.f32 %v5339, %v5359
    %v5376 = vadd.f32 %v5340, %v5360
    %v5377 = vadd.f32 %v5341, %v5361
    %v5378 = vadd.f32 %v5342, %v5362
    %v5379 = vadd.f32 %v5343, %v5363
    %v5380 = vadd.f32 %v5344, %v5364
    %v5381 = vadd.f32 %v5345, %v5365
    %v5382 = vadd.f32 %v5346, %v5366
    %v5383 = vadd.f32 %v5347, %v5367
    %v5384 = vadd.f32 %v5348, %v5368
    %v5385 = vadd.f32 %v5349, %v5369
    %v5386 = vadd.f32 %v5350, %v5370
    %v5387 = vlaneseq
    %v5388 = vshrl.u32 %v5387, 7
    %v5389 = vsub.s32 3, %v5388
    %v5390 = vrot.slane %v4506, %v5389
    %v5391 = vmul.f32 %v4817, %v5390
    %v5392 = vmul.f32 %v4822, %v5390
    %v5393 = vmul.f32 %v4827, %v5390
    %v5394 = vmul.f32 %v4832, %v5390
    %v5395 = vmul.f32 %v4837, %v5390
    %v5396 = vmul.f32 %v4842, %v5390
    %v5397 = vmul.f32 %v4847, %v5390
    %v5398 = vmul.f32 %v4852, %v5390
    %v5399 = vmul.f32 %v4857, %v5390
    %v5400 = vmul.f32 %v4862, %v5390
    %v5401 = vmul.f32 %v4867, %v5390
    %v5402 = vmul.f32 %v4872, %v5390
    %v5403 = vmul.f32 %v4877, %v5390
    %v5404 = vmul.f32 %v4882, %v5390
    %v5405 = vmul.f32 %v4887, %v5390
    %v5406 = vmul.f32 %v4892, %v5390
    %v5407 = vadd.f32 %v5371, %v5391
    %v5408 = vadd.f32 %v5372, %v5392
    %v5409 = vadd.f32 %v5373, %v5393
    %v5410 = vadd.f32 %v5374, %v5394
    %v5411 = vadd.f32 %v5375, %v5395
    %v5412 = vadd.f32 %v5376, %v5396
    %v5413 = vadd.f32 %v5377, %v5397
    %v5414 = vadd.f32 %v5378, %v5398
    %v5415 = vadd.f32 %v5379, %v5399
    %v5416 = vadd.f32 %v5380, %v5400
    %v5417 = vadd.f32 %v5381, %v5401
    %v5418 = vadd.f32 %v5382, %v5402
    %v5419 = vadd.f32 %v5383, %v5403
    %v5420 = vadd.f32 %v5384, %v5404
    %v5421 = vadd.f32 %v5385, %v5405
    %v5422 = vadd.f32 %v5386, %v5406
    %v5423 = vlaneseq
    %v5424 = vshrl.u32 %v5423, 7
    %v5425 = vsub.s32 4, %v5424
    %v5426 = vrot.slane %v4506, %v5425
    %v5427 = vmul.f32 %v4897, %v5426
    %v5428 = vmul.f32 %v4902, %v5426
    %v5429 = vmul.f32 %v4907, %v5426
    %v5430 = vmul.f32 %v4912, %v5426
    %v5431 = vmul.f32 %v4917, %v5426
    %v5432 = vmul.f32 %v4922, %v5426
    %v5433 = vmul.f32 %v4927, %v5426
    %v5434 = vmul.f32 %v4932, %v5426
    %v5435 = vmul.f32 %v4937, %v5426
    %v5436 = vmul.f32 %v4942, %v5426
    %v5437 = vmul.f32 %v4947, %v5426
    %v5438 = vmul.f32 %v4952, %v5426
    %v5439 = vmul.f32 %v4957, %v5426
    %v5440 = vmul.f32 %v4962, %v5426
    %v5441 = vmul.f32 %v4967, %v5426
    %v5442 = vmul.f32 %v4972, %v5426
    %v5443 = vadd.f32 %v5407, %v5427
    %v5444 = vadd.f32 %v5408, %v5428
    %v5445 = vadd.f32 %v5409, %v5429
    %v5446 = vadd.f32 %v5410, %v5430
    %v5447 = vadd.f32 %v5411, %v5431
    %v5448 = vadd.f32 %v5412, %v5432
    %v5449 = vadd.f32 %v5413, %v5433
    %v5450 = vadd.f32 %v5414, %v5434
    %v5451 = vadd.f32 %v5415, %v5435
    %v5452 = vadd.f32 %v5416, %v5436
    %v5453 = vadd.f32 %v5417, %v5437
    %v5454 = vadd.f32 %v5418, %v5438
    %v5455 = vadd.f32 %v5419, %v5439
    %v5456 = vadd.f32 %v5420, %v5440
    %v5457 = vadd.f32 %v5421, %v5441
    %v5458 = vadd.f32 %v5422, %v5442
    %v5459 = vlaneseq
    %v5460 = vshrl.u32 %v5459, 7
    %v5461 = vsub.s32 5, %v5460
    %v5462 = vrot.slane %v4506, %v5461
    %v5463 = vmul.f32 %v4977, %v5462
    %v5464 = vmul.f32 %v4982, %v5462
    %v5465 = vmul.f32 %v4987, %v5462
    %v5466 = vmul.f32 %v4992, %v5462
    %v5467 = vmul.f32 %v4997, %v5462
    %v5468 = vmul.f32 %v5002, %v5462
    %v5469 = vmul.f32 %v5007, %v5462
    %v5470 = vmul.f32 %v5012, %v5462
    %v5471 = vmul.f32 %v5017, %v5462
    %v5472 = vmul.f32 %v5022, %v5462
    %v5473 = vmul.f32 %v5027, %v5462
    %v5474 = vmul.f32 %v5032, %v5462
    %v5475 = vmul.f32 %v5037, %v5462
    %v5476 = vmul.f32 %v5042, %v5462
    %v5477 = vmul.f32 %v5047, %v5462
    %v5478 = vmul.f32 %v5052, %v5462
    %v5479 = vadd.f32 %v5443, %v5463
    %v5480 = vadd.f32 %v5444, %v5464
    %v5481 = vadd.f32 %v5445, %v5465
    %v5482 = vadd.f32 %v5446, %v5466
    %v5483 = vadd.f32 %v5447, %v5467
    %v5484 = vadd.f32 %v5448, %v5468
    %v5485 = vadd.f32 %v5449, %v5469
    %v5486 = vadd.f32 %v5450, %v5470
    %v5487 = vadd.f32 %v5451, %v5471
    %v5488 = vadd.f32 %v5452, %v5472
    %v5489 = vadd.f32 %v5453, %v5473
    %v5490 = vadd.f32 %v5454, %v5474
    %v5491 = vadd.f32 %v5455, %v5475
    %v5492 = vadd.f32 %v5456, %v5476
    %v5493 = vadd.f32 %v5457, %v5477
    %v5494 = vadd.f32 %v5458, %v5478
    %v5495 = vlaneseq
    %v5496 = vshrl.u32 %v5495, 7
    %v5497 = vsub.s32 6, %v5496
    %v5498 = vrot.slane %v4506, %v5497
    %v5499 = vmul.f32 %v5057, %v5498
    %v5500 = vmul.f32 %v5062, %v5498
    %v5501 = vmul.f32 %v5067, %v5498
    %v5502 = vmul.f32 %v5072, %v5498
    %v5503 = vmul.f32 %v5077, %v5498
    %v5504 = vmul.f32 %v5082, %v5498
    %v5505 = vmul.f32 %v5087, %v5498
    %v5506 = vmul.f32 %v5092, %v5498
    %v5507 = vmul.f32 %v5097, %v5498
    %v5508 = vmul.f32 %v5102, %v5498
    %v5509 = vmul.f32 %v5107, %v5498
    %v5510 = vmul.f32 %v5112, %v5498
    %v5511 = vmul.f32 %v5117, %v5498
    %v5512 = vmul.f32 %v5122, %v5498
    %v5513 = vmul.f32 %v5127, %v5498
    %v5514 = vmul.f32 %v5132, %v5498
    %v5515 = vadd.f32 %v5479, %v5499
    %v5516 = vadd.f32 %v5480, %v5500
    %v5517 = vadd.f32 %v5481, %v5501
    %v5518 = vadd.f32 %v5482, %v5502
    %v5519 = vadd.f32 %v5483, %v5503
    %v5520 = vadd.f32 %v5484, %v5504
    %v5521 = vadd.f32 %v5485, %v5505
    %v5522 = vadd.f32 %v5486, %v5506
    %v5523 = vadd.f32 %v5487, %v5507
    %v5524 = vadd.f32 %v5488, %v5508
    %v5525 = vadd.f32 %v5489, %v5509
    %v5526 = vadd.f32 %v5490, %v5510
    %v5527 = vadd.f32 %v5491, %v5511
    %v5528 = vadd.f32 %v5492, %v5512
    %v5529 = vadd.f32 %v5493, %v5513
    %v5530 = vadd.f32 %v5494, %v5514
    %v5531 = vlaneseq
    %v5532 = vshrl.u32 %v5531, 7
    %v5533 = vsub.s32 7, %v5532
    %v5534 = vrot.slane %v4506, %v5533
    %v5535 = vmul.f32 %v5137, %v5534
    %v5536 = vmul.f32 %v5142, %v5534
    %v5537 = vmul.f32 %v5147, %v5534
    %v5538 = vmul.f32 %v5152, %v5534
    %v5539 = vmul.f32 %v5157, %v5534
    %v5540 = vmul.f32 %v5162, %v5534
    %v5541 = vmul.f32 %v5167, %v5534
    %v5542 = vmul.f32 %v5172, %v5534
    %v5543 = vmul.f32 %v5177, %v5534
    %v5544 = vmul.f32 %v5182, %v5534
    %v5545 = vmul.f32 %v5187, %v5534
    %v5546 = vmul.f32 %v5192, %v5534
    %v5547 = vmul.f32 %v5197, %v5534
    %v5548 = vmul.f32 %v5202, %v5534
    %v5549 = vmul.f32 %v5207, %v5534
    %v5550 = vmul.f32 %v5212, %v5534
    %v5551 = vadd.f32 %v5515, %v5535
    %v5552 = vadd.f32 %v5516, %v5536
    %v5553 = vadd.f32 %v5517, %v5537
    %v5554 = vadd.f32 %v5518, %v5538
    %v5555 = vadd.f32 %v5519, %v5539
    %v5556 = vadd.f32 %v5520, %v5540
    %v5557 = vadd.f32 %v5521, %v5541
    %v5558 = vadd.f32 %v5522, %v5542
    %v5559 = vadd.f32 %v5523, %v5543
    %v5560 = vadd.f32 %v5524, %v5544
    %v5561 = vadd.f32 %v5525, %v5545
    %v5562 = vadd.f32 %v5526, %v5546
    %v5563 = vadd.f32 %v5527, %v5547
    %v5564 = vadd.f32 %v5528, %v5548
    %v5565 = vadd.f32 %v5529, %v5549
    %v5566 = vadd.f32 %v5530, %v5550
    %v5567 = vlaneseq
    %v5568 = vshrl.u32 %v5567, 7
    %v5569 = vsub.s32 0, %v5568
    %v5570 = vrot.slane %v4507, %v5569
    %v5571 = vmul.f32 %v5217, %v5570
    %v5572 = vmul.f32 %v5222, %v5570
    %v5573 = vmul.f32 %v5227, %v5570
    %v5574 = vmul.f32 %v5232, %v5570
    %v5575 = vmul.f32 %v5237, %v5570
    %v5576 = vmul.f32 %v5242, %v5570
    %v5577 = vmul.f32 %v5247, %v5570
    %v5578 = vmul.f32 %v5252, %v5570
    %v5579 = vmul.f32 %v5257, %v5570
    %v5580 = vmul.f32 %v5262, %v5570
    %v5581 = vmul.f32 %v5267, %v5570
    %v5582 = vmul.f32 %v5272, %v5570
    %v5583 = vmul.f32 %v5277, %v5570
    %v5584 = vmul.f32 %v5282, %v5570
    %v5585 = vmul.f32 %v5287, %v5570
    %v5586 = vmul.f32 %v5292, %v5570
    %v5587 = vadd.f32 %v5551, %v5571
    %v5588 = vadd.f32 %v5552, %v5572
    %v5589 = vadd.f32 %v5553, %v5573
    %v5590 = vadd.f32 %v5554, %v5574
    %v5591 = vadd.f32 %v5555, %v5575
    %v5592 = vadd.f32 %v5556, %v5576
    %v5593 = vadd.f32 %v5557, %v5577
    %v5594 = vadd.f32 %v5558, %v5578
    %v5595 = vadd.f32 %v5559, %v5579
    %v5596 = vadd.f32 %v5560, %v5580
    %v5597 = vadd.f32 %v5561, %v5581
    %v5598 = vadd.f32 %v5562, %v5582
    %v5599 = vadd.f32 %v5563, %v5583
    %v5600 = vadd.f32 %v5564, %v5584
    %v5601 = vadd.f32 %v5565, %v5585
    %v5602 = vadd.f32 %v5566, %v5586
    %v5604 = vsel %vm226, %v5587, 0
    %v5607 = vsel %vm226, %v5588, 0
    %v5610 = vsel %vm226, %v5589, 0
    %v5613 = vsel %vm226, %v5590, 0
    %v5616 = vsel %vm226, %v5591, 0
    %v5619 = vsel %vm226, %v5592, 0
    %v5622 = vsel %vm226, %v5593, 0
    %v5625 = vsel %vm226, %v5594, 0
    %v5628 = vsel %vm226, %v5595, 0
    %v5631 = vsel %vm226, %v5596, 0
    %v5634 = vsel %vm226, %v5597, 0
    %v5637 = vsel %vm226, %v5598, 0
    %v5640 = vsel %vm226, %v5599, 0
    %v5643 = vsel %vm226, %v5600, 0
    %v5646 = vsel %vm226, %v5601, 0
    %v5649 = vsel %vm226, %v5602, 0
    %5651 = vmatprep.subr.mxu0 0.0
    %5652 = vmatpush1.msra.mxu0 %v4508
    %5653 = vmatprep.subr.mxu0 0.0
    %5654 = vmatpush1.msra.mxu0 %v4509
    %5655 = vmatprep.subr.mxu0 0.0
    %5656 = vmatpush1.msra.mxu0 0.0
    %5657 = vmatprep.subr.mxu0 0.0
    %5658 = vmatpush1.msra.mxu0 0.0
    %5659 = vmatprep.subr.mxu0 0.0
    %5660 = vmatpush1.msra.mxu0 0.0
    %5661 = vmatprep.subr.mxu0 0.0
    %5662 = vmatpush1.msra.mxu0 0.0
    %5663 = vmatprep.subr.mxu0 0.0
    %5664 = vmatpush1.msra.mxu0 0.0
    %5665 = vmatprep.subr.mxu0 0.0
    %5666 = vmatpush1.msra.mxu0 0.0
    %5667 = vmatprep.subr.mxu0 0.0
    %5668 = vmatpush1.msra.mxu0 0.0
    %5669 = vmatprep.subr.mxu0 0.0
    %5670 = vmatpush1.msra.mxu0 0.0
    %5671 = vmatprep.subr.mxu0 0.0
    %5672 = vmatpush1.msra.mxu0 0.0
    %5673 = vmatprep.subr.mxu0 0.0
    %5674 = vmatpush1.msra.mxu0 0.0
    %5675 = vmatprep.subr.mxu0 0.0
    %5676 = vmatpush1.msra.mxu0 0.0
    %5677 = vmatprep.subr.mxu0 0.0
    %5678 = vmatpush1.msra.mxu0 0.0
    %5679 = vmatprep.subr.mxu0 0.0
    %5680 = vmatpush1.msra.mxu0 0.0
    %5681 = vmatprep.subr.mxu0 0.0
    %5682 = vmatpush1.msra.mxu0 0.0
    %5683 = vmatprep.subr.mxu0 0.0
    %5684 = vmatpush1.msra.mxu0 0.0
    %5685 = vmatprep.subr.mxu0 0.0
    %5686 = vmatpush1.msra.mxu0 0.0
    %5687 = vmatprep.subr.mxu0 0.0
    %5688 = vmatpush1.msra.mxu0 0.0
    %5689 = vmatprep.subr.mxu0 0.0
    %5690 = vmatpush1.msra.mxu0 0.0
    %5691 = vmatprep.subr.mxu0 0.0
    %5692 = vmatpush1.msra.mxu0 0.0
    %5693 = vmatprep.subr.mxu0 0.0
    %5694 = vmatpush1.msra.mxu0 0.0
    %5695 = vmatprep.subr.mxu0 0.0
    %5696 = vmatpush1.msra.mxu0 0.0
    %5697 = vmatprep.subr.mxu0 0.0
    %5698 = vmatpush1.msra.mxu0 0.0
    %5699 = vmatprep.subr.mxu0 0.0
    %5700 = vmatpush1.msra.mxu0 0.0
    %5701 = vmatprep.subr.mxu0 0.0
    %5702 = vmatpush1.msra.mxu0 0.0
    %5703 = vmatprep.subr.mxu0 0.0
    %5704 = vmatpush1.msra.mxu0 0.0
    %5705 = vmatprep.subr.mxu0 0.0
    %5706 = vmatpush1.msra.mxu0 0.0
    %5707 = vmatprep.subr.mxu0 0.0
    %5708 = vmatpush1.msra.mxu0 0.0
    %5709 = vmatprep.subr.mxu0 0.0
    %5710 = vmatpush1.msra.mxu0 0.0
    %5711 = vmatprep.subr.mxu0 0.0
    %5712 = vmatpush1.msra.mxu0 0.0
    %5713 = vmatprep.subr.mxu0 0.0
    %5714 = vmatpush1.msra.mxu0 0.0
    %5715 = vmatprep.mubr.f32.mxu0 0.0
    %5716 = vmatmul.mubr.f32.gmra.mrb[0].mxu0 %v5604
    %v5717 = vpop.f32.mrb[0].mxu0
    %v5718 = vadd.f32 0.0, %v5717
    %v5719 = vpop.f32.mrb[0].mxu0
    %5720 = vmatprep.mubr.f32.mxu0 0.0
    %5721 = vmatmul.mubr.f32.gmra.mrb[0].mxu0 %v5607
    %v5722 = vpop.f32.mrb[0].mxu0
    %v5723 = vadd.f32 0.0, %v5722
    %v5724 = vpop.f32.mrb[0].mxu0
    %5725 = vmatprep.mubr.f32.mxu0 0.0
    %5726 = vmatmul.mubr.f32.gmra.mrb[0].mxu0 %v5610
    %v5727 = vpop.f32.mrb[0].mxu0
    %v5728 = vadd.f32 0.0, %v5727
    %v5729 = vpop.f32.mrb[0].mxu0
    %5730 = vmatprep.mubr.f32.mxu0 0.0
    %5731 = vmatmul.mubr.f32.gmra.mrb[0].mxu0 %v5613
    %v5732 = vpop.f32.mrb[0].mxu0
    %v5733 = vadd.f32 0.0, %v5732
    %v5734 = vpop.f32.mrb[0].mxu0
    %5735 = vmatprep.mubr.f32.mxu0 0.0
    %5736 = vmatmul.mubr.f32.gmra.mrb[0].mxu0 %v5616
    %v5737 = vpop.f32.mrb[0].mxu0
    %v5738 = vadd.f32 0.0, %v5737
    %v5739 = vpop.f32.mrb[0].mxu0
    %5740 = vmatprep.mubr.f32.mxu0 0.0
    %5741 = vmatmul.mubr.f32.gmra.mrb[0].mxu0 %v5619
    %v5742 = vpop.f32.mrb[0].mxu0
    %v5743 = vadd.f32 0.0, %v5742
    %v5744 = vpop.f32.mrb[0].mxu0
    %5745 = vmatprep.mubr.f32.mxu0 0.0
    %5746 = vmatmul.mubr.f32.gmra.mrb[0].mxu0 %v5622
    %v5747 = vpop.f32.mrb[0].mxu0
    %v5748 = vadd.f32 0.0, %v5747
    %v5749 = vpop.f32.mrb[0].mxu0
    %5750 = vmatprep.mubr.f32.mxu0 0.0
    %5751 = vmatmul.mubr.f32.gmra.mrb[0].mxu0 %v5625
    %v5752 = vpop.f32.mrb[0].mxu0
    %v5753 = vadd.f32 0.0, %v5752
    %v5754 = vpop.f32.mrb[0].mxu0
    %5755 = vmatprep.mubr.f32.mxu0 0.0
    %5756 = vmatmul.mubr.f32.gmra.mrb[0].mxu0 %v5628
    %v5757 = vpop.f32.mrb[0].mxu0
    %v5758 = vadd.f32 0.0, %v5757
    %v5759 = vpop.f32.mrb[0].mxu0
    %5760 = vmatprep.mubr.f32.mxu0 0.0
    %5761 = vmatmul.mubr.f32.gmra.mrb[0].mxu0 %v5631
    %v5762 = vpop.f32.mrb[0].mxu0
    %v5763 = vadd.f32 0.0, %v5762
    %v5764 = vpop.f32.mrb[0].mxu0
    %5765 = vmatprep.mubr.f32.mxu0 0.0
    %5766 = vmatmul.mubr.f32.gmra.mrb[0].mxu0 %v5634
    %v5767 = vpop.f32.mrb[0].mxu0
    %v5768 = vadd.f32 0.0, %v5767
    %v5769 = vpop.f32.mrb[0].mxu0
    %5770 = vmatprep.mubr.f32.mxu0 0.0
    %5771 = vmatmul.mubr.f32.gmra.mrb[0].mxu0 %v5637
    %v5772 = vpop.f32.mrb[0].mxu0
    %v5773 = vadd.f32 0.0, %v5772
    %v5774 = vpop.f32.mrb[0].mxu0
    %5775 = vmatprep.mubr.f32.mxu0 0.0
    %5776 = vmatmul.mubr.f32.gmra.mrb[0].mxu0 %v5640
    %v5777 = vpop.f32.mrb[0].mxu0
    %v5778 = vadd.f32 0.0, %v5777
    %v5779 = vpop.f32.mrb[0].mxu0
    %5780 = vmatprep.mubr.f32.mxu0 0.0
    %5781 = vmatmul.mubr.f32.gmra.mrb[0].mxu0 %v5643
    %v5782 = vpop.f32.mrb[0].mxu0
    %v5783 = vadd.f32 0.0, %v5782
    %v5784 = vpop.f32.mrb[0].mxu0
    %5785 = vmatprep.mubr.f32.mxu0 0.0
    %5786 = vmatmul.mubr.f32.gmra.mrb[0].mxu0 %v5646
    %v5787 = vpop.f32.mrb[0].mxu0
    %v5788 = vadd.f32 0.0, %v5787
    %v5789 = vpop.f32.mrb[0].mxu0
    %5790 = vmatprep.mubr.f32.mxu0 0.0
    %5791 = vmatmul.mubr.f32.gmra.mrb[0].mxu0 %v5649
    %v5792 = vpop.f32.mrb[0].mxu0
    %v5793 = vadd.f32 0.0, %v5792
    %v5794 = vpop.f32.mrb[0].mxu0
    %5795 = vdwg.mxu0
    %5796 = vst [vmem:[%s19] sm:$0xff] %v5718
    %5797 = vst [vmem:[%s19 + $0x8] sm:$0xff] %v5723
    %5798 = vst [vmem:[%s19 + $0x10] sm:$0xff] %v5728
    %5799 = vst [vmem:[%s19 + $0x18] sm:$0xff] %v5733
    %5800 = vst [vmem:[%s19 + $0x20] sm:$0xff] %v5738
    %5801 = vst [vmem:[%s19 + $0x28] sm:$0xff] %v5743
    %5802 = vst [vmem:[%s19 + $0x30] sm:$0xff] %v5748
    %5803 = vst [vmem:[%s19 + $0x38] sm:$0xff] %v5753
    %5804 = vst [vmem:[%s19 + $0x40] sm:$0xff] %v5758
    %5805 = vst [vmem:[%s19 + $0x48] sm:$0xff] %v5763
    %5806 = vst [vmem:[%s19 + $0x50] sm:$0xff] %v5768
    %5807 = vst [vmem:[%s19 + $0x58] sm:$0xff] %v5773
    %5808 = vst [vmem:[%s19 + $0x60] sm:$0xff] %v5778
    %5809 = vst [vmem:[%s19 + $0x68] sm:$0xff] %v5783
    %5810 = vst [vmem:[%s19 + $0x70] sm:$0xff] %v5788
    %5811 = vst [vmem:[%s19 + $0x78] sm:$0xff] %v5793
    // Predicated region
    $region126: #{decoder3d_forward.1} parent=1 // pred_check
      _
    $region127: #{decoder3d_forward.1} parent=1 // pred_check_branch
      %5813 = sbr.rel (0) target = $region129
    $region128: #{decoder3d_forward.1} parent=1 // pred_region
      _
    $region129: #{decoder3d_forward.1} parent=1 // pred_fallthru
      _
    // Predicated region
    $region130: #{decoder3d_forward.1} parent=1 // pred_check
      _
    $region131: #{decoder3d_forward.1} parent=1 // pred_check_branch
      %5815 = sbr.rel (0) target = $region133
    $region132: #{decoder3d_forward.1} parent=1 // pred_region
      _
    $region133: #{decoder3d_forward.1} parent=1 // pred_fallthru
      _
    %5816 = vsyncpa [#allocation3], 1
    %5817 = vsyncpa [#allocation5], 1
    %5818 = vsyncpa [#allocation8], 1
    %5819 = vsyncpa [#allocation11], 1
    %5820 = vsyncpa [#allocation14], 1
    %5821 = vsyncpa [#allocation17], 1
    %5822 = vsyncpa [#allocation20], 1

</llo_original>
